<compile_context>
chip_gen: v7x
topology: tpu7x:2x2x1
jax: 0.10.0
libtpu: 0.0.40
codegen_flags: <defaults>
</compile_context>

<pallas_src>
import functools

import jax
import jax.numpy as jnp
from jax.experimental import pallas as pl
from jax.experimental.pallas import tpu as pltpu


def _mha_fused_kernel(x_ref, mask_ref, wqkv_ref, bqkv_ref, wp_ref, bp_ref,
                      o_ref, *, n_heads, d_head, batch_block, seq_len, scale,
                      mm_dtype):
    """Fused MHA + output projection for one block of batch elements.

    x_ref    : (Bb, T, d_model)
    mask_ref : (T, T) bf16, 1 = visible, 0 = masked
    wqkv_ref : (d_model, 3*d_model) bf16 fused [Wq | Wk | Wv], head-major cols
    bqkv_ref : (1, 3*d_model) f32
    wp_ref   : (H*Bb, d_head, d_model) bf16, n = h*Bb + b  -> Wp rows of head h
    bp_ref   : (1, d_model) f32
    o_ref    : (Bb, T, d_model)
    """
    H, d, Bb, T = n_heads, d_head, batch_block, seq_len
    d_model = H * d
    neg = jnp.float32(-1e30)

    # ---- fused QKV projection: one wide MXU matmul for all heads -----------
    x2 = x_ref[...].reshape(Bb * T, d_model).astype(mm_dtype)
    qkv = (jnp.dot(x2, wqkv_ref[...], preferred_element_type=jnp.float32)
           + bqkv_ref[...])                                 # (Bb*T, 3*dm) f32

    q_sec = qkv[:, 0 * d_model:1 * d_model] * scale         # fold softmax scale
    k_sec = qkv[:, 1 * d_model:2 * d_model]
    v_sec = qkv[:, 2 * d_model:3 * d_model]

    # ---- head/batch-major views (H*Bb, T, d), n = h*Bb + b ------------------
    def split(sec):
        parts = [sec[b * T:(b + 1) * T, h * d:(h + 1) * d]
                 for h in range(H) for b in range(Bb)]
        return jnp.stack(parts, axis=0).astype(mm_dtype)

    qh, kh, vh = split(q_sec), split(k_sec), split(v_sec)

    # ---- batched attention for all (head, batch) pairs at once -------------
    s = jnp.einsum('nqd,nkd->nqk', qh, kh,
                   preferred_element_type=jnp.float32)       # (N, T, T) f32
    masked = mask_ref[...] == 0                               # (T, T) bool
    s = jnp.where(masked[None, :, :], neg, s)

    m = jnp.max(s, axis=-1, keepdims=True)
    e = jnp.exp(s - m)
    l = jnp.sum(e, axis=-1, keepdims=True)
    p = (e * pl.reciprocal(l, approx=True)).astype(mm_dtype)

    o = jnp.einsum('nqk,nkd->nqd', p, vh,
                   preferred_element_type=jnp.float32)       # (N, T, d) f32

    # ---- fused output projection (no lane concat): batched dot + head-sum --
    proj = jnp.einsum('nqd,ndm->nqm', o.astype(mm_dtype), wp_ref[...],
                      preferred_element_type=jnp.float32)    # (N, T, d_model)
    out = jnp.sum(proj.reshape(H, Bb, T, d_model), axis=0) + bp_ref[...]
    o_ref[...] = out.astype(o_ref.dtype)


def multi_head_attention(x, mask, params, *, batch_block=None,
                         mm_dtype=jnp.bfloat16):
    """params: dict of per-head weights already transposed to (in, out)."""
    wq, bq = params["wq"], params["bq"]          # (H, d_model, d), (H, 1, d)
    wk, bk = params["wk"], params["bk"]
    wv, bv = params["wv"], params["bv"]
    wp, bp = params["wp"], params["bp"]          # (d_model, d_model), (1, d_model)

    B, T, d_model = x.shape
    H, _, d = wq.shape
    assert H * d == d_model
    scale = float(d) ** -0.5

    if batch_block is None:
        batch_block = B                          # collapse grid at small shapes
    assert B % batch_block == 0
    nb = B // batch_block

    # --- wrapper-side weight fusion / casting (layout plumbing, done once) --
    def fuse_w(w):                               # (H, dm, d) -> (dm, H*d), col = h*d+j
        return jnp.transpose(w, (1, 0, 2)).reshape(d_model, H * d)

    def fuse_b(b):
        return b.reshape(1, H * d)

    wqkv = jnp.concatenate([fuse_w(wq), fuse_w(wk), fuse_w(wv)],
                           axis=-1).astype(mm_dtype)
    bqkv = jnp.concatenate([fuse_b(bq), fuse_b(bk), fuse_b(bv)],
                           axis=-1).astype(jnp.float32)
    # Wp split per head (rows h*d:(h+1)*d) and replicated per batch row of the
    # block so the projection is a single leading-batch dot_general.
    wp_rep = jnp.repeat(wp.reshape(H, d, d_model), batch_block,
                        axis=0).astype(mm_dtype)             # (H*Bb, d, dm)
    bp2 = bp.reshape(1, d_model).astype(jnp.float32)
    # Compact 0/1 mask (expanded to the additive -1e30 inside the kernel).
    mask_c = (mask != 0).astype(jnp.bfloat16)

    itemsize = jnp.dtype(x.dtype).itemsize
    flops = (2 * B * T * d_model * 3 * d_model            # fused QKV projection
             + 2 * 2 * B * H * T * T * d                  # QK^T and PV
             + 2 * B * T * d_model * d_model)             # output projection
    transcendentals = B * H * T * T + B * H * T           # exp + reciprocal
    bytes_accessed = (x.size * itemsize
                      + wqkv.size * 2 + bqkv.size * 4
                      + wp_rep.size * 2 + bp2.size * 4
                      + mask_c.size * 2
                      + B * T * d_model * itemsize)

    kernel = functools.partial(
        _mha_fused_kernel, n_heads=H, d_head=d, batch_block=batch_block,
        seq_len=T, scale=scale, mm_dtype=mm_dtype)

    def call(single_buffer_consts):
        const_kw = ({"pipeline_mode": pl.Buffered(1)}
                    if single_buffer_consts else {})
        in_specs = [
            pl.BlockSpec((batch_block, T, d_model), lambda b: (b, 0, 0)),   # x
            pl.BlockSpec((T, T), lambda b: (0, 0), **const_kw),             # mask
            pl.BlockSpec((d_model, 3 * d_model), lambda b: (0, 0), **const_kw),
            pl.BlockSpec((1, 3 * d_model), lambda b: (0, 0), **const_kw),
            pl.BlockSpec((H * batch_block, d, d_model),
                         lambda b: (0, 0, 0), **const_kw),
            pl.BlockSpec((1, d_model), lambda b: (0, 0), **const_kw),
        ]
        return pl.pallas_call(
            kernel,
            out_shape=jax.ShapeDtypeStruct((B, T, d_model), x.dtype),
            grid_spec=pltpu.PrefetchScalarGridSpec(
                num_scalar_prefetch=0,
                grid=(nb,),
                in_specs=in_specs,
                out_specs=pl.BlockSpec((batch_block, T, d_model),
                                       lambda b: (b, 0, 0)),
            ),
            compiler_params=pltpu.CompilerParams(
                dimension_semantics=("parallel",),
                vmem_limit_bytes=32 * 1024 * 1024),
            cost_estimate=pl.CostEstimate(
                flops=flops,
                transcendentals=transcendentals,
                bytes_accessed=bytes_accessed),
        )(x, mask_c, wqkv, bqkv, wp_rep, bp2)

    try:
        # Constant-index operands gain nothing from double-buffering; request
        # single buffering to halve their resident VMEM.
        return call(True)
    except Exception:
        # Fallback if this Pallas build rejects pipeline_mode=pl.Buffered(1).
        return call(False)


def _reference(x, mask, params):
    """Plain-JAX f32 reference mirroring the PyTorch forward (eval mode)."""
    wq, bq = params["wq"], params["bq"]
    wk, bk = params["wk"], params["bk"]
    wv, bv = params["wv"], params["bv"]
    wp, bp = params["wp"], params["bp"]
    B, T, d_model = x.shape
    H, _, d = wq.shape

    q = jnp.einsum("btm,hmd->bhtd", x, wq) + bq[None, :, :, :]
    k = jnp.einsum("btm,hmd->bhtd", x, wk) + bk[None, :, :, :]
    v = jnp.einsum("btm,hmd->bhtd", x, wv) + bv[None, :, :, :]
    s = jnp.einsum("bhqd,bhkd->bhqk", q, k) * (float(d) ** -0.5)
    s = jnp.where(mask[None, None] == 0, -jnp.inf, s)
    w = jax.nn.softmax(s, axis=-1)
    o = jnp.einsum("bhqk,bhkd->bhqd", w, v)
    o = jnp.transpose(o, (0, 2, 1, 3)).reshape(B, T, H * d)
    return o @ wp + bp


if __name__ == "__main__":
    B, T, d_model, n_heads = 2, 8, 32, 4
    d = d_model // n_heads

    key = jax.random.PRNGKey(0)
    ks = jax.random.split(key, 10)
    bound_h = 1.0 / (d_model ** 0.5)

    params = {
        "wq": jax.random.uniform(ks[0], (n_heads, d_model, d), jnp.float32, -bound_h, bound_h),
        "bq": jax.random.uniform(ks[1], (n_heads, 1, d), jnp.float32, -bound_h, bound_h),
        "wk": jax.random.uniform(ks[2], (n_heads, d_model, d), jnp.float32, -bound_h, bound_h),
        "bk": jax.random.uniform(ks[3], (n_heads, 1, d), jnp.float32, -bound_h, bound_h),
        "wv": jax.random.uniform(ks[4], (n_heads, d_model, d), jnp.float32, -bound_h, bound_h),
        "bv": jax.random.uniform(ks[5], (n_heads, 1, d), jnp.float32, -bound_h, bound_h),
        "wp": jax.random.uniform(ks[6], (d_model, d_model), jnp.float32, -bound_h, bound_h),
        "bp": jax.random.uniform(ks[7], (1, d_model), jnp.float32, -bound_h, bound_h),
    }

    x = jax.random.normal(ks[8], (B, T, d_model), jnp.float32)
    mask = jnp.tril(jnp.ones((T, T), jnp.float32))   # causal mask; 0 -> masked

    out = multi_head_attention(x, mask, params)
    out = jax.block_until_ready(out)

    ref = _reference(x, mask, params)
    assert out.shape == (B, T, d_model)
    # Tolerance accounts for bf16 MXU inputs (f32 accumulation) and the
    # approximate EUP reciprocal in the softmax denominator vs. the f32 ref.
    assert jnp.allclose(out, ref, atol=5e-2, rtol=5e-2), (
        float(jnp.max(jnp.abs(out - ref))))

    print("KERNEL_OK")
</pallas_src>

<mosaic_0001>
module attributes {stable_mosaic.version = 11 : i64} {
  func.func @_mha_fused_kernel(%arg0: i32, %arg1: memref<2x8x32xf32, #tpu.memory_space<vmem>>, %arg2: memref<8x8xbf16, #tpu.memory_space<vmem>>, %arg3: memref<32x96xbf16, #tpu.memory_space<vmem>>, %arg4: memref<1x96xf32, #tpu.memory_space<vmem>>, %arg5: memref<8x8x32xbf16, #tpu.memory_space<vmem>>, %arg6: memref<1x32xf32, #tpu.memory_space<vmem>>, %arg7: memref<2x8x32xf32, #tpu.memory_space<vmem>>) attributes {dimension_semantics = [#tpu.dimension_semantics<parallel>], iteration_bounds = array<i64: 1>, scalar_prefetch = 0 : i64, scratch_operands = 0 : i64, tpu.core_type = #tpu.core_type<tc>, window_params = [{transform_indices = @transform_0, window_bounds = array<i64: 2, 8, 32>}, {pipeline_mode = #tpu.pipeline_mode<synchronous>, transform_indices = @transform_1, window_bounds = array<i64: 8, 8>}, {pipeline_mode = #tpu.pipeline_mode<synchronous>, transform_indices = @transform_2, window_bounds = array<i64: 32, 96>}, {pipeline_mode = #tpu.pipeline_mode<synchronous>, transform_indices = @transform_3, window_bounds = array<i64: 1, 96>}, {pipeline_mode = #tpu.pipeline_mode<synchronous>, transform_indices = @transform_4, window_bounds = array<i64: 8, 8, 32>}, {pipeline_mode = #tpu.pipeline_mode<synchronous>, transform_indices = @transform_5, window_bounds = array<i64: 1, 32>}, {transform_indices = @transform_6, window_bounds = array<i64: 2, 8, 32>}]} {
    %c0 = arith.constant 0 : index
    %c0_0 = arith.constant 0 : index
    %c0_1 = arith.constant 0 : index
    %0 = vector.load %arg1[%c0, %c0_0, %c0_1] : memref<2x8x32xf32, #tpu.memory_space<vmem>>, vector<2x8x32xf32>
    %1 = vector.shape_cast %0 : vector<2x8x32xf32> to vector<16x32xf32>
    %2 = arith.truncf %1 : vector<16x32xf32> to vector<16x32xbf16>
    %c0_2 = arith.constant 0 : index
    %c0_3 = arith.constant 0 : index
    %3 = vector.load %arg3[%c0_2, %c0_3] : memref<32x96xbf16, #tpu.memory_space<vmem>>, vector<32x96xbf16>
    %cst = arith.constant dense<0.000000e+00> : vector<16x96xf32>
    %4 = tpu.matmul %2, %3, %cst {dimension_numbers = #tpu.dot_dimension_numbers<[1], [0], [0], [1], [0, 0, 1, 1], [], []>} : vector<16x32xbf16>, vector<32x96xbf16>, vector<16x96xf32> -> vector<16x96xf32>
    %c0_4 = arith.constant 0 : index
    %c0_5 = arith.constant 0 : index
    %5 = vector.load %arg4[%c0_4, %c0_5] : memref<1x96xf32, #tpu.memory_space<vmem>>, vector<1x96xf32>
    %6 = vector.broadcast %5 : vector<1x96xf32> to vector<16x96xf32>
    %7 = arith.addf %4, %6 : vector<16x96xf32>
    %8 = vector.extract_strided_slice %7 {offsets = [0, 0], sizes = [16, 32], strides = [1, 1]} : vector<16x96xf32> to vector<16x32xf32>
    %cst_6 = arith.constant 0.353553385 : f32
    %9 = vector.broadcast %cst_6 : f32 to vector<16x32xf32>
    %10 = arith.mulf %8, %9 : vector<16x32xf32>
    %11 = vector.extract_strided_slice %7 {offsets = [0, 32], sizes = [16, 32], strides = [1, 1]} : vector<16x96xf32> to vector<16x32xf32>
    %12 = vector.extract_strided_slice %7 {offsets = [0, 64], sizes = [16, 32], strides = [1, 1]} : vector<16x96xf32> to vector<16x32xf32>
    %13 = vector.extract_strided_slice %10 {offsets = [0, 0], sizes = [8, 8], strides = [1, 1]} : vector<16x32xf32> to vector<8x8xf32>
    %14 = vector.extract_strided_slice %10 {offsets = [8, 0], sizes = [8, 8], strides = [1, 1]} : vector<16x32xf32> to vector<8x8xf32>
    %15 = vector.extract_strided_slice %10 {offsets = [0, 8], sizes = [8, 8], strides = [1, 1]} : vector<16x32xf32> to vector<8x8xf32>
    %16 = vector.extract_strided_slice %10 {offsets = [8, 8], sizes = [8, 8], strides = [1, 1]} : vector<16x32xf32> to vector<8x8xf32>
    %17 = vector.extract_strided_slice %10 {offsets = [0, 16], sizes = [8, 8], strides = [1, 1]} : vector<16x32xf32> to vector<8x8xf32>
    %18 = vector.extract_strided_slice %10 {offsets = [8, 16], sizes = [8, 8], strides = [1, 1]} : vector<16x32xf32> to vector<8x8xf32>
    %19 = vector.extract_strided_slice %10 {offsets = [0, 24], sizes = [8, 8], strides = [1, 1]} : vector<16x32xf32> to vector<8x8xf32>
    %20 = vector.extract_strided_slice %10 {offsets = [8, 24], sizes = [8, 8], strides = [1, 1]} : vector<16x32xf32> to vector<8x8xf32>
    %21 = vector.shape_cast %13 : vector<8x8xf32> to vector<1x8x8xf32>
    %22 = vector.shape_cast %14 : vector<8x8xf32> to vector<1x8x8xf32>
    %23 = vector.shape_cast %15 : vector<8x8xf32> to vector<1x8x8xf32>
    %24 = vector.shape_cast %16 : vector<8x8xf32> to vector<1x8x8xf32>
    %25 = vector.shape_cast %17 : vector<8x8xf32> to vector<1x8x8xf32>
    %26 = vector.shape_cast %18 : vector<8x8xf32> to vector<1x8x8xf32>
    %27 = vector.shape_cast %19 : vector<8x8xf32> to vector<1x8x8xf32>
    %28 = vector.shape_cast %20 : vector<8x8xf32> to vector<1x8x8xf32>
    %29 = tpu.concatenate %21, %22, %23, %24, %25, %26, %27, %28 in 0 : vector<1x8x8xf32>, vector<1x8x8xf32>, vector<1x8x8xf32>, vector<1x8x8xf32>, vector<1x8x8xf32>, vector<1x8x8xf32>, vector<1x8x8xf32>, vector<1x8x8xf32> -> vector<8x8x8xf32>
    %30 = arith.truncf %29 : vector<8x8x8xf32> to vector<8x8x8xbf16>
    %31 = vector.extract_strided_slice %11 {offsets = [0, 0], sizes = [8, 8], strides = [1, 1]} : vector<16x32xf32> to vector<8x8xf32>
    %32 = vector.extract_strided_slice %11 {offsets = [8, 0], sizes = [8, 8], strides = [1, 1]} : vector<16x32xf32> to vector<8x8xf32>
    %33 = vector.extract_strided_slice %11 {offsets = [0, 8], sizes = [8, 8], strides = [1, 1]} : vector<16x32xf32> to vector<8x8xf32>
    %34 = vector.extract_strided_slice %11 {offsets = [8, 8], sizes = [8, 8], strides = [1, 1]} : vector<16x32xf32> to vector<8x8xf32>
    %35 = vector.extract_strided_slice %11 {offsets = [0, 16], sizes = [8, 8], strides = [1, 1]} : vector<16x32xf32> to vector<8x8xf32>
    %36 = vector.extract_strided_slice %11 {offsets = [8, 16], sizes = [8, 8], strides = [1, 1]} : vector<16x32xf32> to vector<8x8xf32>
    %37 = vector.extract_strided_slice %11 {offsets = [0, 24], sizes = [8, 8], strides = [1, 1]} : vector<16x32xf32> to vector<8x8xf32>
    %38 = vector.extract_strided_slice %11 {offsets = [8, 24], sizes = [8, 8], strides = [1, 1]} : vector<16x32xf32> to vector<8x8xf32>
    %39 = vector.shape_cast %31 : vector<8x8xf32> to vector<1x8x8xf32>
    %40 = vector.shape_cast %32 : vector<8x8xf32> to vector<1x8x8xf32>
    %41 = vector.shape_cast %33 : vector<8x8xf32> to vector<1x8x8xf32>
    %42 = vector.shape_cast %34 : vector<8x8xf32> to vector<1x8x8xf32>
    %43 = vector.shape_cast %35 : vector<8x8xf32> to vector<1x8x8xf32>
    %44 = vector.shape_cast %36 : vector<8x8xf32> to vector<1x8x8xf32>
    %45 = vector.shape_cast %37 : vector<8x8xf32> to vector<1x8x8xf32>
    %46 = vector.shape_cast %38 : vector<8x8xf32> to vector<1x8x8xf32>
    %47 = tpu.concatenate %39, %40, %41, %42, %43, %44, %45, %46 in 0 : vector<1x8x8xf32>, vector<1x8x8xf32>, vector<1x8x8xf32>, vector<1x8x8xf32>, vector<1x8x8xf32>, vector<1x8x8xf32>, vector<1x8x8xf32>, vector<1x8x8xf32> -> vector<8x8x8xf32>
    %48 = arith.truncf %47 : vector<8x8x8xf32> to vector<8x8x8xbf16>
    %49 = vector.extract_strided_slice %12 {offsets = [0, 0], sizes = [8, 8], strides = [1, 1]} : vector<16x32xf32> to vector<8x8xf32>
    %50 = vector.extract_strided_slice %12 {offsets = [8, 0], sizes = [8, 8], strides = [1, 1]} : vector<16x32xf32> to vector<8x8xf32>
    %51 = vector.extract_strided_slice %12 {offsets = [0, 8], sizes = [8, 8], strides = [1, 1]} : vector<16x32xf32> to vector<8x8xf32>
    %52 = vector.extract_strided_slice %12 {offsets = [8, 8], sizes = [8, 8], strides = [1, 1]} : vector<16x32xf32> to vector<8x8xf32>
    %53 = vector.extract_strided_slice %12 {offsets = [0, 16], sizes = [8, 8], strides = [1, 1]} : vector<16x32xf32> to vector<8x8xf32>
    %54 = vector.extract_strided_slice %12 {offsets = [8, 16], sizes = [8, 8], strides = [1, 1]} : vector<16x32xf32> to vector<8x8xf32>
    %55 = vector.extract_strided_slice %12 {offsets = [0, 24], sizes = [8, 8], strides = [1, 1]} : vector<16x32xf32> to vector<8x8xf32>
    %56 = vector.extract_strided_slice %12 {offsets = [8, 24], sizes = [8, 8], strides = [1, 1]} : vector<16x32xf32> to vector<8x8xf32>
    %57 = vector.shape_cast %49 : vector<8x8xf32> to vector<1x8x8xf32>
    %58 = vector.shape_cast %50 : vector<8x8xf32> to vector<1x8x8xf32>
    %59 = vector.shape_cast %51 : vector<8x8xf32> to vector<1x8x8xf32>
    %60 = vector.shape_cast %52 : vector<8x8xf32> to vector<1x8x8xf32>
    %61 = vector.shape_cast %53 : vector<8x8xf32> to vector<1x8x8xf32>
    %62 = vector.shape_cast %54 : vector<8x8xf32> to vector<1x8x8xf32>
    %63 = vector.shape_cast %55 : vector<8x8xf32> to vector<1x8x8xf32>
    %64 = vector.shape_cast %56 : vector<8x8xf32> to vector<1x8x8xf32>
    %65 = tpu.concatenate %57, %58, %59, %60, %61, %62, %63, %64 in 0 : vector<1x8x8xf32>, vector<1x8x8xf32>, vector<1x8x8xf32>, vector<1x8x8xf32>, vector<1x8x8xf32>, vector<1x8x8xf32>, vector<1x8x8xf32>, vector<1x8x8xf32> -> vector<8x8x8xf32>
    %66 = arith.truncf %65 : vector<8x8x8xf32> to vector<8x8x8xbf16>
    "tpu.trace_start"() <{level = 10 : i32, message = "nqd,nkd->nqk"}> : () -> ()
    %cst_7 = arith.constant dense<0.000000e+00> : vector<8x8x8xf32>
    %67 = tpu.matmul %30, %48, %cst_7 {dimension_numbers = #tpu.dot_dimension_numbers<[2], [2], [1], [1], [0, 0, 0, 1, 1, 1], [0], [0]>} : vector<8x8x8xbf16>, vector<8x8x8xbf16>, vector<8x8x8xf32> -> vector<8x8x8xf32>
    "tpu.trace_stop"() : () -> ()
    %c0_8 = arith.constant 0 : index
    %c0_9 = arith.constant 0 : index
    %68 = vector.load %arg2[%c0_8, %c0_9] : memref<8x8xbf16, #tpu.memory_space<vmem>>, vector<8x8xbf16>
    %cst_10 = arith.constant 0.000000e+00 : bf16
    %69 = vector.broadcast %cst_10 : bf16 to vector<8x8xbf16>
    %70 = arith.cmpf oeq, %68, %69 : vector<8x8xbf16>
    %71 = vector.shape_cast %70 : vector<8x8xi1> to vector<1x8x8xi1>
    %cst_11 = arith.constant -1.000000e+30 : f32
    %72 = vector.shape_cast %71 : vector<1x8x8xi1> to vector<1x8x8xi1>
    %73 = vector.broadcast %72 : vector<1x8x8xi1> to vector<8x8x8xi1>
    %74 = vector.broadcast %cst_11 : f32 to vector<8x8x8xf32>
    %75 = arith.select %73, %74, %67 : vector<8x8x8xi1>, vector<8x8x8xf32>
    %cst_12 = arith.constant dense<0xFF800000> : vector<8x8xf32>
    %76 = vector.multi_reduction <maximumf>, %75, %cst_12 [2] : vector<8x8x8xf32> to vector<8x8xf32>
    %77 = vector.shape_cast %76 : vector<8x8xf32> to vector<8x8x1xf32>
    %78 = vector.broadcast %77 : vector<8x8x1xf32> to vector<8x8x8xf32>
    %79 = arith.subf %75, %78 : vector<8x8x8xf32>
    %80 = math.exp %79 : vector<8x8x8xf32>
    %cst_13 = arith.constant dense<0.000000e+00> : vector<8x8xf32>
    %81 = vector.multi_reduction <add>, %80, %cst_13 [2] : vector<8x8x8xf32> to vector<8x8xf32>
    %82 = vector.shape_cast %81 : vector<8x8xf32> to vector<8x8x1xf32>
    %83 = tpu.reciprocal %82 {approx = true} : vector<8x8x1xf32> -> vector<8x8x1xf32>
    %84 = vector.broadcast %83 : vector<8x8x1xf32> to vector<8x8x8xf32>
    %85 = arith.mulf %80, %84 : vector<8x8x8xf32>
    %86 = arith.truncf %85 : vector<8x8x8xf32> to vector<8x8x8xbf16>
    "tpu.trace_start"() <{level = 10 : i32, message = "nqk,nkd->nqd"}> : () -> ()
    %cst_14 = arith.constant dense<0.000000e+00> : vector<8x8x8xf32>
    %87 = tpu.matmul %86, %66, %cst_14 {dimension_numbers = #tpu.dot_dimension_numbers<[2], [1], [1], [2], [0, 0, 0, 1, 1, 2], [0], [0]>} : vector<8x8x8xbf16>, vector<8x8x8xbf16>, vector<8x8x8xf32> -> vector<8x8x8xf32>
    "tpu.trace_stop"() : () -> ()
    %88 = arith.truncf %87 : vector<8x8x8xf32> to vector<8x8x8xbf16>
    %c0_15 = arith.constant 0 : index
    %c0_16 = arith.constant 0 : index
    %c0_17 = arith.constant 0 : index
    %89 = vector.load %arg5[%c0_15, %c0_16, %c0_17] : memref<8x8x32xbf16, #tpu.memory_space<vmem>>, vector<8x8x32xbf16>
    "tpu.trace_start"() <{level = 10 : i32, message = "nqd,ndm->nqm"}> : () -> ()
    %cst_18 = arith.constant dense<0.000000e+00> : vector<8x8x32xf32>
    %90 = tpu.matmul %88, %89, %cst_18 {dimension_numbers = #tpu.dot_dimension_numbers<[2], [1], [1], [2], [0, 0, 0, 1, 1, 2], [0], [0]>} : vector<8x8x8xbf16>, vector<8x8x32xbf16>, vector<8x8x32xf32> -> vector<8x8x32xf32>
    "tpu.trace_stop"() : () -> ()
    %91 = vector.shape_cast %90 : vector<8x8x32xf32> to vector<4x2x8x32xf32>
    %cst_19 = arith.constant dense<0.000000e+00> : vector<2x8x32xf32>
    %92 = vector.multi_reduction <add>, %91, %cst_19 [0] : vector<4x2x8x32xf32> to vector<2x8x32xf32>
    %c0_20 = arith.constant 0 : index
    %c0_21 = arith.constant 0 : index
    %93 = vector.load %arg6[%c0_20, %c0_21] : memref<1x32xf32, #tpu.memory_space<vmem>>, vector<1x32xf32>
    %94 = vector.shape_cast %93 : vector<1x32xf32> to vector<1x1x32xf32>
    %95 = vector.broadcast %94 : vector<1x1x32xf32> to vector<2x8x32xf32>
    %96 = arith.addf %92, %95 : vector<2x8x32xf32>
    %c0_22 = arith.constant 0 : index
    %c0_23 = arith.constant 0 : index
    %c0_24 = arith.constant 0 : index
    %97 = vector.load %arg7[%c0_22, %c0_23, %c0_24] : memref<2x8x32xf32, #tpu.memory_space<vmem>>, vector<2x8x32xf32>
    tpu.vector_store %arg7[%c0_22, %c0_23, %c0_24], %96 {strides = array<i32>} : memref<2x8x32xf32, #tpu.memory_space<vmem>>, vector<2x8x32xf32>,
    return
  }
  func.func @transform_0(%arg0: i32) -> (i32, i32, i32) {
    %c0_i32 = arith.constant 0 : i32
    %c0_i32_0 = arith.constant 0 : i32
    %c0_i32_1 = arith.constant 0 : i32
    return %arg0, %c0_i32, %c0_i32_0 : i32, i32, i32
  }
  func.func @transform_1(%arg0: i32) -> (i32, i32) {
    %c0_i32 = arith.constant 0 : i32
    %c0_i32_0 = arith.constant 0 : i32
    %c0_i32_1 = arith.constant 0 : i32
    return %c0_i32, %c0_i32_0 : i32, i32
  }
  func.func @transform_2(%arg0: i32) -> (i32, i32) {
    %c0_i32 = arith.constant 0 : i32
    %c0_i32_0 = arith.constant 0 : i32
    %c0_i32_1 = arith.constant 0 : i32
    return %c0_i32, %c0_i32_0 : i32, i32
  }
  func.func @transform_3(%arg0: i32) -> (i32, i32) {
    %c0_i32 = arith.constant 0 : i32
    %c0_i32_0 = arith.constant 0 : i32
    %c0_i32_1 = arith.constant 0 : i32
    return %c0_i32, %c0_i32_0 : i32, i32
  }
  func.func @transform_4(%arg0: i32) -> (i32, i32, i32) {
    %c0_i32 = arith.constant 0 : i32
    %c0_i32_0 = arith.constant 0 : i32
    %c0_i32_1 = arith.constant 0 : i32
    %c0_i32_2 = arith.constant 0 : i32
    return %c0_i32, %c0_i32_0, %c0_i32_1 : i32, i32, i32
  }
  func.func @transform_5(%arg0: i32) -> (i32, i32) {
    %c0_i32 = arith.constant 0 : i32
    %c0_i32_0 = arith.constant 0 : i32
    %c0_i32_1 = arith.constant 0 : i32
    return %c0_i32, %c0_i32_0 : i32, i32
  }
  func.func @transform_6(%arg0: i32) -> (i32, i32, i32) {
    %c0_i32 = arith.constant 0 : i32
    %c0_i32_0 = arith.constant 0 : i32
    %c0_i32_1 = arith.constant 0 : i32
    return %arg0, %c0_i32, %c0_i32_0 : i32, i32, i32
  }
}

module attributes {stable_mosaic.version = 11 : i64} {
  func.func @_mha_fused_kernel(%arg0: i32, %arg1: memref<2x8x32xf32, #tpu.memory_space<vmem>>, %arg2: memref<8x8xbf16, #tpu.memory_space<vmem>>, %arg3: memref<32x96xbf16, #tpu.memory_space<vmem>>, %arg4: memref<1x96xf32, #tpu.memory_space<vmem>>, %arg5: memref<8x8x32xbf16, #tpu.memory_space<vmem>>, %arg6: memref<1x32xf32, #tpu.memory_space<vmem>>, %arg7: memref<2x8x32xf32, #tpu.memory_space<vmem>>) attributes {dimension_semantics = [#tpu.dimension_semantics<parallel>], iteration_bounds = array<i64: 1>, scalar_prefetch = 0 : i64, scratch_operands = 0 : i64, tpu.core_type = #tpu.core_type<tc>, window_params = [{transform_indices = @transform_0, window_bounds = array<i64: 2, 8, 32>}, {pipeline_mode = #tpu.pipeline_mode<synchronous>, transform_indices = @transform_1, window_bounds = array<i64: 8, 8>}, {pipeline_mode = #tpu.pipeline_mode<synchronous>, transform_indices = @transform_2, window_bounds = array<i64: 32, 96>}, {pipeline_mode = #tpu.pipeline_mode<synchronous>, transform_indices = @transform_3, window_bounds = array<i64: 1, 96>}, {pipeline_mode = #tpu.pipeline_mode<synchronous>, transform_indices = @transform_4, window_bounds = array<i64: 8, 8, 32>}, {pipeline_mode = #tpu.pipeline_mode<synchronous>, transform_indices = @transform_5, window_bounds = array<i64: 1, 32>}, {transform_indices = @transform_6, window_bounds = array<i64: 2, 8, 32>}]} {
    %c0 = arith.constant 0 : index
    %c0_0 = arith.constant 0 : index
    %c0_1 = arith.constant 0 : index
    %0 = vector.load %arg1[%c0, %c0_0, %c0_1] : memref<2x8x32xf32, #tpu.memory_space<vmem>>, vector<2x8x32xf32>
    %1 = vector.shape_cast %0 : vector<2x8x32xf32> to vector<16x32xf32>
    %2 = arith.truncf %1 : vector<16x32xf32> to vector<16x32xbf16>
    %c0_2 = arith.constant 0 : index
    %c0_3 = arith.constant 0 : index
    %3 = vector.load %arg3[%c0_2, %c0_3] : memref<32x96xbf16, #tpu.memory_space<vmem>>, vector<32x96xbf16>
    %cst = arith.constant dense<0.000000e+00> : vector<16x96xf32>
    %4 = tpu.matmul %2, %3, %cst {dimension_numbers = #tpu.dot_dimension_numbers<[1], [0], [0], [1], [0, 0, 1, 1], [], []>} : vector<16x32xbf16>, vector<32x96xbf16>, vector<16x96xf32> -> vector<16x96xf32>
    %c0_4 = arith.constant 0 : index
    %c0_5 = arith.constant 0 : index
    %5 = vector.load %arg4[%c0_4, %c0_5] : memref<1x96xf32, #tpu.memory_space<vmem>>, vector<1x96xf32>
    %6 = vector.broadcast %5 : vector<1x96xf32> to vector<16x96xf32>
    %7 = arith.addf %4, %6 : vector<16x96xf32>
    %8 = vector.extract_strided_slice %7 {offsets = [0, 0], sizes = [16, 32], strides = [1, 1]} : vector<16x96xf32> to vector<16x32xf32>
    %cst_6 = arith.constant 0.353553385 : f32
    %9 = vector.broadcast %cst_6 : f32 to vector<16x32xf32>
    %10 = arith.mulf %8, %9 : vector<16x32xf32>
    %11 = vector.extract_strided_slice %7 {offsets = [0, 32], sizes = [16, 32], strides = [1, 1]} : vector<16x96xf32> to vector<16x32xf32>
    %12 = vector.extract_strided_slice %7 {offsets = [0, 64], sizes = [16, 32], strides = [1, 1]} : vector<16x96xf32> to vector<16x32xf32>
    %13 = vector.extract_strided_slice %10 {offsets = [0, 0], sizes = [8, 8], strides = [1, 1]} : vector<16x32xf32> to vector<8x8xf32>
    %14 = vector.extract_strided_slice %10 {offsets = [8, 0], sizes = [8, 8], strides = [1, 1]} : vector<16x32xf32> to vector<8x8xf32>
    %15 = vector.extract_strided_slice %10 {offsets = [0, 8], sizes = [8, 8], strides = [1, 1]} : vector<16x32xf32> to vector<8x8xf32>
    %16 = vector.extract_strided_slice %10 {offsets = [8, 8], sizes = [8, 8], strides = [1, 1]} : vector<16x32xf32> to vector<8x8xf32>
    %17 = vector.extract_strided_slice %10 {offsets = [0, 16], sizes = [8, 8], strides = [1, 1]} : vector<16x32xf32> to vector<8x8xf32>
    %18 = vector.extract_strided_slice %10 {offsets = [8, 16], sizes = [8, 8], strides = [1, 1]} : vector<16x32xf32> to vector<8x8xf32>
    %19 = vector.extract_strided_slice %10 {offsets = [0, 24], sizes = [8, 8], strides = [1, 1]} : vector<16x32xf32> to vector<8x8xf32>
    %20 = vector.extract_strided_slice %10 {offsets = [8, 24], sizes = [8, 8], strides = [1, 1]} : vector<16x32xf32> to vector<8x8xf32>
    %21 = vector.shape_cast %13 : vector<8x8xf32> to vector<1x8x8xf32>
    %22 = vector.shape_cast %14 : vector<8x8xf32> to vector<1x8x8xf32>
    %23 = vector.shape_cast %15 : vector<8x8xf32> to vector<1x8x8xf32>
    %24 = vector.shape_cast %16 : vector<8x8xf32> to vector<1x8x8xf32>
    %25 = vector.shape_cast %17 : vector<8x8xf32> to vector<1x8x8xf32>
    %26 = vector.shape_cast %18 : vector<8x8xf32> to vector<1x8x8xf32>
    %27 = vector.shape_cast %19 : vector<8x8xf32> to vector<1x8x8xf32>
    %28 = vector.shape_cast %20 : vector<8x8xf32> to vector<1x8x8xf32>
    %29 = tpu.concatenate %21, %22, %23, %24, %25, %26, %27, %28 in 0 : vector<1x8x8xf32>, vector<1x8x8xf32>, vector<1x8x8xf32>, vector<1x8x8xf32>, vector<1x8x8xf32>, vector<1x8x8xf32>, vector<1x8x8xf32>, vector<1x8x8xf32> -> vector<8x8x8xf32>
    %30 = arith.truncf %29 : vector<8x8x8xf32> to vector<8x8x8xbf16>
    %31 = vector.extract_strided_slice %11 {offsets = [0, 0], sizes = [8, 8], strides = [1, 1]} : vector<16x32xf32> to vector<8x8xf32>
    %32 = vector.extract_strided_slice %11 {offsets = [8, 0], sizes = [8, 8], strides = [1, 1]} : vector<16x32xf32> to vector<8x8xf32>
    %33 = vector.extract_strided_slice %11 {offsets = [0, 8], sizes = [8, 8], strides = [1, 1]} : vector<16x32xf32> to vector<8x8xf32>
    %34 = vector.extract_strided_slice %11 {offsets = [8, 8], sizes = [8, 8], strides = [1, 1]} : vector<16x32xf32> to vector<8x8xf32>
    %35 = vector.extract_strided_slice %11 {offsets = [0, 16], sizes = [8, 8], strides = [1, 1]} : vector<16x32xf32> to vector<8x8xf32>
    %36 = vector.extract_strided_slice %11 {offsets = [8, 16], sizes = [8, 8], strides = [1, 1]} : vector<16x32xf32> to vector<8x8xf32>
    %37 = vector.extract_strided_slice %11 {offsets = [0, 24], sizes = [8, 8], strides = [1, 1]} : vector<16x32xf32> to vector<8x8xf32>
    %38 = vector.extract_strided_slice %11 {offsets = [8, 24], sizes = [8, 8], strides = [1, 1]} : vector<16x32xf32> to vector<8x8xf32>
    %39 = vector.shape_cast %31 : vector<8x8xf32> to vector<1x8x8xf32>
    %40 = vector.shape_cast %32 : vector<8x8xf32> to vector<1x8x8xf32>
    %41 = vector.shape_cast %33 : vector<8x8xf32> to vector<1x8x8xf32>
    %42 = vector.shape_cast %34 : vector<8x8xf32> to vector<1x8x8xf32>
    %43 = vector.shape_cast %35 : vector<8x8xf32> to vector<1x8x8xf32>
    %44 = vector.shape_cast %36 : vector<8x8xf32> to vector<1x8x8xf32>
    %45 = vector.shape_cast %37 : vector<8x8xf32> to vector<1x8x8xf32>
    %46 = vector.shape_cast %38 : vector<8x8xf32> to vector<1x8x8xf32>
    %47 = tpu.concatenate %39, %40, %41, %42, %43, %44, %45, %46 in 0 : vector<1x8x8xf32>, vector<1x8x8xf32>, vector<1x8x8xf32>, vector<1x8x8xf32>, vector<1x8x8xf32>, vector<1x8x8xf32>, vector<1x8x8xf32>, vector<1x8x8xf32> -> vector<8x8x8xf32>
    %48 = arith.truncf %47 : vector<8x8x8xf32> to vector<8x8x8xbf16>
    %49 = vector.extract_strided_slice %12 {offsets = [0, 0], sizes = [8, 8], strides = [1, 1]} : vector<16x32xf32> to vector<8x8xf32>
    %50 = vector.extract_strided_slice %12 {offsets = [8, 0], sizes = [8, 8], strides = [1, 1]} : vector<16x32xf32> to vector<8x8xf32>
    %51 = vector.extract_strided_slice %12 {offsets = [0, 8], sizes = [8, 8], strides = [1, 1]} : vector<16x32xf32> to vector<8x8xf32>
    %52 = vector.extract_strided_slice %12 {offsets = [8, 8], sizes = [8, 8], strides = [1, 1]} : vector<16x32xf32> to vector<8x8xf32>
    %53 = vector.extract_strided_slice %12 {offsets = [0, 16], sizes = [8, 8], strides = [1, 1]} : vector<16x32xf32> to vector<8x8xf32>
    %54 = vector.extract_strided_slice %12 {offsets = [8, 16], sizes = [8, 8], strides = [1, 1]} : vector<16x32xf32> to vector<8x8xf32>
    %55 = vector.extract_strided_slice %12 {offsets = [0, 24], sizes = [8, 8], strides = [1, 1]} : vector<16x32xf32> to vector<8x8xf32>
    %56 = vector.extract_strided_slice %12 {offsets = [8, 24], sizes = [8, 8], strides = [1, 1]} : vector<16x32xf32> to vector<8x8xf32>
    %57 = vector.shape_cast %49 : vector<8x8xf32> to vector<1x8x8xf32>
    %58 = vector.shape_cast %50 : vector<8x8xf32> to vector<1x8x8xf32>
    %59 = vector.shape_cast %51 : vector<8x8xf32> to vector<1x8x8xf32>
    %60 = vector.shape_cast %52 : vector<8x8xf32> to vector<1x8x8xf32>
    %61 = vector.shape_cast %53 : vector<8x8xf32> to vector<1x8x8xf32>
    %62 = vector.shape_cast %54 : vector<8x8xf32> to vector<1x8x8xf32>
    %63 = vector.shape_cast %55 : vector<8x8xf32> to vector<1x8x8xf32>
    %64 = vector.shape_cast %56 : vector<8x8xf32> to vector<1x8x8xf32>
    %65 = tpu.concatenate %57, %58, %59, %60, %61, %62, %63, %64 in 0 : vector<1x8x8xf32>, vector<1x8x8xf32>, vector<1x8x8xf32>, vector<1x8x8xf32>, vector<1x8x8xf32>, vector<1x8x8xf32>, vector<1x8x8xf32>, vector<1x8x8xf32> -> vector<8x8x8xf32>
    %66 = arith.truncf %65 : vector<8x8x8xf32> to vector<8x8x8xbf16>
    "tpu.trace_start"() <{level = 10 : i32, message = "nqd,nkd->nqk"}> : () -> ()
    %cst_7 = arith.constant dense<0.000000e+00> : vector<8x8x8xf32>
    %67 = tpu.matmul %30, %48, %cst_7 {dimension_numbers = #tpu.dot_dimension_numbers<[2], [2], [1], [1], [0, 0, 0, 1, 1, 1], [0], [0]>} : vector<8x8x8xbf16>, vector<8x8x8xbf16>, vector<8x8x8xf32> -> vector<8x8x8xf32>
    "tpu.trace_stop"() : () -> ()
    %c0_8 = arith.constant 0 : index
    %c0_9 = arith.constant 0 : index
    %68 = vector.load %arg2[%c0_8, %c0_9] : memref<8x8xbf16, #tpu.memory_space<vmem>>, vector<8x8xbf16>
    %cst_10 = arith.constant 0.000000e+00 : bf16
    %69 = vector.broadcast %cst_10 : bf16 to vector<8x8xbf16>
    %70 = arith.cmpf oeq, %68, %69 : vector<8x8xbf16>
    %71 = vector.shape_cast %70 : vector<8x8xi1> to vector<1x8x8xi1>
    %cst_11 = arith.constant -1.000000e+30 : f32
    %72 = vector.shape_cast %71 : vector<1x8x8xi1> to vector<1x8x8xi1>
    %73 = vector.broadcast %72 : vector<1x8x8xi1> to vector<8x8x8xi1>
    %74 = vector.broadcast %cst_11 : f32 to vector<8x8x8xf32>
    %75 = arith.select %73, %74, %67 : vector<8x8x8xi1>, vector<8x8x8xf32>
    %cst_12 = arith.constant dense<0xFF800000> : vector<8x8xf32>
    %76 = vector.multi_reduction <maximumf>, %75, %cst_12 [2] : vector<8x8x8xf32> to vector<8x8xf32>
    %77 = vector.shape_cast %76 : vector<8x8xf32> to vector<8x8x1xf32>
    %78 = vector.broadcast %77 : vector<8x8x1xf32> to vector<8x8x8xf32>
    %79 = arith.subf %75, %78 : vector<8x8x8xf32>
    %80 = math.exp %79 : vector<8x8x8xf32>
    %cst_13 = arith.constant dense<0.000000e+00> : vector<8x8xf32>
    %81 = vector.multi_reduction <add>, %80, %cst_13 [2] : vector<8x8x8xf32> to vector<8x8xf32>
    %82 = vector.shape_cast %81 : vector<8x8xf32> to vector<8x8x1xf32>
    %83 = tpu.reciprocal %82 {approx = true} : vector<8x8x1xf32> -> vector<8x8x1xf32>
    %84 = vector.broadcast %83 : vector<8x8x1xf32> to vector<8x8x8xf32>
    %85 = arith.mulf %80, %84 : vector<8x8x8xf32>
    %86 = arith.truncf %85 : vector<8x8x8xf32> to vector<8x8x8xbf16>
    "tpu.trace_start"() <{level = 10 : i32, message = "nqk,nkd->nqd"}> : () -> ()
    %cst_14 = arith.constant dense<0.000000e+00> : vector<8x8x8xf32>
    %87 = tpu.matmul %86, %66, %cst_14 {dimension_numbers = #tpu.dot_dimension_numbers<[2], [1], [1], [2], [0, 0, 0, 1, 1, 2], [0], [0]>} : vector<8x8x8xbf16>, vector<8x8x8xbf16>, vector<8x8x8xf32> -> vector<8x8x8xf32>
    "tpu.trace_stop"() : () -> ()
    %88 = arith.truncf %87 : vector<8x8x8xf32> to vector<8x8x8xbf16>
    %c0_15 = arith.constant 0 : index
    %c0_16 = arith.constant 0 : index
    %c0_17 = arith.constant 0 : index
    %89 = vector.load %arg5[%c0_15, %c0_16, %c0_17] : memref<8x8x32xbf16, #tpu.memory_space<vmem>>, vector<8x8x32xbf16>
    "tpu.trace_start"() <{level = 10 : i32, message = "nqd,ndm->nqm"}> : () -> ()
    %cst_18 = arith.constant dense<0.000000e+00> : vector<8x8x32xf32>
    %90 = tpu.matmul %88, %89, %cst_18 {dimension_numbers = #tpu.dot_dimension_numbers<[2], [1], [1], [2], [0, 0, 0, 1, 1, 2], [0], [0]>} : vector<8x8x8xbf16>, vector<8x8x32xbf16>, vector<8x8x32xf32> -> vector<8x8x32xf32>
    "tpu.trace_stop"() : () -> ()
    %91 = vector.shape_cast %90 : vector<8x8x32xf32> to vector<4x2x8x32xf32>
    %cst_19 = arith.constant dense<0.000000e+00> : vector<2x8x32xf32>
    %92 = vector.multi_reduction <add>, %91, %cst_19 [0] : vector<4x2x8x32xf32> to vector<2x8x32xf32>
    %c0_20 = arith.constant 0 : index
    %c0_21 = arith.constant 0 : index
    %93 = vector.load %arg6[%c0_20, %c0_21] : memref<1x32xf32, #tpu.memory_space<vmem>>, vector<1x32xf32>
    %94 = vector.shape_cast %93 : vector<1x32xf32> to vector<1x1x32xf32>
    %95 = vector.broadcast %94 : vector<1x1x32xf32> to vector<2x8x32xf32>
    %96 = arith.addf %92, %95 : vector<2x8x32xf32>
    %c0_22 = arith.constant 0 : index
    %c0_23 = arith.constant 0 : index
    %c0_24 = arith.constant 0 : index
    %97 = vector.load %arg7[%c0_22, %c0_23, %c0_24] : memref<2x8x32xf32, #tpu.memory_space<vmem>>, vector<2x8x32xf32>
    tpu.vector_store %arg7[%c0_22, %c0_23, %c0_24], %96 {strides = array<i32>} : memref<2x8x32xf32, #tpu.memory_space<vmem>>, vector<2x8x32xf32>,
    return
  }
  func.func @transform_0(%arg0: i32) -> (i32, i32, i32) {
    %c0_i32 = arith.constant 0 : i32
    %c0_i32_0 = arith.constant 0 : i32
    %c0_i32_1 = arith.constant 0 : i32
    return %arg0, %c0_i32, %c0_i32_0 : i32, i32, i32
  }
  func.func @transform_1(%arg0: i32) -> (i32, i32) {
    %c0_i32 = arith.constant 0 : i32
    %c0_i32_0 = arith.constant 0 : i32
    %c0_i32_1 = arith.constant 0 : i32
    return %c0_i32, %c0_i32_0 : i32, i32
  }
  func.func @transform_2(%arg0: i32) -> (i32, i32) {
    %c0_i32 = arith.constant 0 : i32
    %c0_i32_0 = arith.constant 0 : i32
    %c0_i32_1 = arith.constant 0 : i32
    return %c0_i32, %c0_i32_0 : i32, i32
  }
  func.func @transform_3(%arg0: i32) -> (i32, i32) {
    %c0_i32 = arith.constant 0 : i32
    %c0_i32_0 = arith.constant 0 : i32
    %c0_i32_1 = arith.constant 0 : i32
    return %c0_i32, %c0_i32_0 : i32, i32
  }
  func.func @transform_4(%arg0: i32) -> (i32, i32, i32) {
    %c0_i32 = arith.constant 0 : i32
    %c0_i32_0 = arith.constant 0 : i32
    %c0_i32_1 = arith.constant 0 : i32
    %c0_i32_2 = arith.constant 0 : i32
    return %c0_i32, %c0_i32_0, %c0_i32_1 : i32, i32, i32
  }
  func.func @transform_5(%arg0: i32) -> (i32, i32) {
    %c0_i32 = arith.constant 0 : i32
    %c0_i32_0 = arith.constant 0 : i32
    %c0_i32_1 = arith.constant 0 : i32
    return %c0_i32, %c0_i32_0 : i32, i32
  }
  func.func @transform_6(%arg0: i32) -> (i32, i32, i32) {
    %c0_i32 = arith.constant 0 : i32
    %c0_i32_0 = arith.constant 0 : i32
    %c0_i32_1 = arith.constant 0 : i32
    return %arg0, %c0_i32, %c0_i32_0 : i32, i32, i32
  }
}

</mosaic_0001>

<llo_original>
// kernel: tpu_custom_call.1
$region0: #{tpu_custom_call.1}
  #allocation0 [shape = 'u32[]', space=smem, size = 0x4, offset = 0x4, fixed_abs, tag = 'smem constant byte address 0x4 - core index']
  #allocation1 [shape = 'u32[144,128]{1,0:T(1,128)}', space=vmem, size = 0x12000, scoped, tag = 'internal scratch']
  %s0 = inlined_call_operand.hbm [shape: f32[2,8,32], index: 0, kind: input, shape index: {}]
  %s1 = inlined_call_operand.hbm [shape: bf16[8,8], index: 1, kind: input, shape index: {}]
  %s2 = inlined_call_operand.hbm [shape: bf16[32,96], index: 2, kind: input, shape index: {}]
  %s3 = inlined_call_operand.vmem [shape: f32[1,96], index: 3, kind: input, shape index: {}]
  %s4 = inlined_call_operand.hbm [shape: bf16[8,8,32], index: 4, kind: input, shape index: {}]
  %s5 = inlined_call_operand.vmem [shape: f32[1,32], index: 5, kind: input, shape index: {}]
  %s6 = inlined_call_operand.hbm [shape: f32[2,8,32], index: 6, kind: output, shape index: {}]
  %s7 = sld [smem:[#allocation0]]
  $region50: #{tpu_custom_call.1} parent=0
    _
  %s9 = ssub.s32 1, %s7
  %s10 = scalar_select 0, %s9, %s7
  $region1: #{tpu_custom_call.1} parent=0
    #allocation2 [shape = 'u8[8192]{0}', space=vmem, size = 0x2000, scoped, tag = 'input window, operand 0, single buffered']
    #allocation3 [shape = 's32[1]{0}', space=sflag, size = 0x4, scoped, tag = 'scoped memory for tpu_custom_call.1']
    #allocation4 [shape = 's32[1]{0}', space=sflag, size = 0x4, scoped, tag = 'scoped memory for tpu_custom_call.1']
    #allocation5 [shape = 'u8[2048]{0}', space=vmem, size = 0x800, scoped, tag = 'input window, operand 1, single buffered']
    #allocation6 [shape = 's32[1]{0}', space=sflag, size = 0x4, scoped, tag = 'scoped memory for tpu_custom_call.1']
    #allocation7 [shape = 'u8[8192]{0}', space=vmem, size = 0x2000, scoped, tag = 'input window, operand 2, single buffered']
    #allocation8 [shape = 'u8[16384]{0}', space=vmem, size = 0x4000, scoped, tag = 'input window, operand 4, single buffered']
    #allocation9 [shape = 's32[1]{0}', space=sflag, size = 0x4, scoped, tag = 'scoped memory for tpu_custom_call.1']
    #allocation10 [shape = 'u8[8192]{0}', space=vmem, size = 0x2000, scoped, tag = 'output window, operand 0, single buffered']
    %11 = vsyncpa [#allocation3], 0
    %12 = vsyncpa [#allocation6], 0
    %13 = vsyncpa [#allocation9], 0
    %14 = vsyncpa [#allocation4], 0
    // Predicated region
    $region2: #{tpu_custom_call.1} parent=1 // pred_check
      _
    $region3: #{tpu_custom_call.1} parent=1 // pred_check_branch
      %16 = sbr.rel (0) target = $region5
    $region4: #{tpu_custom_call.1} parent=1 // pred_region
      %s18 = ssub.s32 256, 256
      %19 = vsyncadd [#allocation3], %s18
      %s20 = sshll.u32 [#allocation2], 4
      %s21 = int_to_ptr.vmem [resolvable:$true] %s20
      %26 = dma.hbm_to_vmem [thread:$0]  %s0, 256, %s21, [#allocation3], 128, 128, 8
    $region5: #{tpu_custom_call.1} parent=1 // pred_fallthru
      _
    // Predicated region
    $region6: #{tpu_custom_call.1} parent=1 // pred_check
      _
    $region7: #{tpu_custom_call.1} parent=1 // pred_check_branch
      %28 = sbr.rel (0) target = $region9
    $region8: #{tpu_custom_call.1} parent=1 // pred_region
      %s30 = ssub.s32 64, 64
      %31 = vsyncadd [#allocation6], %s30
      %s33 = sshll.u32 [#allocation5], 4
      %s34 = int_to_ptr.vmem [resolvable:$true] %s33
      %36 = dma.hbm_to_vmem [thread:$0]  %s1, 64, %s34, [#allocation6]
    $region9: #{tpu_custom_call.1} parent=1 // pred_fallthru
      _
    // Predicated region
    $region10: #{tpu_custom_call.1} parent=1 // pred_check
      _
    $region11: #{tpu_custom_call.1} parent=1 // pred_check_branch
      %38 = sbr.rel (0) target = $region13
    $region12: #{tpu_custom_call.1} parent=1 // pred_region
      %s40 = ssub.s32 256, 256
      %41 = vsyncadd [#allocation6], %s40
      %s42 = sshll.u32 [#allocation7], 4
      %s43 = int_to_ptr.vmem [resolvable:$true] %s42
      %48 = dma.hbm_to_vmem [thread:$0]  %s2, 256, %s43, [#allocation6], 64, 64, 4
    $region13: #{tpu_custom_call.1} parent=1 // pred_fallthru
      _
    // Predicated region
    $region14: #{tpu_custom_call.1} parent=1 // pred_check
      _
    $region15: #{tpu_custom_call.1} parent=1 // pred_check_branch
      %50 = sbr.rel (0) target = $region17
    $region16: #{tpu_custom_call.1} parent=1 // pred_region
      _
    $region17: #{tpu_custom_call.1} parent=1 // pred_fallthru
      _
    // Predicated region
    $region18: #{tpu_custom_call.1} parent=1 // pred_check
      _
    $region19: #{tpu_custom_call.1} parent=1 // pred_check_branch
      %52 = sbr.rel (0) target = $region21
    $region20: #{tpu_custom_call.1} parent=1 // pred_region
      %s54 = ssub.s32 512, 512
      %55 = vsyncadd [#allocation9], %s54
      %s56 = sshll.u32 [#allocation8], 4
      %s57 = int_to_ptr.vmem [resolvable:$true] %s56
      %62 = dma.hbm_to_vmem [thread:$0]  %s4, 512, %s57, [#allocation9], 64, 64, 4
    $region21: #{tpu_custom_call.1} parent=1 // pred_fallthru
      _
    // Predicated region
    $region22: #{tpu_custom_call.1} parent=1 // pred_check
      _
    $region23: #{tpu_custom_call.1} parent=1 // pred_check_branch
      %64 = sbr.rel (0) target = $region25
    $region24: #{tpu_custom_call.1} parent=1 // pred_region
      _
    $region25: #{tpu_custom_call.1} parent=1 // pred_fallthru
      _
    // Predicated region
    $region26: #{tpu_custom_call.1} parent=1 // pred_check
      _
    $region27: #{tpu_custom_call.1} parent=1 // pred_check_branch
      %66 = sbr.rel (0) target = $region29
    $region28: #{tpu_custom_call.1} parent=1 // pred_region
      %67 = dma.done [#allocation3], 256
    $region29: #{tpu_custom_call.1} parent=1 // pred_fallthru
      _
    // Predicated region
    $region30: #{tpu_custom_call.1} parent=1 // pred_check
      _
    $region31: #{tpu_custom_call.1} parent=1 // pred_check_branch
      %69 = sbr.rel (0) target = $region33
    $region32: #{tpu_custom_call.1} parent=1 // pred_region
      %70 = dma.done [#allocation6], 64
    $region33: #{tpu_custom_call.1} parent=1 // pred_fallthru
      _
    // Predicated region
    $region34: #{tpu_custom_call.1} parent=1 // pred_check
      _
    $region35: #{tpu_custom_call.1} parent=1 // pred_check_branch
      %72 = sbr.rel (0) target = $region37
    $region36: #{tpu_custom_call.1} parent=1 // pred_region
      %73 = dma.done [#allocation6], 256
    $region37: #{tpu_custom_call.1} parent=1 // pred_fallthru
      _
    // Predicated region
    $region38: #{tpu_custom_call.1} parent=1 // pred_check
      _
    $region39: #{tpu_custom_call.1} parent=1 // pred_check_branch
      %75 = sbr.rel (0) target = $region41
    $region40: #{tpu_custom_call.1} parent=1 // pred_region
      %76 = dma.done [#allocation9], 512
    $region41: #{tpu_custom_call.1} parent=1 // pred_fallthru
      _
    %v80 = vld [vmem:[#allocation2] sm:$0xff]
    %v81 = vld [vmem:[#allocation2 + $0x8] sm:$0xff]
    %v82 = vpack.c.bf16 %v81, %v80
    %v83 = vld [vmem:[#allocation7] sm:$0xf]
    %v84 = vld [vmem:[#allocation7 + $0x4] sm:$0xf]
    %v85 = vld [vmem:[#allocation7 + $0x8] sm:$0xf]
    %v86 = vld [vmem:[#allocation7 + $0xc] sm:$0xf]
    %v87 = vld [vmem:[%s3] sm:$0x1]
    %v89 = vlaneseq
    %v90 = vshrl.u32 %v89, 7
    %v91 = vsub.s32 0, %v90
    %v92 = vrot.slane %v87, %v91
    %v98 = vunpack.c.l.b16 %v83
    %v99 = vunpack.c.l.b16 %v84
    %v100 = vunpack.c.l.b16 %v85
    %v101 = vunpack.c.l.b16 %v86
    %v102 = vpack.c.b16 %v99, %v98
    %v103 = vpack.c.b16 %v101, %v100
    %vm106 = vcmask 261120
    %v108 = vsel %vm106, %v82, 0
    %110 = vmatprep.subr.bf16.mxu0 0
    %111 = vmatpush1.bf16.msra.mxu0 %v102
    %112 = vmatprep.subr.bf16.mxu0 0
    %113 = vmatpush1.bf16.msra.mxu0 %v103
    %114 = vmatprep.subr.bf16.mxu0 0
    %115 = vmatpush1.bf16.msra.mxu0 0
    %116 = vmatprep.subr.bf16.mxu0 0
    %117 = vmatpush1.bf16.msra.mxu0 0
    %118 = vmatprep.subr.bf16.mxu0 0
    %119 = vmatpush1.bf16.msra.mxu0 0
    %120 = vmatprep.subr.bf16.mxu0 0
    %121 = vmatpush1.bf16.msra.mxu0 0
    %122 = vmatprep.subr.bf16.mxu0 0
    %123 = vmatpush1.bf16.msra.mxu0 0
    %124 = vmatprep.subr.bf16.mxu0 0
    %125 = vmatpush1.bf16.msra.mxu0 0
    %126 = vmatprep.subr.bf16.mxu0 0
    %127 = vmatpush1.bf16.msra.mxu0 0
    %128 = vmatprep.subr.bf16.mxu0 0
    %129 = vmatpush1.bf16.msra.mxu0 0
    %130 = vmatprep.subr.bf16.mxu0 0
    %131 = vmatpush1.bf16.msra.mxu0 0
    %132 = vmatprep.subr.bf16.mxu0 0
    %133 = vmatpush1.bf16.msra.mxu0 0
    %134 = vmatprep.subr.bf16.mxu0 0
    %135 = vmatpush1.bf16.msra.mxu0 0
    %136 = vmatprep.subr.bf16.mxu0 0
    %137 = vmatpush1.bf16.msra.mxu0 0
    %138 = vmatprep.subr.bf16.mxu0 0
    %139 = vmatpush1.bf16.msra.mxu0 0
    %140 = vmatprep.subr.bf16.mxu0 0
    %141 = vmatpush1.bf16.msra.mxu0 0
    %142 = vmatprep.mubr.bf16.mxu0 0
    %143 = vmatmul.mubr.bf16.gmra.mrb[0].mxu0 %v108
    %v144 = vpop.f32.mrb[0].mxu0
    %v145 = vadd.f32 %v92, %v144
    %v146 = vpop.f32.mrb[0].mxu0
    %v147 = vpop.f32.mrb[0].mxu0
    %v148 = vadd.f32 %v92, %v147
    %v149 = vpop.f32.mrb[0].mxu0
    %150 = vdwg.mxu0
    %v151 = vmul.f32 %v145, 0.35355338
    %v152 = vmul.f32 %v148, 0.35355338
    %154 = vrot.lane.b32.xlu0 %v151, 120
    %v155 = vpop.permute.xlu0 %154
    %158 = vrot.lane.b32.xlu0 %v152, 120
    %v159 = vpop.permute.xlu0 %158
    %161 = vrot.lane.b32.xlu0 %v151, 112
    %v162 = vpop.permute.xlu0 %161
    %164 = vrot.lane.b32.xlu0 %v152, 112
    %v165 = vpop.permute.xlu0 %164
    %167 = vrot.lane.b32.xlu0 %v151, 104
    %v168 = vpop.permute.xlu0 %167
    %170 = vrot.lane.b32.xlu0 %v152, 104
    %v171 = vpop.permute.xlu0 %170
    %v173 = vpack.c.bf16 %v151, %v151
    %v174 = vpack.c.bf16 %v152, %v152
    %v175 = vpack.c.bf16 %v155, %v155
    %v176 = vpack.c.bf16 %v159, %v159
    %v177 = vpack.c.bf16 %v162, %v162
    %v178 = vpack.c.bf16 %v165, %v165
    %v179 = vpack.c.bf16 %v168, %v168
    %v180 = vpack.c.bf16 %v171, %v171
    %182 = vrot.lane.b32.xlu0 %v145, 120
    %v183 = vpop.permute.xlu0 %182
    %186 = vrot.lane.b32.xlu0 %v148, 120
    %v187 = vpop.permute.xlu0 %186
    %189 = vrot.lane.b32.xlu0 %v145, 112
    %v190 = vpop.permute.xlu0 %189
    %192 = vrot.lane.b32.xlu0 %v148, 112
    %v193 = vpop.permute.xlu0 %192
    %195 = vrot.lane.b32.xlu0 %v145, 104
    %v196 = vpop.permute.xlu0 %195
    %198 = vrot.lane.b32.xlu0 %v148, 104
    %v199 = vpop.permute.xlu0 %198
    %v201 = vpack.c.bf16 %v145, %v145
    %v202 = vpack.c.bf16 %v148, %v148
    %v203 = vpack.c.bf16 %v183, %v183
    %v204 = vpack.c.bf16 %v187, %v187
    %v205 = vpack.c.bf16 %v190, %v190
    %v206 = vpack.c.bf16 %v193, %v193
    %v207 = vpack.c.bf16 %v196, %v196
    %v208 = vpack.c.bf16 %v199, %v199
    %210 = vrot.lane.b32.xlu0 %v201, 96
    %v211 = vpop.permute.xlu0 %210
    %vm212 = vcmask 64512
    %v214 = vsel %vm212, %v173, 0
    %v217 = vsel %vm212, %v211, 0
    %219 = vmatprep.subr.bf16.mxu0 0
    %220 = vmatpush1.bf16.xpose.msra.mxu0 %v217
    %221 = vmatprep.subr.bf16.mxu0 0
    %222 = vmatpush1.bf16.xpose.msra.mxu0 0
    %223 = vmatprep.subr.bf16.mxu0 0
    %224 = vmatpush1.bf16.xpose.msra.mxu0 0
    %225 = vmatprep.subr.bf16.mxu0 0
    %226 = vmatpush1.bf16.xpose.msra.mxu0 0
    %227 = vmatprep.subr.bf16.mxu0 0
    %228 = vmatpush1.bf16.xpose.msra.mxu0 0
    %229 = vmatprep.subr.bf16.mxu0 0
    %230 = vmatpush1.bf16.xpose.msra.mxu0 0
    %231 = vmatprep.subr.bf16.mxu0 0
    %232 = vmatpush1.bf16.xpose.msra.mxu0 0
    %233 = vmatprep.subr.bf16.mxu0 0
    %234 = vmatpush1.bf16.xpose.msra.mxu0 0
    %235 = vmatprep.subr.bf16.mxu0 0
    %236 = vmatpush1.bf16.xpose.msra.mxu0 0
    %237 = vmatprep.subr.bf16.mxu0 0
    %238 = vmatpush1.bf16.xpose.msra.mxu0 0
    %239 = vmatprep.subr.bf16.mxu0 0
    %240 = vmatpush1.bf16.xpose.msra.mxu0 0
    %241 = vmatprep.subr.bf16.mxu0 0
    %242 = vmatpush1.bf16.xpose.msra.mxu0 0
    %243 = vmatprep.subr.bf16.mxu0 0
    %244 = vmatpush1.bf16.xpose.msra.mxu0 0
    %245 = vmatprep.subr.bf16.mxu0 0
    %246 = vmatpush1.bf16.xpose.msra.mxu0 0
    %247 = vmatprep.subr.bf16.mxu0 0
    %248 = vmatpush1.bf16.xpose.msra.mxu0 0
    %249 = vmatprep.subr.bf16.mxu0 0
    %250 = vmatpush1.bf16.xpose.msra.mxu0 0
    %251 = vmatprep.mubr.bf16.mxu0 0
    %252 = vmatmul.mubr.bf16.gmra.mrb[0].mxu0 %v214
    %v253 = vpop.f32.mrb[0].mxu0
    %v254 = vadd.f32 0.0, %v253
    %v255 = vpop.f32.mrb[0].mxu0
    %v256 = vpop.f32.mrb[0].mxu0
    %v257 = vpop.f32.mrb[0].mxu0
    %258 = vdwg.mxu0
    %260 = vrot.lane.b32.xlu0 %v202, 96
    %v261 = vpop.permute.xlu0 %260
    %v263 = vsel %vm212, %v174, 0
    %v266 = vsel %vm212, %v261, 0
    %268 = vmatprep.subr.bf16.mxu0 0
    %269 = vmatpush1.bf16.xpose.msra.mxu0 %v266
    %270 = vmatprep.subr.bf16.mxu0 0
    %271 = vmatpush1.bf16.xpose.msra.mxu0 0
    %272 = vmatprep.subr.bf16.mxu0 0
    %273 = vmatpush1.bf16.xpose.msra.mxu0 0
    %274 = vmatprep.subr.bf16.mxu0 0
    %275 = vmatpush1.bf16.xpose.msra.mxu0 0
    %276 = vmatprep.subr.bf16.mxu0 0
    %277 = vmatpush1.bf16.xpose.msra.mxu0 0
    %278 = vmatprep.subr.bf16.mxu0 0
    %279 = vmatpush1.bf16.xpose.msra.mxu0 0
    %280 = vmatprep.subr.bf16.mxu0 0
    %281 = vmatpush1.bf16.xpose.msra.mxu0 0
    %282 = vmatprep.subr.bf16.mxu0 0
    %283 = vmatpush1.bf16.xpose.msra.mxu0 0
    %284 = vmatprep.subr.bf16.mxu0 0
    %285 = vmatpush1.bf16.xpose.msra.mxu0 0
    %286 = vmatprep.subr.bf16.mxu0 0
    %287 = vmatpush1.bf16.xpose.msra.mxu0 0
    %288 = vmatprep.subr.bf16.mxu0 0
    %289 = vmatpush1.bf16.xpose.msra.mxu0 0
    %290 = vmatprep.subr.bf16.mxu0 0
    %291 = vmatpush1.bf16.xpose.msra.mxu0 0
    %292 = vmatprep.subr.bf16.mxu0 0
    %293 = vmatpush1.bf16.xpose.msra.mxu0 0
    %294 = vmatprep.subr.bf16.mxu0 0
    %295 = vmatpush1.bf16.xpose.msra.mxu0 0
    %296 = vmatprep.subr.bf16.mxu0 0
    %297 = vmatpush1.bf16.xpose.msra.mxu0 0
    %298 = vmatprep.subr.bf16.mxu0 0
    %299 = vmatpush1.bf16.xpose.msra.mxu0 0
    %300 = vmatprep.mubr.bf16.mxu0 0
    %301 = vmatmul.mubr.bf16.gmra.mrb[0].mxu0 %v263
    %v302 = vpop.f32.mrb[0].mxu0
    %v303 = vadd.f32 0.0, %v302
    %v304 = vpop.f32.mrb[0].mxu0
    %v305 = vpop.f32.mrb[0].mxu0
    %v306 = vpop.f32.mrb[0].mxu0
    %307 = vdwg.mxu0
    %309 = vrot.lane.b32.xlu0 %v203, 96
    %v310 = vpop.permute.xlu0 %309
    %v312 = vsel %vm212, %v175, 0
    %v315 = vsel %vm212, %v310, 0
    %317 = vmatprep.subr.bf16.mxu0 0
    %318 = vmatpush1.bf16.xpose.msra.mxu0 %v315
    %319 = vmatprep.subr.bf16.mxu0 0
    %320 = vmatpush1.bf16.xpose.msra.mxu0 0
    %321 = vmatprep.subr.bf16.mxu0 0
    %322 = vmatpush1.bf16.xpose.msra.mxu0 0
    %323 = vmatprep.subr.bf16.mxu0 0
    %324 = vmatpush1.bf16.xpose.msra.mxu0 0
    %325 = vmatprep.subr.bf16.mxu0 0
    %326 = vmatpush1.bf16.xpose.msra.mxu0 0
    %327 = vmatprep.subr.bf16.mxu0 0
    %328 = vmatpush1.bf16.xpose.msra.mxu0 0
    %329 = vmatprep.subr.bf16.mxu0 0
    %330 = vmatpush1.bf16.xpose.msra.mxu0 0
    %331 = vmatprep.subr.bf16.mxu0 0
    %332 = vmatpush1.bf16.xpose.msra.mxu0 0
    %333 = vmatprep.subr.bf16.mxu0 0
    %334 = vmatpush1.bf16.xpose.msra.mxu0 0
    %335 = vmatprep.subr.bf16.mxu0 0
    %336 = vmatpush1.bf16.xpose.msra.mxu0 0
    %337 = vmatprep.subr.bf16.mxu0 0
    %338 = vmatpush1.bf16.xpose.msra.mxu0 0
    %339 = vmatprep.subr.bf16.mxu0 0
    %340 = vmatpush1.bf16.xpose.msra.mxu0 0
    %341 = vmatprep.subr.bf16.mxu0 0
    %342 = vmatpush1.bf16.xpose.msra.mxu0 0
    %343 = vmatprep.subr.bf16.mxu0 0
    %344 = vmatpush1.bf16.xpose.msra.mxu0 0
    %345 = vmatprep.subr.bf16.mxu0 0
    %346 = vmatpush1.bf16.xpose.msra.mxu0 0
    %347 = vmatprep.subr.bf16.mxu0 0
    %348 = vmatpush1.bf16.xpose.msra.mxu0 0
    %349 = vmatprep.mubr.bf16.mxu0 0
    %350 = vmatmul.mubr.bf16.gmra.mrb[0].mxu0 %v312
    %v351 = vpop.f32.mrb[0].mxu0
    %v352 = vadd.f32 0.0, %v351
    %v353 = vpop.f32.mrb[0].mxu0
    %v354 = vpop.f32.mrb[0].mxu0
    %v355 = vpop.f32.mrb[0].mxu0
    %356 = vdwg.mxu0
    %358 = vrot.lane.b32.xlu0 %v204, 96
    %v359 = vpop.permute.xlu0 %358
    %v361 = vsel %vm212, %v176, 0
    %v364 = vsel %vm212, %v359, 0
    %366 = vmatprep.subr.bf16.mxu0 0
    %367 = vmatpush1.bf16.xpose.msra.mxu0 %v364
    %368 = vmatprep.subr.bf16.mxu0 0
    %369 = vmatpush1.bf16.xpose.msra.mxu0 0
    %370 = vmatprep.subr.bf16.mxu0 0
    %371 = vmatpush1.bf16.xpose.msra.mxu0 0
    %372 = vmatprep.subr.bf16.mxu0 0
    %373 = vmatpush1.bf16.xpose.msra.mxu0 0
    %374 = vmatprep.subr.bf16.mxu0 0
    %375 = vmatpush1.bf16.xpose.msra.mxu0 0
    %376 = vmatprep.subr.bf16.mxu0 0
    %377 = vmatpush1.bf16.xpose.msra.mxu0 0
    %378 = vmatprep.subr.bf16.mxu0 0
    %379 = vmatpush1.bf16.xpose.msra.mxu0 0
    %380 = vmatprep.subr.bf16.mxu0 0
    %381 = vmatpush1.bf16.xpose.msra.mxu0 0
    %382 = vmatprep.subr.bf16.mxu0 0
    %383 = vmatpush1.bf16.xpose.msra.mxu0 0
    %384 = vmatprep.subr.bf16.mxu0 0
    %385 = vmatpush1.bf16.xpose.msra.mxu0 0
    %386 = vmatprep.subr.bf16.mxu0 0
    %387 = vmatpush1.bf16.xpose.msra.mxu0 0
    %388 = vmatprep.subr.bf16.mxu0 0
    %389 = vmatpush1.bf16.xpose.msra.mxu0 0
    %390 = vmatprep.subr.bf16.mxu0 0
    %391 = vmatpush1.bf16.xpose.msra.mxu0 0
    %392 = vmatprep.subr.bf16.mxu0 0
    %393 = vmatpush1.bf16.xpose.msra.mxu0 0
    %394 = vmatprep.subr.bf16.mxu0 0
    %395 = vmatpush1.bf16.xpose.msra.mxu0 0
    %396 = vmatprep.subr.bf16.mxu0 0
    %397 = vmatpush1.bf16.xpose.msra.mxu0 0
    %398 = vmatprep.mubr.bf16.mxu0 0
    %399 = vmatmul.mubr.bf16.gmra.mrb[0].mxu0 %v361
    %v400 = vpop.f32.mrb[0].mxu0
    %v401 = vadd.f32 0.0, %v400
    %v402 = vpop.f32.mrb[0].mxu0
    %v403 = vpop.f32.mrb[0].mxu0
    %v404 = vpop.f32.mrb[0].mxu0
    %405 = vdwg.mxu0
    %407 = vrot.lane.b32.xlu0 %v205, 96
    %v408 = vpop.permute.xlu0 %407
    %v410 = vsel %vm212, %v177, 0
    %v413 = vsel %vm212, %v408, 0
    %415 = vmatprep.subr.bf16.mxu0 0
    %416 = vmatpush1.bf16.xpose.msra.mxu0 %v413
    %417 = vmatprep.subr.bf16.mxu0 0
    %418 = vmatpush1.bf16.xpose.msra.mxu0 0
    %419 = vmatprep.subr.bf16.mxu0 0
    %420 = vmatpush1.bf16.xpose.msra.mxu0 0
    %421 = vmatprep.subr.bf16.mxu0 0
    %422 = vmatpush1.bf16.xpose.msra.mxu0 0
    %423 = vmatprep.subr.bf16.mxu0 0
    %424 = vmatpush1.bf16.xpose.msra.mxu0 0
    %425 = vmatprep.subr.bf16.mxu0 0
    %426 = vmatpush1.bf16.xpose.msra.mxu0 0
    %427 = vmatprep.subr.bf16.mxu0 0
    %428 = vmatpush1.bf16.xpose.msra.mxu0 0
    %429 = vmatprep.subr.bf16.mxu0 0
    %430 = vmatpush1.bf16.xpose.msra.mxu0 0
    %431 = vmatprep.subr.bf16.mxu0 0
    %432 = vmatpush1.bf16.xpose.msra.mxu0 0
    %433 = vmatprep.subr.bf16.mxu0 0
    %434 = vmatpush1.bf16.xpose.msra.mxu0 0
    %435 = vmatprep.subr.bf16.mxu0 0
    %436 = vmatpush1.bf16.xpose.msra.mxu0 0
    %437 = vmatprep.subr.bf16.mxu0 0
    %438 = vmatpush1.bf16.xpose.msra.mxu0 0
    %439 = vmatprep.subr.bf16.mxu0 0
    %440 = vmatpush1.bf16.xpose.msra.mxu0 0
    %441 = vmatprep.subr.bf16.mxu0 0
    %442 = vmatpush1.bf16.xpose.msra.mxu0 0
    %443 = vmatprep.subr.bf16.mxu0 0
    %444 = vmatpush1.bf16.xpose.msra.mxu0 0
    %445 = vmatprep.subr.bf16.mxu0 0
    %446 = vmatpush1.bf16.xpose.msra.mxu0 0
    %447 = vmatprep.mubr.bf16.mxu0 0
    %448 = vmatmul.mubr.bf16.gmra.mrb[0].mxu0 %v410
    %v449 = vpop.f32.mrb[0].mxu0
    %v450 = vadd.f32 0.0, %v449
    %v451 = vpop.f32.mrb[0].mxu0
    %v452 = vpop.f32.mrb[0].mxu0
    %v453 = vpop.f32.mrb[0].mxu0
    %454 = vdwg.mxu0
    %456 = vrot.lane.b32.xlu0 %v206, 96
    %v457 = vpop.permute.xlu0 %456
    %v459 = vsel %vm212, %v178, 0
    %v462 = vsel %vm212, %v457, 0
    %464 = vmatprep.subr.bf16.mxu0 0
    %465 = vmatpush1.bf16.xpose.msra.mxu0 %v462
    %466 = vmatprep.subr.bf16.mxu0 0
    %467 = vmatpush1.bf16.xpose.msra.mxu0 0
    %468 = vmatprep.subr.bf16.mxu0 0
    %469 = vmatpush1.bf16.xpose.msra.mxu0 0
    %470 = vmatprep.subr.bf16.mxu0 0
    %471 = vmatpush1.bf16.xpose.msra.mxu0 0
    %472 = vmatprep.subr.bf16.mxu0 0
    %473 = vmatpush1.bf16.xpose.msra.mxu0 0
    %474 = vmatprep.subr.bf16.mxu0 0
    %475 = vmatpush1.bf16.xpose.msra.mxu0 0
    %476 = vmatprep.subr.bf16.mxu0 0
    %477 = vmatpush1.bf16.xpose.msra.mxu0 0
    %478 = vmatprep.subr.bf16.mxu0 0
    %479 = vmatpush1.bf16.xpose.msra.mxu0 0
    %480 = vmatprep.subr.bf16.mxu0 0
    %481 = vmatpush1.bf16.xpose.msra.mxu0 0
    %482 = vmatprep.subr.bf16.mxu0 0
    %483 = vmatpush1.bf16.xpose.msra.mxu0 0
    %484 = vmatprep.subr.bf16.mxu0 0
    %485 = vmatpush1.bf16.xpose.msra.mxu0 0
    %486 = vmatprep.subr.bf16.mxu0 0
    %487 = vmatpush1.bf16.xpose.msra.mxu0 0
    %488 = vmatprep.subr.bf16.mxu0 0
    %489 = vmatpush1.bf16.xpose.msra.mxu0 0
    %490 = vmatprep.subr.bf16.mxu0 0
    %491 = vmatpush1.bf16.xpose.msra.mxu0 0
    %492 = vmatprep.subr.bf16.mxu0 0
    %493 = vmatpush1.bf16.xpose.msra.mxu0 0
    %494 = vmatprep.subr.bf16.mxu0 0
    %495 = vmatpush1.bf16.xpose.msra.mxu0 0
    %496 = vmatprep.mubr.bf16.mxu0 0
    %497 = vmatmul.mubr.bf16.gmra.mrb[0].mxu0 %v459
    %v498 = vpop.f32.mrb[0].mxu0
    %v499 = vadd.f32 0.0, %v498
    %v500 = vpop.f32.mrb[0].mxu0
    %v501 = vpop.f32.mrb[0].mxu0
    %v502 = vpop.f32.mrb[0].mxu0
    %503 = vdwg.mxu0
    %505 = vrot.lane.b32.xlu0 %v207, 96
    %v506 = vpop.permute.xlu0 %505
    %v508 = vsel %vm212, %v179, 0
    %v511 = vsel %vm212, %v506, 0
    %513 = vmatprep.subr.bf16.mxu0 0
    %514 = vmatpush1.bf16.xpose.msra.mxu0 %v511
    %515 = vmatprep.subr.bf16.mxu0 0
    %516 = vmatpush1.bf16.xpose.msra.mxu0 0
    %517 = vmatprep.subr.bf16.mxu0 0
    %518 = vmatpush1.bf16.xpose.msra.mxu0 0
    %519 = vmatprep.subr.bf16.mxu0 0
    %520 = vmatpush1.bf16.xpose.msra.mxu0 0
    %521 = vmatprep.subr.bf16.mxu0 0
    %522 = vmatpush1.bf16.xpose.msra.mxu0 0
    %523 = vmatprep.subr.bf16.mxu0 0
    %524 = vmatpush1.bf16.xpose.msra.mxu0 0
    %525 = vmatprep.subr.bf16.mxu0 0
    %526 = vmatpush1.bf16.xpose.msra.mxu0 0
    %527 = vmatprep.subr.bf16.mxu0 0
    %528 = vmatpush1.bf16.xpose.msra.mxu0 0
    %529 = vmatprep.subr.bf16.mxu0 0
    %530 = vmatpush1.bf16.xpose.msra.mxu0 0
    %531 = vmatprep.subr.bf16.mxu0 0
    %532 = vmatpush1.bf16.xpose.msra.mxu0 0
    %533 = vmatprep.subr.bf16.mxu0 0
    %534 = vmatpush1.bf16.xpose.msra.mxu0 0
    %535 = vmatprep.subr.bf16.mxu0 0
    %536 = vmatpush1.bf16.xpose.msra.mxu0 0
    %537 = vmatprep.subr.bf16.mxu0 0
    %538 = vmatpush1.bf16.xpose.msra.mxu0 0
    %539 = vmatprep.subr.bf16.mxu0 0
    %540 = vmatpush1.bf16.xpose.msra.mxu0 0
    %541 = vmatprep.subr.bf16.mxu0 0
    %542 = vmatpush1.bf16.xpose.msra.mxu0 0
    %543 = vmatprep.subr.bf16.mxu0 0
    %544 = vmatpush1.bf16.xpose.msra.mxu0 0
    %545 = vmatprep.mubr.bf16.mxu0 0
    %546 = vmatmul.mubr.bf16.gmra.mrb[0].mxu0 %v508
    %v547 = vpop.f32.mrb[0].mxu0
    %v548 = vadd.f32 0.0, %v547
    %v549 = vpop.f32.mrb[0].mxu0
    %v550 = vpop.f32.mrb[0].mxu0
    %v551 = vpop.f32.mrb[0].mxu0
    %552 = vdwg.mxu0
    %554 = vrot.lane.b32.xlu0 %v208, 96
    %v555 = vpop.permute.xlu0 %554
    %v557 = vsel %vm212, %v180, 0
    %v560 = vsel %vm212, %v555, 0
    %562 = vmatprep.subr.bf16.mxu0 0
    %563 = vmatpush1.bf16.xpose.msra.mxu0 %v560
    %564 = vmatprep.subr.bf16.mxu0 0
    %565 = vmatpush1.bf16.xpose.msra.mxu0 0
    %566 = vmatprep.subr.bf16.mxu0 0
    %567 = vmatpush1.bf16.xpose.msra.mxu0 0
    %568 = vmatprep.subr.bf16.mxu0 0
    %569 = vmatpush1.bf16.xpose.msra.mxu0 0
    %570 = vmatprep.subr.bf16.mxu0 0
    %571 = vmatpush1.bf16.xpose.msra.mxu0 0
    %572 = vmatprep.subr.bf16.mxu0 0
    %573 = vmatpush1.bf16.xpose.msra.mxu0 0
    %574 = vmatprep.subr.bf16.mxu0 0
    %575 = vmatpush1.bf16.xpose.msra.mxu0 0
    %576 = vmatprep.subr.bf16.mxu0 0
    %577 = vmatpush1.bf16.xpose.msra.mxu0 0
    %578 = vmatprep.subr.bf16.mxu0 0
    %579 = vmatpush1.bf16.xpose.msra.mxu0 0
    %580 = vmatprep.subr.bf16.mxu0 0
    %581 = vmatpush1.bf16.xpose.msra.mxu0 0
    %582 = vmatprep.subr.bf16.mxu0 0
    %583 = vmatpush1.bf16.xpose.msra.mxu0 0
    %584 = vmatprep.subr.bf16.mxu0 0
    %585 = vmatpush1.bf16.xpose.msra.mxu0 0
    %586 = vmatprep.subr.bf16.mxu0 0
    %587 = vmatpush1.bf16.xpose.msra.mxu0 0
    %588 = vmatprep.subr.bf16.mxu0 0
    %589 = vmatpush1.bf16.xpose.msra.mxu0 0
    %590 = vmatprep.subr.bf16.mxu0 0
    %591 = vmatpush1.bf16.xpose.msra.mxu0 0
    %592 = vmatprep.subr.bf16.mxu0 0
    %593 = vmatpush1.bf16.xpose.msra.mxu0 0
    %594 = vmatprep.mubr.bf16.mxu0 0
    %595 = vmatmul.mubr.bf16.gmra.mrb[0].mxu0 %v557
    %v596 = vpop.f32.mrb[0].mxu0
    %v597 = vadd.f32 0.0, %v596
    %v598 = vpop.f32.mrb[0].mxu0
    %v599 = vpop.f32.mrb[0].mxu0
    %v600 = vpop.f32.mrb[0].mxu0
    %601 = vdwg.mxu0
    %v602 = vld [vmem:[#allocation5] sm:$0xf]
    %vm603 = vcmp.eq.bf16.partialorder %v602, 0
    %v604 = vsel %vm603, 65537, 0
    %v605 = vunpack.c.l.b16 %v604
    %vm606 = vcmp.ne.s32.totalorder %v605, 0
    %v607 = vsel %vm606, 1, 0
    %vm608 = vcmp.eq.s32.totalorder %v607, 1
    %v609 = vsel %vm608, -1e+30, %v254
    %v610 = vsel %vm608, -1e+30, %v303
    %v611 = vsel %vm608, -1e+30, %v352
    %v612 = vsel %vm608, -1e+30, %v401
    %v613 = vsel %vm608, -1e+30, %v450
    %v614 = vsel %vm608, -1e+30, %v499
    %v615 = vsel %vm608, -1e+30, %v548
    %v616 = vsel %vm608, -1e+30, %v597
    %v617 = vsel %vm212, %v609, -inf
    %618 = vmax.xlane.f32.xlu0 %v617
    %v619 = vpop.xlane.xlu0 %618
    %v620 = vsel %vm212, %v610, -inf
    %621 = vmax.xlane.f32.xlu0 %v620
    %v622 = vpop.xlane.xlu0 %621
    %v623 = vsel %vm212, %v611, -inf
    %624 = vmax.xlane.f32.xlu0 %v623
    %v625 = vpop.xlane.xlu0 %624
    %v626 = vsel %vm212, %v612, -inf
    %627 = vmax.xlane.f32.xlu0 %v626
    %v628 = vpop.xlane.xlu0 %627
    %v629 = vsel %vm212, %v613, -inf
    %630 = vmax.xlane.f32.xlu0 %v629
    %v631 = vpop.xlane.xlu0 %630
    %v632 = vsel %vm212, %v614, -inf
    %633 = vmax.xlane.f32.xlu0 %v632
    %v634 = vpop.xlane.xlu0 %633
    %v635 = vsel %vm212, %v615, -inf
    %636 = vmax.xlane.f32.xlu0 %v635
    %v637 = vpop.xlane.xlu0 %636
    %v638 = vsel %vm212, %v616, -inf
    %639 = vmax.xlane.f32.xlu0 %v638
    %v640 = vpop.xlane.xlu0 %639
    %v641 = vsub.f32 %v609, %v619
    %v642 = vsub.f32 %v610, %v622
    %v643 = vsub.f32 %v611, %v625
    %v644 = vsub.f32 %v612, %v628
    %v645 = vsub.f32 %v613, %v631
    %v646 = vsub.f32 %v614, %v634
    %v647 = vsub.f32 %v615, %v637
    %v648 = vsub.f32 %v616, %v640
    %v649 = vmul.f32 %v641, 1.442695
    %v650 = vpow.pop %v649
    %v651 = vmul.f32 %v642, 1.442695
    %v652 = vpow.pop %v651
    %v653 = vmul.f32 %v643, 1.442695
    %v654 = vpow.pop %v653
    %v655 = vmul.f32 %v644, 1.442695
    %v656 = vpow.pop %v655
    %v657 = vmul.f32 %v645, 1.442695
    %v658 = vpow.pop %v657
    %v659 = vmul.f32 %v646, 1.442695
    %v660 = vpow.pop %v659
    %v661 = vmul.f32 %v647, 1.442695
    %v662 = vpow.pop %v661
    %v663 = vmul.f32 %v648, 1.442695
    %v664 = vpow.pop %v663
    %v665 = vsel %vm212, %v650, 0.0
    %666 = vadd.xlane.f32.xlu0 %v665
    %v667 = vpop.xlane.xlu0 %666
    %v668 = vsel %vm212, %v652, 0.0
    %669 = vadd.xlane.f32.xlu0 %v668
    %v670 = vpop.xlane.xlu0 %669
    %v671 = vsel %vm212, %v654, 0.0
    %672 = vadd.xlane.f32.xlu0 %v671
    %v673 = vpop.xlane.xlu0 %672
    %v674 = vsel %vm212, %v656, 0.0
    %675 = vadd.xlane.f32.xlu0 %v674
    %v676 = vpop.xlane.xlu0 %675
    %v677 = vsel %vm212, %v658, 0.0
    %678 = vadd.xlane.f32.xlu0 %v677
    %v679 = vpop.xlane.xlu0 %678
    %v680 = vsel %vm212, %v660, 0.0
    %681 = vadd.xlane.f32.xlu0 %v680
    %v682 = vpop.xlane.xlu0 %681
    %v683 = vsel %vm212, %v662, 0.0
    %684 = vadd.xlane.f32.xlu0 %v683
    %v685 = vpop.xlane.xlu0 %684
    %v686 = vsel %vm212, %v664, 0.0
    %687 = vadd.xlane.f32.xlu0 %v686
    %v688 = vpop.xlane.xlu0 %687
    %v689 = vrcp.pop %v667
    %v690 = vrcp.pop %v670
    %v691 = vrcp.pop %v673
    %v692 = vrcp.pop %v676
    %v693 = vrcp.pop %v679
    %v694 = vrcp.pop %v682
    %v695 = vrcp.pop %v685
    %v696 = vrcp.pop %v688
    %v697 = vmul.f32 %v650, %v689
    %v698 = vmul.f32 %v652, %v690
    %v699 = vmul.f32 %v654, %v691
    %v700 = vmul.f32 %v656, %v692
    %v701 = vmul.f32 %v658, %v693
    %v702 = vmul.f32 %v660, %v694
    %v703 = vmul.f32 %v662, %v695
    %v704 = vmul.f32 %v664, %v696
    %v705 = vpack.c.bf16 %v697, %v697
    %v706 = vpack.c.bf16 %v698, %v698
    %v707 = vpack.c.bf16 %v699, %v699
    %v708 = vpack.c.bf16 %v700, %v700
    %v709 = vpack.c.bf16 %v701, %v701
    %v710 = vpack.c.bf16 %v702, %v702
    %v711 = vpack.c.bf16 %v703, %v703
    %v712 = vpack.c.bf16 %v704, %v704
    %713 = vrot.lane.b32.xlu0 %v201, 64
    %v714 = vpop.permute.xlu0 %713
    %v716 = vsel %vm212, %v705, 0
    %vm718 = vcmask 1043456
    %v720 = vsel %vm718, %v714, 0
    %722 = vmatprep.subr.bf16.mxu0 0
    %723 = vmatpush1.bf16.msra.mxu0 %v720
    %724 = vmatprep.subr.bf16.mxu0 0
    %725 = vmatpush1.bf16.msra.mxu0 0
    %726 = vmatprep.subr.bf16.mxu0 0
    %727 = vmatpush1.bf16.msra.mxu0 0
    %728 = vmatprep.subr.bf16.mxu0 0
    %729 = vmatpush1.bf16.msra.mxu0 0
    %730 = vmatprep.subr.bf16.mxu0 0
    %731 = vmatpush1.bf16.msra.mxu0 0
    %732 = vmatprep.subr.bf16.mxu0 0
    %733 = vmatpush1.bf16.msra.mxu0 0
    %734 = vmatprep.subr.bf16.mxu0 0
    %735 = vmatpush1.bf16.msra.mxu0 0
    %736 = vmatprep.subr.bf16.mxu0 0
    %737 = vmatpush1.bf16.msra.mxu0 0
    %738 = vmatprep.subr.bf16.mxu0 0
    %739 = vmatpush1.bf16.msra.mxu0 0
    %740 = vmatprep.subr.bf16.mxu0 0
    %741 = vmatpush1.bf16.msra.mxu0 0
    %742 = vmatprep.subr.bf16.mxu0 0
    %743 = vmatpush1.bf16.msra.mxu0 0
    %744 = vmatprep.subr.bf16.mxu0 0
    %745 = vmatpush1.bf16.msra.mxu0 0
    %746 = vmatprep.subr.bf16.mxu0 0
    %747 = vmatpush1.bf16.msra.mxu0 0
    %748 = vmatprep.subr.bf16.mxu0 0
    %749 = vmatpush1.bf16.msra.mxu0 0
    %750 = vmatprep.subr.bf16.mxu0 0
    %751 = vmatpush1.bf16.msra.mxu0 0
    %752 = vmatprep.subr.bf16.mxu0 0
    %753 = vmatpush1.bf16.msra.mxu0 0
    %754 = vmatprep.mubr.bf16.mxu0 0
    %755 = vmatmul.mubr.bf16.gmra.mrb[0].mxu0 %v716
    %v756 = vpop.f32.mrb[0].mxu0
    %v757 = vadd.f32 0.0, %v756
    %v758 = vpop.f32.mrb[0].mxu0
    %v759 = vpop.f32.mrb[0].mxu0
    %v760 = vpop.f32.mrb[0].mxu0
    %761 = vdwg.mxu0
    %762 = vrot.lane.b32.xlu0 %v202, 64
    %v763 = vpop.permute.xlu0 %762
    %v765 = vsel %vm212, %v706, 0
    %v768 = vsel %vm718, %v763, 0
    %770 = vmatprep.subr.bf16.mxu0 0
    %771 = vmatpush1.bf16.msra.mxu0 %v768
    %772 = vmatprep.subr.bf16.mxu0 0
    %773 = vmatpush1.bf16.msra.mxu0 0
    %774 = vmatprep.subr.bf16.mxu0 0
    %775 = vmatpush1.bf16.msra.mxu0 0
    %776 = vmatprep.subr.bf16.mxu0 0
    %777 = vmatpush1.bf16.msra.mxu0 0
    %778 = vmatprep.subr.bf16.mxu0 0
    %779 = vmatpush1.bf16.msra.mxu0 0
    %780 = vmatprep.subr.bf16.mxu0 0
    %781 = vmatpush1.bf16.msra.mxu0 0
    %782 = vmatprep.subr.bf16.mxu0 0
    %783 = vmatpush1.bf16.msra.mxu0 0
    %784 = vmatprep.subr.bf16.mxu0 0
    %785 = vmatpush1.bf16.msra.mxu0 0
    %786 = vmatprep.subr.bf16.mxu0 0
    %787 = vmatpush1.bf16.msra.mxu0 0
    %788 = vmatprep.subr.bf16.mxu0 0
    %789 = vmatpush1.bf16.msra.mxu0 0
    %790 = vmatprep.subr.bf16.mxu0 0
    %791 = vmatpush1.bf16.msra.mxu0 0
    %792 = vmatprep.subr.bf16.mxu0 0
    %793 = vmatpush1.bf16.msra.mxu0 0
    %794 = vmatprep.subr.bf16.mxu0 0
    %795 = vmatpush1.bf16.msra.mxu0 0
    %796 = vmatprep.subr.bf16.mxu0 0
    %797 = vmatpush1.bf16.msra.mxu0 0
    %798 = vmatprep.subr.bf16.mxu0 0
    %799 = vmatpush1.bf16.msra.mxu0 0
    %800 = vmatprep.subr.bf16.mxu0 0
    %801 = vmatpush1.bf16.msra.mxu0 0
    %802 = vmatprep.mubr.bf16.mxu0 0
    %803 = vmatmul.mubr.bf16.gmra.mrb[0].mxu0 %v765
    %v804 = vpop.f32.mrb[0].mxu0
    %v805 = vadd.f32 0.0, %v804
    %v806 = vpop.f32.mrb[0].mxu0
    %v807 = vpop.f32.mrb[0].mxu0
    %v808 = vpop.f32.mrb[0].mxu0
    %809 = vdwg.mxu0
    %810 = vrot.lane.b32.xlu0 %v203, 64
    %v811 = vpop.permute.xlu0 %810
    %v813 = vsel %vm212, %v707, 0
    %v816 = vsel %vm718, %v811, 0
    %818 = vmatprep.subr.bf16.mxu0 0
    %819 = vmatpush1.bf16.msra.mxu0 %v816
    %820 = vmatprep.subr.bf16.mxu0 0
    %821 = vmatpush1.bf16.msra.mxu0 0
    %822 = vmatprep.subr.bf16.mxu0 0
    %823 = vmatpush1.bf16.msra.mxu0 0
    %824 = vmatprep.subr.bf16.mxu0 0
    %825 = vmatpush1.bf16.msra.mxu0 0
    %826 = vmatprep.subr.bf16.mxu0 0
    %827 = vmatpush1.bf16.msra.mxu0 0
    %828 = vmatprep.subr.bf16.mxu0 0
    %829 = vmatpush1.bf16.msra.mxu0 0
    %830 = vmatprep.subr.bf16.mxu0 0
    %831 = vmatpush1.bf16.msra.mxu0 0
    %832 = vmatprep.subr.bf16.mxu0 0
    %833 = vmatpush1.bf16.msra.mxu0 0
    %834 = vmatprep.subr.bf16.mxu0 0
    %835 = vmatpush1.bf16.msra.mxu0 0
    %836 = vmatprep.subr.bf16.mxu0 0
    %837 = vmatpush1.bf16.msra.mxu0 0
    %838 = vmatprep.subr.bf16.mxu0 0
    %839 = vmatpush1.bf16.msra.mxu0 0
    %840 = vmatprep.subr.bf16.mxu0 0
    %841 = vmatpush1.bf16.msra.mxu0 0
    %842 = vmatprep.subr.bf16.mxu0 0
    %843 = vmatpush1.bf16.msra.mxu0 0
    %844 = vmatprep.subr.bf16.mxu0 0
    %845 = vmatpush1.bf16.msra.mxu0 0
    %846 = vmatprep.subr.bf16.mxu0 0
    %847 = vmatpush1.bf16.msra.mxu0 0
    %848 = vmatprep.subr.bf16.mxu0 0
    %849 = vmatpush1.bf16.msra.mxu0 0
    %850 = vmatprep.mubr.bf16.mxu0 0
    %851 = vmatmul.mubr.bf16.gmra.mrb[0].mxu0 %v813
    %v852 = vpop.f32.mrb[0].mxu0
    %v853 = vadd.f32 0.0, %v852
    %v854 = vpop.f32.mrb[0].mxu0
    %v855 = vpop.f32.mrb[0].mxu0
    %v856 = vpop.f32.mrb[0].mxu0
    %857 = vdwg.mxu0
    %858 = vrot.lane.b32.xlu0 %v204, 64
    %v859 = vpop.permute.xlu0 %858
    %v861 = vsel %vm212, %v708, 0
    %v864 = vsel %vm718, %v859, 0
    %866 = vmatprep.subr.bf16.mxu0 0
    %867 = vmatpush1.bf16.msra.mxu0 %v864
    %868 = vmatprep.subr.bf16.mxu0 0
    %869 = vmatpush1.bf16.msra.mxu0 0
    %870 = vmatprep.subr.bf16.mxu0 0
    %871 = vmatpush1.bf16.msra.mxu0 0
    %872 = vmatprep.subr.bf16.mxu0 0
    %873 = vmatpush1.bf16.msra.mxu0 0
    %874 = vmatprep.subr.bf16.mxu0 0
    %875 = vmatpush1.bf16.msra.mxu0 0
    %876 = vmatprep.subr.bf16.mxu0 0
    %877 = vmatpush1.bf16.msra.mxu0 0
    %878 = vmatprep.subr.bf16.mxu0 0
    %879 = vmatpush1.bf16.msra.mxu0 0
    %880 = vmatprep.subr.bf16.mxu0 0
    %881 = vmatpush1.bf16.msra.mxu0 0
    %882 = vmatprep.subr.bf16.mxu0 0
    %883 = vmatpush1.bf16.msra.mxu0 0
    %884 = vmatprep.subr.bf16.mxu0 0
    %885 = vmatpush1.bf16.msra.mxu0 0
    %886 = vmatprep.subr.bf16.mxu0 0
    %887 = vmatpush1.bf16.msra.mxu0 0
    %888 = vmatprep.subr.bf16.mxu0 0
    %889 = vmatpush1.bf16.msra.mxu0 0
    %890 = vmatprep.subr.bf16.mxu0 0
    %891 = vmatpush1.bf16.msra.mxu0 0
    %892 = vmatprep.subr.bf16.mxu0 0
    %893 = vmatpush1.bf16.msra.mxu0 0
    %894 = vmatprep.subr.bf16.mxu0 0
    %895 = vmatpush1.bf16.msra.mxu0 0
    %896 = vmatprep.subr.bf16.mxu0 0
    %897 = vmatpush1.bf16.msra.mxu0 0
    %898 = vmatprep.mubr.bf16.mxu0 0
    %899 = vmatmul.mubr.bf16.gmra.mrb[0].mxu0 %v861
    %v900 = vpop.f32.mrb[0].mxu0
    %v901 = vadd.f32 0.0, %v900
    %v902 = vpop.f32.mrb[0].mxu0
    %v903 = vpop.f32.mrb[0].mxu0
    %v904 = vpop.f32.mrb[0].mxu0
    %905 = vdwg.mxu0
    %906 = vrot.lane.b32.xlu0 %v205, 64
    %v907 = vpop.permute.xlu0 %906
    %v909 = vsel %vm212, %v709, 0
    %v912 = vsel %vm718, %v907, 0
    %914 = vmatprep.subr.bf16.mxu0 0
    %915 = vmatpush1.bf16.msra.mxu0 %v912
    %916 = vmatprep.subr.bf16.mxu0 0
    %917 = vmatpush1.bf16.msra.mxu0 0
    %918 = vmatprep.subr.bf16.mxu0 0
    %919 = vmatpush1.bf16.msra.mxu0 0
    %920 = vmatprep.subr.bf16.mxu0 0
    %921 = vmatpush1.bf16.msra.mxu0 0
    %922 = vmatprep.subr.bf16.mxu0 0
    %923 = vmatpush1.bf16.msra.mxu0 0
    %924 = vmatprep.subr.bf16.mxu0 0
    %925 = vmatpush1.bf16.msra.mxu0 0
    %926 = vmatprep.subr.bf16.mxu0 0
    %927 = vmatpush1.bf16.msra.mxu0 0
    %928 = vmatprep.subr.bf16.mxu0 0
    %929 = vmatpush1.bf16.msra.mxu0 0
    %930 = vmatprep.subr.bf16.mxu0 0
    %931 = vmatpush1.bf16.msra.mxu0 0
    %932 = vmatprep.subr.bf16.mxu0 0
    %933 = vmatpush1.bf16.msra.mxu0 0
    %934 = vmatprep.subr.bf16.mxu0 0
    %935 = vmatpush1.bf16.msra.mxu0 0
    %936 = vmatprep.subr.bf16.mxu0 0
    %937 = vmatpush1.bf16.msra.mxu0 0
    %938 = vmatprep.subr.bf16.mxu0 0
    %939 = vmatpush1.bf16.msra.mxu0 0
    %940 = vmatprep.subr.bf16.mxu0 0
    %941 = vmatpush1.bf16.msra.mxu0 0
    %942 = vmatprep.subr.bf16.mxu0 0
    %943 = vmatpush1.bf16.msra.mxu0 0
    %944 = vmatprep.subr.bf16.mxu0 0
    %945 = vmatpush1.bf16.msra.mxu0 0
    %946 = vmatprep.mubr.bf16.mxu0 0
    %947 = vmatmul.mubr.bf16.gmra.mrb[0].mxu0 %v909
    %v948 = vpop.f32.mrb[0].mxu0
    %v949 = vadd.f32 0.0, %v948
    %v950 = vpop.f32.mrb[0].mxu0
    %v951 = vpop.f32.mrb[0].mxu0
    %v952 = vpop.f32.mrb[0].mxu0
    %953 = vdwg.mxu0
    %954 = vrot.lane.b32.xlu0 %v206, 64
    %v955 = vpop.permute.xlu0 %954
    %v957 = vsel %vm212, %v710, 0
    %v960 = vsel %vm718, %v955, 0
    %962 = vmatprep.subr.bf16.mxu0 0
    %963 = vmatpush1.bf16.msra.mxu0 %v960
    %964 = vmatprep.subr.bf16.mxu0 0
    %965 = vmatpush1.bf16.msra.mxu0 0
    %966 = vmatprep.subr.bf16.mxu0 0
    %967 = vmatpush1.bf16.msra.mxu0 0
    %968 = vmatprep.subr.bf16.mxu0 0
    %969 = vmatpush1.bf16.msra.mxu0 0
    %970 = vmatprep.subr.bf16.mxu0 0
    %971 = vmatpush1.bf16.msra.mxu0 0
    %972 = vmatprep.subr.bf16.mxu0 0
    %973 = vmatpush1.bf16.msra.mxu0 0
    %974 = vmatprep.subr.bf16.mxu0 0
    %975 = vmatpush1.bf16.msra.mxu0 0
    %976 = vmatprep.subr.bf16.mxu0 0
    %977 = vmatpush1.bf16.msra.mxu0 0
    %978 = vmatprep.subr.bf16.mxu0 0
    %979 = vmatpush1.bf16.msra.mxu0 0
    %980 = vmatprep.subr.bf16.mxu0 0
    %981 = vmatpush1.bf16.msra.mxu0 0
    %982 = vmatprep.subr.bf16.mxu0 0
    %983 = vmatpush1.bf16.msra.mxu0 0
    %984 = vmatprep.subr.bf16.mxu0 0
    %985 = vmatpush1.bf16.msra.mxu0 0
    %986 = vmatprep.subr.bf16.mxu0 0
    %987 = vmatpush1.bf16.msra.mxu0 0
    %988 = vmatprep.subr.bf16.mxu0 0
    %989 = vmatpush1.bf16.msra.mxu0 0
    %990 = vmatprep.subr.bf16.mxu0 0
    %991 = vmatpush1.bf16.msra.mxu0 0
    %992 = vmatprep.subr.bf16.mxu0 0
    %993 = vmatpush1.bf16.msra.mxu0 0
    %994 = vmatprep.mubr.bf16.mxu0 0
    %995 = vmatmul.mubr.bf16.gmra.mrb[0].mxu0 %v957
    %v996 = vpop.f32.mrb[0].mxu0
    %v997 = vadd.f32 0.0, %v996
    %v998 = vpop.f32.mrb[0].mxu0
    %v999 = vpop.f32.mrb[0].mxu0
    %v1000 = vpop.f32.mrb[0].mxu0
    %1001 = vdwg.mxu0
    %1002 = vrot.lane.b32.xlu0 %v207, 64
    %v1003 = vpop.permute.xlu0 %1002
    %v1005 = vsel %vm212, %v711, 0
    %v1008 = vsel %vm718, %v1003, 0
    %1010 = vmatprep.subr.bf16.mxu0 0
    %1011 = vmatpush1.bf16.msra.mxu0 %v1008
    %1012 = vmatprep.subr.bf16.mxu0 0
    %1013 = vmatpush1.bf16.msra.mxu0 0
    %1014 = vmatprep.subr.bf16.mxu0 0
    %1015 = vmatpush1.bf16.msra.mxu0 0
    %1016 = vmatprep.subr.bf16.mxu0 0
    %1017 = vmatpush1.bf16.msra.mxu0 0
    %1018 = vmatprep.subr.bf16.mxu0 0
    %1019 = vmatpush1.bf16.msra.mxu0 0
    %1020 = vmatprep.subr.bf16.mxu0 0
    %1021 = vmatpush1.bf16.msra.mxu0 0
    %1022 = vmatprep.subr.bf16.mxu0 0
    %1023 = vmatpush1.bf16.msra.mxu0 0
    %1024 = vmatprep.subr.bf16.mxu0 0
    %1025 = vmatpush1.bf16.msra.mxu0 0
    %1026 = vmatprep.subr.bf16.mxu0 0
    %1027 = vmatpush1.bf16.msra.mxu0 0
    %1028 = vmatprep.subr.bf16.mxu0 0
    %1029 = vmatpush1.bf16.msra.mxu0 0
    %1030 = vmatprep.subr.bf16.mxu0 0
    %1031 = vmatpush1.bf16.msra.mxu0 0
    %1032 = vmatprep.subr.bf16.mxu0 0
    %1033 = vmatpush1.bf16.msra.mxu0 0
    %1034 = vmatprep.subr.bf16.mxu0 0
    %1035 = vmatpush1.bf16.msra.mxu0 0
    %1036 = vmatprep.subr.bf16.mxu0 0
    %1037 = vmatpush1.bf16.msra.mxu0 0
    %1038 = vmatprep.subr.bf16.mxu0 0
    %1039 = vmatpush1.bf16.msra.mxu0 0
    %1040 = vmatprep.subr.bf16.mxu0 0
    %1041 = vmatpush1.bf16.msra.mxu0 0
    %1042 = vmatprep.mubr.bf16.mxu0 0
    %1043 = vmatmul.mubr.bf16.gmra.mrb[0].mxu0 %v1005
    %v1044 = vpop.f32.mrb[0].mxu0
    %v1045 = vadd.f32 0.0, %v1044
    %v1046 = vpop.f32.mrb[0].mxu0
    %v1047 = vpop.f32.mrb[0].mxu0
    %v1048 = vpop.f32.mrb[0].mxu0
    %1049 = vdwg.mxu0
    %1050 = vrot.lane.b32.xlu0 %v208, 64
    %v1051 = vpop.permute.xlu0 %1050
    %v1053 = vsel %vm212, %v712, 0
    %v1056 = vsel %vm718, %v1051, 0
    %1058 = vmatprep.subr.bf16.mxu0 0
    %1059 = vmatpush1.bf16.msra.mxu0 %v1056
    %1060 = vmatprep.subr.bf16.mxu0 0
    %1061 = vmatpush1.bf16.msra.mxu0 0
    %1062 = vmatprep.subr.bf16.mxu0 0
    %1063 = vmatpush1.bf16.msra.mxu0 0
    %1064 = vmatprep.subr.bf16.mxu0 0
    %1065 = vmatpush1.bf16.msra.mxu0 0
    %1066 = vmatprep.subr.bf16.mxu0 0
    %1067 = vmatpush1.bf16.msra.mxu0 0
    %1068 = vmatprep.subr.bf16.mxu0 0
    %1069 = vmatpush1.bf16.msra.mxu0 0
    %1070 = vmatprep.subr.bf16.mxu0 0
    %1071 = vmatpush1.bf16.msra.mxu0 0
    %1072 = vmatprep.subr.bf16.mxu0 0
    %1073 = vmatpush1.bf16.msra.mxu0 0
    %1074 = vmatprep.subr.bf16.mxu0 0
    %1075 = vmatpush1.bf16.msra.mxu0 0
    %1076 = vmatprep.subr.bf16.mxu0 0
    %1077 = vmatpush1.bf16.msra.mxu0 0
    %1078 = vmatprep.subr.bf16.mxu0 0
    %1079 = vmatpush1.bf16.msra.mxu0 0
    %1080 = vmatprep.subr.bf16.mxu0 0
    %1081 = vmatpush1.bf16.msra.mxu0 0
    %1082 = vmatprep.subr.bf16.mxu0 0
    %1083 = vmatpush1.bf16.msra.mxu0 0
    %1084 = vmatprep.subr.bf16.mxu0 0
    %1085 = vmatpush1.bf16.msra.mxu0 0
    %1086 = vmatprep.subr.bf16.mxu0 0
    %1087 = vmatpush1.bf16.msra.mxu0 0
    %1088 = vmatprep.subr.bf16.mxu0 0
    %1089 = vmatpush1.bf16.msra.mxu0 0
    %1090 = vmatprep.mubr.bf16.mxu0 0
    %1091 = vmatmul.mubr.bf16.gmra.mrb[0].mxu0 %v1053
    %v1092 = vpop.f32.mrb[0].mxu0
    %v1093 = vadd.f32 0.0, %v1092
    %v1094 = vpop.f32.mrb[0].mxu0
    %v1095 = vpop.f32.mrb[0].mxu0
    %v1096 = vpop.f32.mrb[0].mxu0
    %1097 = vdwg.mxu0
    %v1098 = vpack.c.bf16 %v757, %v757
    %v1099 = vpack.c.bf16 %v805, %v805
    %v1100 = vpack.c.bf16 %v853, %v853
    %v1101 = vpack.c.bf16 %v901, %v901
    %v1102 = vpack.c.bf16 %v949, %v949
    %v1103 = vpack.c.bf16 %v997, %v997
    %v1104 = vpack.c.bf16 %v1045, %v1045
    %v1105 = vpack.c.bf16 %v1093, %v1093
    %v1106 = vld [vmem:[#allocation8] sm:$0xf]
    %v1107 = vld [vmem:[#allocation8 + $0x4] sm:$0xf]
    %v1108 = vld [vmem:[#allocation8 + $0x8] sm:$0xf]
    %v1109 = vld [vmem:[#allocation8 + $0xc] sm:$0xf]
    %v1110 = vld [vmem:[#allocation8 + $0x10] sm:$0xf]
    %v1111 = vld [vmem:[#allocation8 + $0x14] sm:$0xf]
    %v1112 = vld [vmem:[#allocation8 + $0x18] sm:$0xf]
    %v1113 = vld [vmem:[#allocation8 + $0x1c] sm:$0xf]
    %v1115 = vsel %vm212, %v1098, 0
    %v1118 = vsel %vm718, %v1106, 0
    %1120 = vmatprep.subr.bf16.mxu0 0
    %1121 = vmatpush1.bf16.msra.mxu0 %v1118
    %1122 = vmatprep.subr.bf16.mxu0 0
    %1123 = vmatpush1.bf16.msra.mxu0 0
    %1124 = vmatprep.subr.bf16.mxu0 0
    %1125 = vmatpush1.bf16.msra.mxu0 0
    %1126 = vmatprep.subr.bf16.mxu0 0
    %1127 = vmatpush1.bf16.msra.mxu0 0
    %1128 = vmatprep.subr.bf16.mxu0 0
    %1129 = vmatpush1.bf16.msra.mxu0 0
    %1130 = vmatprep.subr.bf16.mxu0 0
    %1131 = vmatpush1.bf16.msra.mxu0 0
    %1132 = vmatprep.subr.bf16.mxu0 0
    %1133 = vmatpush1.bf16.msra.mxu0 0
    %1134 = vmatprep.subr.bf16.mxu0 0
    %1135 = vmatpush1.bf16.msra.mxu0 0
    %1136 = vmatprep.subr.bf16.mxu0 0
    %1137 = vmatpush1.bf16.msra.mxu0 0
    %1138 = vmatprep.subr.bf16.mxu0 0
    %1139 = vmatpush1.bf16.msra.mxu0 0
    %1140 = vmatprep.subr.bf16.mxu0 0
    %1141 = vmatpush1.bf16.msra.mxu0 0
    %1142 = vmatprep.subr.bf16.mxu0 0
    %1143 = vmatpush1.bf16.msra.mxu0 0
    %1144 = vmatprep.subr.bf16.mxu0 0
    %1145 = vmatpush1.bf16.msra.mxu0 0
    %1146 = vmatprep.subr.bf16.mxu0 0
    %1147 = vmatpush1.bf16.msra.mxu0 0
    %1148 = vmatprep.subr.bf16.mxu0 0
    %1149 = vmatpush1.bf16.msra.mxu0 0
    %1150 = vmatprep.subr.bf16.mxu0 0
    %1151 = vmatpush1.bf16.msra.mxu0 0
    %1152 = vmatprep.mubr.bf16.mxu0 0
    %1153 = vmatmul.mubr.bf16.gmra.mrb[0].mxu0 %v1115
    %v1154 = vpop.f32.mrb[0].mxu0
    %v1155 = vadd.f32 0.0, %v1154
    %v1156 = vpop.f32.mrb[0].mxu0
    %v1157 = vpop.f32.mrb[0].mxu0
    %v1158 = vpop.f32.mrb[0].mxu0
    %1159 = vdwg.mxu0
    %v1161 = vsel %vm212, %v1099, 0
    %v1164 = vsel %vm718, %v1107, 0
    %1166 = vmatprep.subr.bf16.mxu0 0
    %1167 = vmatpush1.bf16.msra.mxu0 %v1164
    %1168 = vmatprep.subr.bf16.mxu0 0
    %1169 = vmatpush1.bf16.msra.mxu0 0
    %1170 = vmatprep.subr.bf16.mxu0 0
    %1171 = vmatpush1.bf16.msra.mxu0 0
    %1172 = vmatprep.subr.bf16.mxu0 0
    %1173 = vmatpush1.bf16.msra.mxu0 0
    %1174 = vmatprep.subr.bf16.mxu0 0
    %1175 = vmatpush1.bf16.msra.mxu0 0
    %1176 = vmatprep.subr.bf16.mxu0 0
    %1177 = vmatpush1.bf16.msra.mxu0 0
    %1178 = vmatprep.subr.bf16.mxu0 0
    %1179 = vmatpush1.bf16.msra.mxu0 0
    %1180 = vmatprep.subr.bf16.mxu0 0
    %1181 = vmatpush1.bf16.msra.mxu0 0
    %1182 = vmatprep.subr.bf16.mxu0 0
    %1183 = vmatpush1.bf16.msra.mxu0 0
    %1184 = vmatprep.subr.bf16.mxu0 0
    %1185 = vmatpush1.bf16.msra.mxu0 0
    %1186 = vmatprep.subr.bf16.mxu0 0
    %1187 = vmatpush1.bf16.msra.mxu0 0
    %1188 = vmatprep.subr.bf16.mxu0 0
    %1189 = vmatpush1.bf16.msra.mxu0 0
    %1190 = vmatprep.subr.bf16.mxu0 0
    %1191 = vmatpush1.bf16.msra.mxu0 0
    %1192 = vmatprep.subr.bf16.mxu0 0
    %1193 = vmatpush1.bf16.msra.mxu0 0
    %1194 = vmatprep.subr.bf16.mxu0 0
    %1195 = vmatpush1.bf16.msra.mxu0 0
    %1196 = vmatprep.subr.bf16.mxu0 0
    %1197 = vmatpush1.bf16.msra.mxu0 0
    %1198 = vmatprep.mubr.bf16.mxu0 0
    %1199 = vmatmul.mubr.bf16.gmra.mrb[0].mxu0 %v1161
    %v1200 = vpop.f32.mrb[0].mxu0
    %v1201 = vadd.f32 0.0, %v1200
    %v1202 = vpop.f32.mrb[0].mxu0
    %v1203 = vpop.f32.mrb[0].mxu0
    %v1204 = vpop.f32.mrb[0].mxu0
    %1205 = vdwg.mxu0
    %v1207 = vsel %vm212, %v1100, 0
    %v1210 = vsel %vm718, %v1108, 0
    %1212 = vmatprep.subr.bf16.mxu0 0
    %1213 = vmatpush1.bf16.msra.mxu0 %v1210
    %1214 = vmatprep.subr.bf16.mxu0 0
    %1215 = vmatpush1.bf16.msra.mxu0 0
    %1216 = vmatprep.subr.bf16.mxu0 0
    %1217 = vmatpush1.bf16.msra.mxu0 0
    %1218 = vmatprep.subr.bf16.mxu0 0
    %1219 = vmatpush1.bf16.msra.mxu0 0
    %1220 = vmatprep.subr.bf16.mxu0 0
    %1221 = vmatpush1.bf16.msra.mxu0 0
    %1222 = vmatprep.subr.bf16.mxu0 0
    %1223 = vmatpush1.bf16.msra.mxu0 0
    %1224 = vmatprep.subr.bf16.mxu0 0
    %1225 = vmatpush1.bf16.msra.mxu0 0
    %1226 = vmatprep.subr.bf16.mxu0 0
    %1227 = vmatpush1.bf16.msra.mxu0 0
    %1228 = vmatprep.subr.bf16.mxu0 0
    %1229 = vmatpush1.bf16.msra.mxu0 0
    %1230 = vmatprep.subr.bf16.mxu0 0
    %1231 = vmatpush1.bf16.msra.mxu0 0
    %1232 = vmatprep.subr.bf16.mxu0 0
    %1233 = vmatpush1.bf16.msra.mxu0 0
    %1234 = vmatprep.subr.bf16.mxu0 0
    %1235 = vmatpush1.bf16.msra.mxu0 0
    %1236 = vmatprep.subr.bf16.mxu0 0
    %1237 = vmatpush1.bf16.msra.mxu0 0
    %1238 = vmatprep.subr.bf16.mxu0 0
    %1239 = vmatpush1.bf16.msra.mxu0 0
    %1240 = vmatprep.subr.bf16.mxu0 0
    %1241 = vmatpush1.bf16.msra.mxu0 0
    %1242 = vmatprep.subr.bf16.mxu0 0
    %1243 = vmatpush1.bf16.msra.mxu0 0
    %1244 = vmatprep.mubr.bf16.mxu0 0
    %1245 = vmatmul.mubr.bf16.gmra.mrb[0].mxu0 %v1207
    %v1246 = vpop.f32.mrb[0].mxu0
    %v1247 = vadd.f32 0.0, %v1246
    %v1248 = vpop.f32.mrb[0].mxu0
    %v1249 = vpop.f32.mrb[0].mxu0
    %v1250 = vpop.f32.mrb[0].mxu0
    %1251 = vdwg.mxu0
    %v1253 = vsel %vm212, %v1101, 0
    %v1256 = vsel %vm718, %v1109, 0
    %1258 = vmatprep.subr.bf16.mxu0 0
    %1259 = vmatpush1.bf16.msra.mxu0 %v1256
    %1260 = vmatprep.subr.bf16.mxu0 0
    %1261 = vmatpush1.bf16.msra.mxu0 0
    %1262 = vmatprep.subr.bf16.mxu0 0
    %1263 = vmatpush1.bf16.msra.mxu0 0
    %1264 = vmatprep.subr.bf16.mxu0 0
    %1265 = vmatpush1.bf16.msra.mxu0 0
    %1266 = vmatprep.subr.bf16.mxu0 0
    %1267 = vmatpush1.bf16.msra.mxu0 0
    %1268 = vmatprep.subr.bf16.mxu0 0
    %1269 = vmatpush1.bf16.msra.mxu0 0
    %1270 = vmatprep.subr.bf16.mxu0 0
    %1271 = vmatpush1.bf16.msra.mxu0 0
    %1272 = vmatprep.subr.bf16.mxu0 0
    %1273 = vmatpush1.bf16.msra.mxu0 0
    %1274 = vmatprep.subr.bf16.mxu0 0
    %1275 = vmatpush1.bf16.msra.mxu0 0
    %1276 = vmatprep.subr.bf16.mxu0 0
    %1277 = vmatpush1.bf16.msra.mxu0 0
    %1278 = vmatprep.subr.bf16.mxu0 0
    %1279 = vmatpush1.bf16.msra.mxu0 0
    %1280 = vmatprep.subr.bf16.mxu0 0
    %1281 = vmatpush1.bf16.msra.mxu0 0
    %1282 = vmatprep.subr.bf16.mxu0 0
    %1283 = vmatpush1.bf16.msra.mxu0 0
    %1284 = vmatprep.subr.bf16.mxu0 0
    %1285 = vmatpush1.bf16.msra.mxu0 0
    %1286 = vmatprep.subr.bf16.mxu0 0
    %1287 = vmatpush1.bf16.msra.mxu0 0
    %1288 = vmatprep.subr.bf16.mxu0 0
    %1289 = vmatpush1.bf16.msra.mxu0 0
    %1290 = vmatprep.mubr.bf16.mxu0 0
    %1291 = vmatmul.mubr.bf16.gmra.mrb[0].mxu0 %v1253
    %v1292 = vpop.f32.mrb[0].mxu0
    %v1293 = vadd.f32 0.0, %v1292
    %v1294 = vpop.f32.mrb[0].mxu0
    %v1295 = vpop.f32.mrb[0].mxu0
    %v1296 = vpop.f32.mrb[0].mxu0
    %1297 = vdwg.mxu0
    %v1299 = vsel %vm212, %v1102, 0
    %v1302 = vsel %vm718, %v1110, 0
    %1304 = vmatprep.subr.bf16.mxu0 0
    %1305 = vmatpush1.bf16.msra.mxu0 %v1302
    %1306 = vmatprep.subr.bf16.mxu0 0
    %1307 = vmatpush1.bf16.msra.mxu0 0
    %1308 = vmatprep.subr.bf16.mxu0 0
    %1309 = vmatpush1.bf16.msra.mxu0 0
    %1310 = vmatprep.subr.bf16.mxu0 0
    %1311 = vmatpush1.bf16.msra.mxu0 0
    %1312 = vmatprep.subr.bf16.mxu0 0
    %1313 = vmatpush1.bf16.msra.mxu0 0
    %1314 = vmatprep.subr.bf16.mxu0 0
    %1315 = vmatpush1.bf16.msra.mxu0 0
    %1316 = vmatprep.subr.bf16.mxu0 0
    %1317 = vmatpush1.bf16.msra.mxu0 0
    %1318 = vmatprep.subr.bf16.mxu0 0
    %1319 = vmatpush1.bf16.msra.mxu0 0
    %1320 = vmatprep.subr.bf16.mxu0 0
    %1321 = vmatpush1.bf16.msra.mxu0 0
    %1322 = vmatprep.subr.bf16.mxu0 0
    %1323 = vmatpush1.bf16.msra.mxu0 0
    %1324 = vmatprep.subr.bf16.mxu0 0
    %1325 = vmatpush1.bf16.msra.mxu0 0
    %1326 = vmatprep.subr.bf16.mxu0 0
    %1327 = vmatpush1.bf16.msra.mxu0 0
    %1328 = vmatprep.subr.bf16.mxu0 0
    %1329 = vmatpush1.bf16.msra.mxu0 0
    %1330 = vmatprep.subr.bf16.mxu0 0
    %1331 = vmatpush1.bf16.msra.mxu0 0
    %1332 = vmatprep.subr.bf16.mxu0 0
    %1333 = vmatpush1.bf16.msra.mxu0 0
    %1334 = vmatprep.subr.bf16.mxu0 0
    %1335 = vmatpush1.bf16.msra.mxu0 0
    %1336 = vmatprep.mubr.bf16.mxu0 0
    %1337 = vmatmul.mubr.bf16.gmra.mrb[0].mxu0 %v1299
    %v1338 = vpop.f32.mrb[0].mxu0
    %v1339 = vadd.f32 0.0, %v1338
    %v1340 = vpop.f32.mrb[0].mxu0
    %v1341 = vpop.f32.mrb[0].mxu0
    %v1342 = vpop.f32.mrb[0].mxu0
    %1343 = vdwg.mxu0
    %v1345 = vsel %vm212, %v1103, 0
    %v1348 = vsel %vm718, %v1111, 0
    %1350 = vmatprep.subr.bf16.mxu0 0
    %1351 = vmatpush1.bf16.msra.mxu0 %v1348
    %1352 = vmatprep.subr.bf16.mxu0 0
    %1353 = vmatpush1.bf16.msra.mxu0 0
    %1354 = vmatprep.subr.bf16.mxu0 0
    %1355 = vmatpush1.bf16.msra.mxu0 0
    %1356 = vmatprep.subr.bf16.mxu0 0
    %1357 = vmatpush1.bf16.msra.mxu0 0
    %1358 = vmatprep.subr.bf16.mxu0 0
    %1359 = vmatpush1.bf16.msra.mxu0 0
    %1360 = vmatprep.subr.bf16.mxu0 0
    %1361 = vmatpush1.bf16.msra.mxu0 0
    %1362 = vmatprep.subr.bf16.mxu0 0
    %1363 = vmatpush1.bf16.msra.mxu0 0
    %1364 = vmatprep.subr.bf16.mxu0 0
    %1365 = vmatpush1.bf16.msra.mxu0 0
    %1366 = vmatprep.subr.bf16.mxu0 0
    %1367 = vmatpush1.bf16.msra.mxu0 0
    %1368 = vmatprep.subr.bf16.mxu0 0
    %1369 = vmatpush1.bf16.msra.mxu0 0
    %1370 = vmatprep.subr.bf16.mxu0 0
    %1371 = vmatpush1.bf16.msra.mxu0 0
    %1372 = vmatprep.subr.bf16.mxu0 0
    %1373 = vmatpush1.bf16.msra.mxu0 0
    %1374 = vmatprep.subr.bf16.mxu0 0
    %1375 = vmatpush1.bf16.msra.mxu0 0
    %1376 = vmatprep.subr.bf16.mxu0 0
    %1377 = vmatpush1.bf16.msra.mxu0 0
    %1378 = vmatprep.subr.bf16.mxu0 0
    %1379 = vmatpush1.bf16.msra.mxu0 0
    %1380 = vmatprep.subr.bf16.mxu0 0
    %1381 = vmatpush1.bf16.msra.mxu0 0
    %1382 = vmatprep.mubr.bf16.mxu0 0
    %1383 = vmatmul.mubr.bf16.gmra.mrb[0].mxu0 %v1345
    %v1384 = vpop.f32.mrb[0].mxu0
    %v1385 = vadd.f32 0.0, %v1384
    %v1386 = vpop.f32.mrb[0].mxu0
    %v1387 = vpop.f32.mrb[0].mxu0
    %v1388 = vpop.f32.mrb[0].mxu0
    %1389 = vdwg.mxu0
    %v1391 = vsel %vm212, %v1104, 0
    %v1394 = vsel %vm718, %v1112, 0
    %1396 = vmatprep.subr.bf16.mxu0 0
    %1397 = vmatpush1.bf16.msra.mxu0 %v1394
    %1398 = vmatprep.subr.bf16.mxu0 0
    %1399 = vmatpush1.bf16.msra.mxu0 0
    %1400 = vmatprep.subr.bf16.mxu0 0
    %1401 = vmatpush1.bf16.msra.mxu0 0
    %1402 = vmatprep.subr.bf16.mxu0 0
    %1403 = vmatpush1.bf16.msra.mxu0 0
    %1404 = vmatprep.subr.bf16.mxu0 0
    %1405 = vmatpush1.bf16.msra.mxu0 0
    %1406 = vmatprep.subr.bf16.mxu0 0
    %1407 = vmatpush1.bf16.msra.mxu0 0
    %1408 = vmatprep.subr.bf16.mxu0 0
    %1409 = vmatpush1.bf16.msra.mxu0 0
    %1410 = vmatprep.subr.bf16.mxu0 0
    %1411 = vmatpush1.bf16.msra.mxu0 0
    %1412 = vmatprep.subr.bf16.mxu0 0
    %1413 = vmatpush1.bf16.msra.mxu0 0
    %1414 = vmatprep.subr.bf16.mxu0 0
    %1415 = vmatpush1.bf16.msra.mxu0 0
    %1416 = vmatprep.subr.bf16.mxu0 0
    %1417 = vmatpush1.bf16.msra.mxu0 0
    %1418 = vmatprep.subr.bf16.mxu0 0
    %1419 = vmatpush1.bf16.msra.mxu0 0
    %1420 = vmatprep.subr.bf16.mxu0 0
    %1421 = vmatpush1.bf16.msra.mxu0 0
    %1422 = vmatprep.subr.bf16.mxu0 0
    %1423 = vmatpush1.bf16.msra.mxu0 0
    %1424 = vmatprep.subr.bf16.mxu0 0
    %1425 = vmatpush1.bf16.msra.mxu0 0
    %1426 = vmatprep.subr.bf16.mxu0 0
    %1427 = vmatpush1.bf16.msra.mxu0 0
    %1428 = vmatprep.mubr.bf16.mxu0 0
    %1429 = vmatmul.mubr.bf16.gmra.mrb[0].mxu0 %v1391
    %v1430 = vpop.f32.mrb[0].mxu0
    %v1431 = vadd.f32 0.0, %v1430
    %v1432 = vpop.f32.mrb[0].mxu0
    %v1433 = vpop.f32.mrb[0].mxu0
    %v1434 = vpop.f32.mrb[0].mxu0
    %1435 = vdwg.mxu0
    %v1437 = vsel %vm212, %v1105, 0
    %v1440 = vsel %vm718, %v1113, 0
    %1442 = vmatprep.subr.bf16.mxu0 0
    %1443 = vmatpush1.bf16.msra.mxu0 %v1440
    %1444 = vmatprep.subr.bf16.mxu0 0
    %1445 = vmatpush1.bf16.msra.mxu0 0
    %1446 = vmatprep.subr.bf16.mxu0 0
    %1447 = vmatpush1.bf16.msra.mxu0 0
    %1448 = vmatprep.subr.bf16.mxu0 0
    %1449 = vmatpush1.bf16.msra.mxu0 0
    %1450 = vmatprep.subr.bf16.mxu0 0
    %1451 = vmatpush1.bf16.msra.mxu0 0
    %1452 = vmatprep.subr.bf16.mxu0 0
    %1453 = vmatpush1.bf16.msra.mxu0 0
    %1454 = vmatprep.subr.bf16.mxu0 0
    %1455 = vmatpush1.bf16.msra.mxu0 0
    %1456 = vmatprep.subr.bf16.mxu0 0
    %1457 = vmatpush1.bf16.msra.mxu0 0
    %1458 = vmatprep.subr.bf16.mxu0 0
    %1459 = vmatpush1.bf16.msra.mxu0 0
    %1460 = vmatprep.subr.bf16.mxu0 0
    %1461 = vmatpush1.bf16.msra.mxu0 0
    %1462 = vmatprep.subr.bf16.mxu0 0
    %1463 = vmatpush1.bf16.msra.mxu0 0
    %1464 = vmatprep.subr.bf16.mxu0 0
    %1465 = vmatpush1.bf16.msra.mxu0 0
    %1466 = vmatprep.subr.bf16.mxu0 0
    %1467 = vmatpush1.bf16.msra.mxu0 0
    %1468 = vmatprep.subr.bf16.mxu0 0
    %1469 = vmatpush1.bf16.msra.mxu0 0
    %1470 = vmatprep.subr.bf16.mxu0 0
    %1471 = vmatpush1.bf16.msra.mxu0 0
    %1472 = vmatprep.subr.bf16.mxu0 0
    %1473 = vmatpush1.bf16.msra.mxu0 0
    %1474 = vmatprep.mubr.bf16.mxu0 0
    %1475 = vmatmul.mubr.bf16.gmra.mrb[0].mxu0 %v1437
    %v1476 = vpop.f32.mrb[0].mxu0
    %v1477 = vadd.f32 0.0, %v1476
    %v1478 = vpop.f32.mrb[0].mxu0
    %v1479 = vpop.f32.mrb[0].mxu0
    %v1480 = vpop.f32.mrb[0].mxu0
    %1481 = vdwg.mxu0
    %v1482 = vsel %vm106, %v1155, 0.0
    %v1483 = vsel %vm106, %v1247, 0.0
    %v1484 = vadd.f32 %v1482, %v1483
    %v1485 = vsel %vm106, %v1339, 0.0
    %v1486 = vadd.f32 %v1484, %v1485
    %v1487 = vsel %vm106, %v1431, 0.0
    %v1488 = vadd.f32 %v1486, %v1487
    %v1489 = vsel %vm106, %v1201, 0.0
    %v1490 = vsel %vm106, %v1293, 0.0
    %v1491 = vadd.f32 %v1489, %v1490
    %v1492 = vsel %vm106, %v1385, 0.0
    %v1493 = vadd.f32 %v1491, %v1492
    %v1494 = vsel %vm106, %v1477, 0.0
    %v1495 = vadd.f32 %v1493, %v1494
    %v1496 = vld [vmem:[%s5] sm:$0x1]
    %v1498 = vlaneseq
    %v1499 = vshrl.u32 %v1498, 7
    %v1500 = vsub.s32 0, %v1499
    %v1501 = vrot.slane %v1496, %v1500
    %v1503 = vadd.f32 %v1488, %v1501
    %v1504 = vadd.f32 %v1495, %v1501
    %1505 = vst.msk [vmem:[#allocation10] sm:$0xff] %vm106, %v1503
    %1506 = vst.msk [vmem:[#allocation10 + $0x8] sm:$0xff] %vm106, %v1504
    // Predicated region
    $region42: #{tpu_custom_call.1} parent=1 // pred_check
      _
    $region43: #{tpu_custom_call.1} parent=1 // pred_check_branch
      %1508 = sbr.rel (0) target = $region45
    $region44: #{tpu_custom_call.1} parent=1 // pred_region
      %s1510 = ssub.s32 256, 256
      %1511 = vsyncadd [#allocation4], %s1510
      %s1512 = sshll.u32 [#allocation10], 4
      %s1513 = int_to_ptr.vmem [resolvable:$true] %s1512
      %1518 = dma.vmem_to_hbm [thread:$0]  %s1513, 256, %s6, [#allocation4], 128, 128, 8
    $region45: #{tpu_custom_call.1} parent=1 // pred_fallthru
      _
    // Predicated region
    $region46: #{tpu_custom_call.1} parent=1 // pred_check
      _
    $region47: #{tpu_custom_call.1} parent=1 // pred_check_branch
      %1520 = sbr.rel (0) target = $region49
    $region48: #{tpu_custom_call.1} parent=1 // pred_region
      %1521 = dma.done [#allocation4], 256
    $region49: #{tpu_custom_call.1} parent=1 // pred_fallthru
      _
    %1522 = vsyncpa [#allocation3], 1
    %1523 = vsyncpa [#allocation6], 1
    %1524 = vsyncpa [#allocation9], 1
    %1525 = vsyncpa [#allocation4], 1

// kernel: tpu_custom_call.1
$region0: #{tpu_custom_call.1}
  #allocation0 [shape = 'u32[]', space=smem, size = 0x4, offset = 0x4, fixed_abs, tag = 'smem constant byte address 0x4 - core index']
  #allocation1 [shape = 'u32[144,128]{1,0:T(1,128)}', space=vmem, size = 0x12000, scoped, tag = 'internal scratch']
  %s0 = inlined_call_operand.hbm [shape: f32[2,8,32], index: 0, kind: input, shape index: {}]
  %s1 = inlined_call_operand.hbm [shape: bf16[8,8], index: 1, kind: input, shape index: {}]
  %s2 = inlined_call_operand.hbm [shape: bf16[32,96], index: 2, kind: input, shape index: {}]
  %s3 = inlined_call_operand.vmem [shape: f32[1,96], index: 3, kind: input, shape index: {}]
  %s4 = inlined_call_operand.hbm [shape: bf16[8,8,32], index: 4, kind: input, shape index: {}]
  %s5 = inlined_call_operand.vmem [shape: f32[1,32], index: 5, kind: input, shape index: {}]
  %s6 = inlined_call_operand.hbm [shape: f32[2,8,32], index: 6, kind: output, shape index: {}]
  %s7 = sld [smem:[#allocation0]]
  $region50: #{tpu_custom_call.1} parent=0
    _
  %s9 = ssub.s32 1, %s7
  %s10 = scalar_select 0, %s9, %s7
  $region1: #{tpu_custom_call.1} parent=0
    #allocation2 [shape = 'u8[8192]{0}', space=vmem, size = 0x2000, scoped, tag = 'input window, operand 0, single buffered']
    #allocation3 [shape = 's32[1]{0}', space=sflag, size = 0x4, scoped, tag = 'scoped memory for tpu_custom_call.1']
    #allocation4 [shape = 's32[1]{0}', space=sflag, size = 0x4, scoped, tag = 'scoped memory for tpu_custom_call.1']
    #allocation5 [shape = 'u8[2048]{0}', space=vmem, size = 0x800, scoped, tag = 'input window, operand 1, single buffered']
    #allocation6 [shape = 's32[1]{0}', space=sflag, size = 0x4, scoped, tag = 'scoped memory for tpu_custom_call.1']
    #allocation7 [shape = 'u8[8192]{0}', space=vmem, size = 0x2000, scoped, tag = 'input window, operand 2, single buffered']
    #allocation8 [shape = 'u8[16384]{0}', space=vmem, size = 0x4000, scoped, tag = 'input window, operand 4, single buffered']
    #allocation9 [shape = 's32[1]{0}', space=sflag, size = 0x4, scoped, tag = 'scoped memory for tpu_custom_call.1']
    #allocation10 [shape = 'u8[8192]{0}', space=vmem, size = 0x2000, scoped, tag = 'output window, operand 0, single buffered']
    %11 = vsyncpa [#allocation3], 0
    %12 = vsyncpa [#allocation6], 0
    %13 = vsyncpa [#allocation9], 0
    %14 = vsyncpa [#allocation4], 0
    // Predicated region
    $region2: #{tpu_custom_call.1} parent=1 // pred_check
      _
    $region3: #{tpu_custom_call.1} parent=1 // pred_check_branch
      %16 = sbr.rel (0) target = $region5
    $region4: #{tpu_custom_call.1} parent=1 // pred_region
      %s18 = ssub.s32 256, 256
      %19 = vsyncadd [#allocation3], %s18
      %s20 = sshll.u32 [#allocation2], 4
      %s21 = int_to_ptr.vmem [resolvable:$true] %s20
      %26 = dma.hbm_to_vmem [thread:$0]  %s0, 256, %s21, [#allocation3], 128, 128, 8
    $region5: #{tpu_custom_call.1} parent=1 // pred_fallthru
      _
    // Predicated region
    $region6: #{tpu_custom_call.1} parent=1 // pred_check
      _
    $region7: #{tpu_custom_call.1} parent=1 // pred_check_branch
      %28 = sbr.rel (0) target = $region9
    $region8: #{tpu_custom_call.1} parent=1 // pred_region
      %s30 = ssub.s32 64, 64
      %31 = vsyncadd [#allocation6], %s30
      %s33 = sshll.u32 [#allocation5], 4
      %s34 = int_to_ptr.vmem [resolvable:$true] %s33
      %36 = dma.hbm_to_vmem [thread:$0]  %s1, 64, %s34, [#allocation6]
    $region9: #{tpu_custom_call.1} parent=1 // pred_fallthru
      _
    // Predicated region
    $region10: #{tpu_custom_call.1} parent=1 // pred_check
      _
    $region11: #{tpu_custom_call.1} parent=1 // pred_check_branch
      %38 = sbr.rel (0) target = $region13
    $region12: #{tpu_custom_call.1} parent=1 // pred_region
      %s40 = ssub.s32 256, 256
      %41 = vsyncadd [#allocation6], %s40
      %s42 = sshll.u32 [#allocation7], 4
      %s43 = int_to_ptr.vmem [resolvable:$true] %s42
      %48 = dma.hbm_to_vmem [thread:$0]  %s2, 256, %s43, [#allocation6], 64, 64, 4
    $region13: #{tpu_custom_call.1} parent=1 // pred_fallthru
      _
    // Predicated region
    $region14: #{tpu_custom_call.1} parent=1 // pred_check
      _
    $region15: #{tpu_custom_call.1} parent=1 // pred_check_branch
      %50 = sbr.rel (0) target = $region17
    $region16: #{tpu_custom_call.1} parent=1 // pred_region
      _
    $region17: #{tpu_custom_call.1} parent=1 // pred_fallthru
      _
    // Predicated region
    $region18: #{tpu_custom_call.1} parent=1 // pred_check
      _
    $region19: #{tpu_custom_call.1} parent=1 // pred_check_branch
      %52 = sbr.rel (0) target = $region21
    $region20: #{tpu_custom_call.1} parent=1 // pred_region
      %s54 = ssub.s32 512, 512
      %55 = vsyncadd [#allocation9], %s54
      %s56 = sshll.u32 [#allocation8], 4
      %s57 = int_to_ptr.vmem [resolvable:$true] %s56
      %62 = dma.hbm_to_vmem [thread:$0]  %s4, 512, %s57, [#allocation9], 64, 64, 4
    $region21: #{tpu_custom_call.1} parent=1 // pred_fallthru
      _
    // Predicated region
    $region22: #{tpu_custom_call.1} parent=1 // pred_check
      _
    $region23: #{tpu_custom_call.1} parent=1 // pred_check_branch
      %64 = sbr.rel (0) target = $region25
    $region24: #{tpu_custom_call.1} parent=1 // pred_region
      _
    $region25: #{tpu_custom_call.1} parent=1 // pred_fallthru
      _
    // Predicated region
    $region26: #{tpu_custom_call.1} parent=1 // pred_check
      _
    $region27: #{tpu_custom_call.1} parent=1 // pred_check_branch
      %66 = sbr.rel (0) target = $region29
    $region28: #{tpu_custom_call.1} parent=1 // pred_region
      %67 = dma.done [#allocation3], 256
    $region29: #{tpu_custom_call.1} parent=1 // pred_fallthru
      _
    // Predicated region
    $region30: #{tpu_custom_call.1} parent=1 // pred_check
      _
    $region31: #{tpu_custom_call.1} parent=1 // pred_check_branch
      %69 = sbr.rel (0) target = $region33
    $region32: #{tpu_custom_call.1} parent=1 // pred_region
      %70 = dma.done [#allocation6], 64
    $region33: #{tpu_custom_call.1} parent=1 // pred_fallthru
      _
    // Predicated region
    $region34: #{tpu_custom_call.1} parent=1 // pred_check
      _
    $region35: #{tpu_custom_call.1} parent=1 // pred_check_branch
      %72 = sbr.rel (0) target = $region37
    $region36: #{tpu_custom_call.1} parent=1 // pred_region
      %73 = dma.done [#allocation6], 256
    $region37: #{tpu_custom_call.1} parent=1 // pred_fallthru
      _
    // Predicated region
    $region38: #{tpu_custom_call.1} parent=1 // pred_check
      _
    $region39: #{tpu_custom_call.1} parent=1 // pred_check_branch
      %75 = sbr.rel (0) target = $region41
    $region40: #{tpu_custom_call.1} parent=1 // pred_region
      %76 = dma.done [#allocation9], 512
    $region41: #{tpu_custom_call.1} parent=1 // pred_fallthru
      _
    %v80 = vld [vmem:[#allocation2] sm:$0xff]
    %v81 = vld [vmem:[#allocation2 + $0x8] sm:$0xff]
    %v82 = vpack.c.bf16 %v81, %v80
    %v83 = vld [vmem:[#allocation7] sm:$0xf]
    %v84 = vld [vmem:[#allocation7 + $0x4] sm:$0xf]
    %v85 = vld [vmem:[#allocation7 + $0x8] sm:$0xf]
    %v86 = vld [vmem:[#allocation7 + $0xc] sm:$0xf]
    %v87 = vld [vmem:[%s3] sm:$0x1]
    %v89 = vlaneseq
    %v90 = vshrl.u32 %v89, 7
    %v91 = vsub.s32 0, %v90
    %v92 = vrot.slane %v87, %v91
    %v98 = vunpack.c.l.b16 %v83
    %v99 = vunpack.c.l.b16 %v84
    %v100 = vunpack.c.l.b16 %v85
    %v101 = vunpack.c.l.b16 %v86
    %v102 = vpack.c.b16 %v99, %v98
    %v103 = vpack.c.b16 %v101, %v100
    %vm106 = vcmask 261120
    %v108 = vsel %vm106, %v82, 0
    %110 = vmatprep.subr.bf16.mxu0 0
    %111 = vmatpush1.bf16.msra.mxu0 %v102
    %112 = vmatprep.subr.bf16.mxu0 0
    %113 = vmatpush1.bf16.msra.mxu0 %v103
    %114 = vmatprep.subr.bf16.mxu0 0
    %115 = vmatpush1.bf16.msra.mxu0 0
    %116 = vmatprep.subr.bf16.mxu0 0
    %117 = vmatpush1.bf16.msra.mxu0 0
    %118 = vmatprep.subr.bf16.mxu0 0
    %119 = vmatpush1.bf16.msra.mxu0 0
    %120 = vmatprep.subr.bf16.mxu0 0
    %121 = vmatpush1.bf16.msra.mxu0 0
    %122 = vmatprep.subr.bf16.mxu0 0
    %123 = vmatpush1.bf16.msra.mxu0 0
    %124 = vmatprep.subr.bf16.mxu0 0
    %125 = vmatpush1.bf16.msra.mxu0 0
    %126 = vmatprep.subr.bf16.mxu0 0
    %127 = vmatpush1.bf16.msra.mxu0 0
    %128 = vmatprep.subr.bf16.mxu0 0
    %129 = vmatpush1.bf16.msra.mxu0 0
    %130 = vmatprep.subr.bf16.mxu0 0
    %131 = vmatpush1.bf16.msra.mxu0 0
    %132 = vmatprep.subr.bf16.mxu0 0
    %133 = vmatpush1.bf16.msra.mxu0 0
    %134 = vmatprep.subr.bf16.mxu0 0
    %135 = vmatpush1.bf16.msra.mxu0 0
    %136 = vmatprep.subr.bf16.mxu0 0
    %137 = vmatpush1.bf16.msra.mxu0 0
    %138 = vmatprep.subr.bf16.mxu0 0
    %139 = vmatpush1.bf16.msra.mxu0 0
    %140 = vmatprep.subr.bf16.mxu0 0
    %141 = vmatpush1.bf16.msra.mxu0 0
    %142 = vmatprep.mubr.bf16.mxu0 0
    %143 = vmatmul.mubr.bf16.gmra.mrb[0].mxu0 %v108
    %v144 = vpop.f32.mrb[0].mxu0
    %v145 = vadd.f32 %v92, %v144
    %v146 = vpop.f32.mrb[0].mxu0
    %v147 = vpop.f32.mrb[0].mxu0
    %v148 = vadd.f32 %v92, %v147
    %v149 = vpop.f32.mrb[0].mxu0
    %150 = vdwg.mxu0
    %v151 = vmul.f32 %v145, 0.35355338
    %v152 = vmul.f32 %v148, 0.35355338
    %154 = vrot.lane.b32.xlu0 %v151, 120
    %v155 = vpop.permute.xlu0 %154
    %158 = vrot.lane.b32.xlu0 %v152, 120
    %v159 = vpop.permute.xlu0 %158
    %161 = vrot.lane.b32.xlu0 %v151, 112
    %v162 = vpop.permute.xlu0 %161
    %164 = vrot.lane.b32.xlu0 %v152, 112
    %v165 = vpop.permute.xlu0 %164
    %167 = vrot.lane.b32.xlu0 %v151, 104
    %v168 = vpop.permute.xlu0 %167
    %170 = vrot.lane.b32.xlu0 %v152, 104
    %v171 = vpop.permute.xlu0 %170
    %v173 = vpack.c.bf16 %v151, %v151
    %v174 = vpack.c.bf16 %v152, %v152
    %v175 = vpack.c.bf16 %v155, %v155
    %v176 = vpack.c.bf16 %v159, %v159
    %v177 = vpack.c.bf16 %v162, %v162
    %v178 = vpack.c.bf16 %v165, %v165
    %v179 = vpack.c.bf16 %v168, %v168
    %v180 = vpack.c.bf16 %v171, %v171
    %182 = vrot.lane.b32.xlu0 %v145, 120
    %v183 = vpop.permute.xlu0 %182
    %186 = vrot.lane.b32.xlu0 %v148, 120
    %v187 = vpop.permute.xlu0 %186
    %189 = vrot.lane.b32.xlu0 %v145, 112
    %v190 = vpop.permute.xlu0 %189
    %192 = vrot.lane.b32.xlu0 %v148, 112
    %v193 = vpop.permute.xlu0 %192
    %195 = vrot.lane.b32.xlu0 %v145, 104
    %v196 = vpop.permute.xlu0 %195
    %198 = vrot.lane.b32.xlu0 %v148, 104
    %v199 = vpop.permute.xlu0 %198
    %v201 = vpack.c.bf16 %v145, %v145
    %v202 = vpack.c.bf16 %v148, %v148
    %v203 = vpack.c.bf16 %v183, %v183
    %v204 = vpack.c.bf16 %v187, %v187
    %v205 = vpack.c.bf16 %v190, %v190
    %v206 = vpack.c.bf16 %v193, %v193
    %v207 = vpack.c.bf16 %v196, %v196
    %v208 = vpack.c.bf16 %v199, %v199
    %210 = vrot.lane.b32.xlu0 %v201, 96
    %v211 = vpop.permute.xlu0 %210
    %vm212 = vcmask 64512
    %v214 = vsel %vm212, %v173, 0
    %v217 = vsel %vm212, %v211, 0
    %219 = vmatprep.subr.bf16.mxu0 0
    %220 = vmatpush1.bf16.xpose.msra.mxu0 %v217
    %221 = vmatprep.subr.bf16.mxu0 0
    %222 = vmatpush1.bf16.xpose.msra.mxu0 0
    %223 = vmatprep.subr.bf16.mxu0 0
    %224 = vmatpush1.bf16.xpose.msra.mxu0 0
    %225 = vmatprep.subr.bf16.mxu0 0
    %226 = vmatpush1.bf16.xpose.msra.mxu0 0
    %227 = vmatprep.subr.bf16.mxu0 0
    %228 = vmatpush1.bf16.xpose.msra.mxu0 0
    %229 = vmatprep.subr.bf16.mxu0 0
    %230 = vmatpush1.bf16.xpose.msra.mxu0 0
    %231 = vmatprep.subr.bf16.mxu0 0
    %232 = vmatpush1.bf16.xpose.msra.mxu0 0
    %233 = vmatprep.subr.bf16.mxu0 0
    %234 = vmatpush1.bf16.xpose.msra.mxu0 0
    %235 = vmatprep.subr.bf16.mxu0 0
    %236 = vmatpush1.bf16.xpose.msra.mxu0 0
    %237 = vmatprep.subr.bf16.mxu0 0
    %238 = vmatpush1.bf16.xpose.msra.mxu0 0
    %239 = vmatprep.subr.bf16.mxu0 0
    %240 = vmatpush1.bf16.xpose.msra.mxu0 0
    %241 = vmatprep.subr.bf16.mxu0 0
    %242 = vmatpush1.bf16.xpose.msra.mxu0 0
    %243 = vmatprep.subr.bf16.mxu0 0
    %244 = vmatpush1.bf16.xpose.msra.mxu0 0
    %245 = vmatprep.subr.bf16.mxu0 0
    %246 = vmatpush1.bf16.xpose.msra.mxu0 0
    %247 = vmatprep.subr.bf16.mxu0 0
    %248 = vmatpush1.bf16.xpose.msra.mxu0 0
    %249 = vmatprep.subr.bf16.mxu0 0
    %250 = vmatpush1.bf16.xpose.msra.mxu0 0
    %251 = vmatprep.mubr.bf16.mxu0 0
    %252 = vmatmul.mubr.bf16.gmra.mrb[0].mxu0 %v214
    %v253 = vpop.f32.mrb[0].mxu0
    %v254 = vadd.f32 0.0, %v253
    %v255 = vpop.f32.mrb[0].mxu0
    %v256 = vpop.f32.mrb[0].mxu0
    %v257 = vpop.f32.mrb[0].mxu0
    %258 = vdwg.mxu0
    %260 = vrot.lane.b32.xlu0 %v202, 96
    %v261 = vpop.permute.xlu0 %260
    %v263 = vsel %vm212, %v174, 0
    %v266 = vsel %vm212, %v261, 0
    %268 = vmatprep.subr.bf16.mxu0 0
    %269 = vmatpush1.bf16.xpose.msra.mxu0 %v266
    %270 = vmatprep.subr.bf16.mxu0 0
    %271 = vmatpush1.bf16.xpose.msra.mxu0 0
    %272 = vmatprep.subr.bf16.mxu0 0
    %273 = vmatpush1.bf16.xpose.msra.mxu0 0
    %274 = vmatprep.subr.bf16.mxu0 0
    %275 = vmatpush1.bf16.xpose.msra.mxu0 0
    %276 = vmatprep.subr.bf16.mxu0 0
    %277 = vmatpush1.bf16.xpose.msra.mxu0 0
    %278 = vmatprep.subr.bf16.mxu0 0
    %279 = vmatpush1.bf16.xpose.msra.mxu0 0
    %280 = vmatprep.subr.bf16.mxu0 0
    %281 = vmatpush1.bf16.xpose.msra.mxu0 0
    %282 = vmatprep.subr.bf16.mxu0 0
    %283 = vmatpush1.bf16.xpose.msra.mxu0 0
    %284 = vmatprep.subr.bf16.mxu0 0
    %285 = vmatpush1.bf16.xpose.msra.mxu0 0
    %286 = vmatprep.subr.bf16.mxu0 0
    %287 = vmatpush1.bf16.xpose.msra.mxu0 0
    %288 = vmatprep.subr.bf16.mxu0 0
    %289 = vmatpush1.bf16.xpose.msra.mxu0 0
    %290 = vmatprep.subr.bf16.mxu0 0
    %291 = vmatpush1.bf16.xpose.msra.mxu0 0
    %292 = vmatprep.subr.bf16.mxu0 0
    %293 = vmatpush1.bf16.xpose.msra.mxu0 0
    %294 = vmatprep.subr.bf16.mxu0 0
    %295 = vmatpush1.bf16.xpose.msra.mxu0 0
    %296 = vmatprep.subr.bf16.mxu0 0
    %297 = vmatpush1.bf16.xpose.msra.mxu0 0
    %298 = vmatprep.subr.bf16.mxu0 0
    %299 = vmatpush1.bf16.xpose.msra.mxu0 0
    %300 = vmatprep.mubr.bf16.mxu0 0
    %301 = vmatmul.mubr.bf16.gmra.mrb[0].mxu0 %v263
    %v302 = vpop.f32.mrb[0].mxu0
    %v303 = vadd.f32 0.0, %v302
    %v304 = vpop.f32.mrb[0].mxu0
    %v305 = vpop.f32.mrb[0].mxu0
    %v306 = vpop.f32.mrb[0].mxu0
    %307 = vdwg.mxu0
    %309 = vrot.lane.b32.xlu0 %v203, 96
    %v310 = vpop.permute.xlu0 %309
    %v312 = vsel %vm212, %v175, 0
    %v315 = vsel %vm212, %v310, 0
    %317 = vmatprep.subr.bf16.mxu0 0
    %318 = vmatpush1.bf16.xpose.msra.mxu0 %v315
    %319 = vmatprep.subr.bf16.mxu0 0
    %320 = vmatpush1.bf16.xpose.msra.mxu0 0
    %321 = vmatprep.subr.bf16.mxu0 0
    %322 = vmatpush1.bf16.xpose.msra.mxu0 0
    %323 = vmatprep.subr.bf16.mxu0 0
    %324 = vmatpush1.bf16.xpose.msra.mxu0 0
    %325 = vmatprep.subr.bf16.mxu0 0
    %326 = vmatpush1.bf16.xpose.msra.mxu0 0
    %327 = vmatprep.subr.bf16.mxu0 0
    %328 = vmatpush1.bf16.xpose.msra.mxu0 0
    %329 = vmatprep.subr.bf16.mxu0 0
    %330 = vmatpush1.bf16.xpose.msra.mxu0 0
    %331 = vmatprep.subr.bf16.mxu0 0
    %332 = vmatpush1.bf16.xpose.msra.mxu0 0
    %333 = vmatprep.subr.bf16.mxu0 0
    %334 = vmatpush1.bf16.xpose.msra.mxu0 0
    %335 = vmatprep.subr.bf16.mxu0 0
    %336 = vmatpush1.bf16.xpose.msra.mxu0 0
    %337 = vmatprep.subr.bf16.mxu0 0
    %338 = vmatpush1.bf16.xpose.msra.mxu0 0
    %339 = vmatprep.subr.bf16.mxu0 0
    %340 = vmatpush1.bf16.xpose.msra.mxu0 0
    %341 = vmatprep.subr.bf16.mxu0 0
    %342 = vmatpush1.bf16.xpose.msra.mxu0 0
    %343 = vmatprep.subr.bf16.mxu0 0
    %344 = vmatpush1.bf16.xpose.msra.mxu0 0
    %345 = vmatprep.subr.bf16.mxu0 0
    %346 = vmatpush1.bf16.xpose.msra.mxu0 0
    %347 = vmatprep.subr.bf16.mxu0 0
    %348 = vmatpush1.bf16.xpose.msra.mxu0 0
    %349 = vmatprep.mubr.bf16.mxu0 0
    %350 = vmatmul.mubr.bf16.gmra.mrb[0].mxu0 %v312
    %v351 = vpop.f32.mrb[0].mxu0
    %v352 = vadd.f32 0.0, %v351
    %v353 = vpop.f32.mrb[0].mxu0
    %v354 = vpop.f32.mrb[0].mxu0
    %v355 = vpop.f32.mrb[0].mxu0
    %356 = vdwg.mxu0
    %358 = vrot.lane.b32.xlu0 %v204, 96
    %v359 = vpop.permute.xlu0 %358
    %v361 = vsel %vm212, %v176, 0
    %v364 = vsel %vm212, %v359, 0
    %366 = vmatprep.subr.bf16.mxu0 0
    %367 = vmatpush1.bf16.xpose.msra.mxu0 %v364
    %368 = vmatprep.subr.bf16.mxu0 0
    %369 = vmatpush1.bf16.xpose.msra.mxu0 0
    %370 = vmatprep.subr.bf16.mxu0 0
    %371 = vmatpush1.bf16.xpose.msra.mxu0 0
    %372 = vmatprep.subr.bf16.mxu0 0
    %373 = vmatpush1.bf16.xpose.msra.mxu0 0
    %374 = vmatprep.subr.bf16.mxu0 0
    %375 = vmatpush1.bf16.xpose.msra.mxu0 0
    %376 = vmatprep.subr.bf16.mxu0 0
    %377 = vmatpush1.bf16.xpose.msra.mxu0 0
    %378 = vmatprep.subr.bf16.mxu0 0
    %379 = vmatpush1.bf16.xpose.msra.mxu0 0
    %380 = vmatprep.subr.bf16.mxu0 0
    %381 = vmatpush1.bf16.xpose.msra.mxu0 0
    %382 = vmatprep.subr.bf16.mxu0 0
    %383 = vmatpush1.bf16.xpose.msra.mxu0 0
    %384 = vmatprep.subr.bf16.mxu0 0
    %385 = vmatpush1.bf16.xpose.msra.mxu0 0
    %386 = vmatprep.subr.bf16.mxu0 0
    %387 = vmatpush1.bf16.xpose.msra.mxu0 0
    %388 = vmatprep.subr.bf16.mxu0 0
    %389 = vmatpush1.bf16.xpose.msra.mxu0 0
    %390 = vmatprep.subr.bf16.mxu0 0
    %391 = vmatpush1.bf16.xpose.msra.mxu0 0
    %392 = vmatprep.subr.bf16.mxu0 0
    %393 = vmatpush1.bf16.xpose.msra.mxu0 0
    %394 = vmatprep.subr.bf16.mxu0 0
    %395 = vmatpush1.bf16.xpose.msra.mxu0 0
    %396 = vmatprep.subr.bf16.mxu0 0
    %397 = vmatpush1.bf16.xpose.msra.mxu0 0
    %398 = vmatprep.mubr.bf16.mxu0 0
    %399 = vmatmul.mubr.bf16.gmra.mrb[0].mxu0 %v361
    %v400 = vpop.f32.mrb[0].mxu0
    %v401 = vadd.f32 0.0, %v400
    %v402 = vpop.f32.mrb[0].mxu0
    %v403 = vpop.f32.mrb[0].mxu0
    %v404 = vpop.f32.mrb[0].mxu0
    %405 = vdwg.mxu0
    %407 = vrot.lane.b32.xlu0 %v205, 96
    %v408 = vpop.permute.xlu0 %407
    %v410 = vsel %vm212, %v177, 0
    %v413 = vsel %vm212, %v408, 0
    %415 = vmatprep.subr.bf16.mxu0 0
    %416 = vmatpush1.bf16.xpose.msra.mxu0 %v413
    %417 = vmatprep.subr.bf16.mxu0 0
    %418 = vmatpush1.bf16.xpose.msra.mxu0 0
    %419 = vmatprep.subr.bf16.mxu0 0
    %420 = vmatpush1.bf16.xpose.msra.mxu0 0
    %421 = vmatprep.subr.bf16.mxu0 0
    %422 = vmatpush1.bf16.xpose.msra.mxu0 0
    %423 = vmatprep.subr.bf16.mxu0 0
    %424 = vmatpush1.bf16.xpose.msra.mxu0 0
    %425 = vmatprep.subr.bf16.mxu0 0
    %426 = vmatpush1.bf16.xpose.msra.mxu0 0
    %427 = vmatprep.subr.bf16.mxu0 0
    %428 = vmatpush1.bf16.xpose.msra.mxu0 0
    %429 = vmatprep.subr.bf16.mxu0 0
    %430 = vmatpush1.bf16.xpose.msra.mxu0 0
    %431 = vmatprep.subr.bf16.mxu0 0
    %432 = vmatpush1.bf16.xpose.msra.mxu0 0
    %433 = vmatprep.subr.bf16.mxu0 0
    %434 = vmatpush1.bf16.xpose.msra.mxu0 0
    %435 = vmatprep.subr.bf16.mxu0 0
    %436 = vmatpush1.bf16.xpose.msra.mxu0 0
    %437 = vmatprep.subr.bf16.mxu0 0
    %438 = vmatpush1.bf16.xpose.msra.mxu0 0
    %439 = vmatprep.subr.bf16.mxu0 0
    %440 = vmatpush1.bf16.xpose.msra.mxu0 0
    %441 = vmatprep.subr.bf16.mxu0 0
    %442 = vmatpush1.bf16.xpose.msra.mxu0 0
    %443 = vmatprep.subr.bf16.mxu0 0
    %444 = vmatpush1.bf16.xpose.msra.mxu0 0
    %445 = vmatprep.subr.bf16.mxu0 0
    %446 = vmatpush1.bf16.xpose.msra.mxu0 0
    %447 = vmatprep.mubr.bf16.mxu0 0
    %448 = vmatmul.mubr.bf16.gmra.mrb[0].mxu0 %v410
    %v449 = vpop.f32.mrb[0].mxu0
    %v450 = vadd.f32 0.0, %v449
    %v451 = vpop.f32.mrb[0].mxu0
    %v452 = vpop.f32.mrb[0].mxu0
    %v453 = vpop.f32.mrb[0].mxu0
    %454 = vdwg.mxu0
    %456 = vrot.lane.b32.xlu0 %v206, 96
    %v457 = vpop.permute.xlu0 %456
    %v459 = vsel %vm212, %v178, 0
    %v462 = vsel %vm212, %v457, 0
    %464 = vmatprep.subr.bf16.mxu0 0
    %465 = vmatpush1.bf16.xpose.msra.mxu0 %v462
    %466 = vmatprep.subr.bf16.mxu0 0
    %467 = vmatpush1.bf16.xpose.msra.mxu0 0
    %468 = vmatprep.subr.bf16.mxu0 0
    %469 = vmatpush1.bf16.xpose.msra.mxu0 0
    %470 = vmatprep.subr.bf16.mxu0 0
    %471 = vmatpush1.bf16.xpose.msra.mxu0 0
    %472 = vmatprep.subr.bf16.mxu0 0
    %473 = vmatpush1.bf16.xpose.msra.mxu0 0
    %474 = vmatprep.subr.bf16.mxu0 0
    %475 = vmatpush1.bf16.xpose.msra.mxu0 0
    %476 = vmatprep.subr.bf16.mxu0 0
    %477 = vmatpush1.bf16.xpose.msra.mxu0 0
    %478 = vmatprep.subr.bf16.mxu0 0
    %479 = vmatpush1.bf16.xpose.msra.mxu0 0
    %480 = vmatprep.subr.bf16.mxu0 0
    %481 = vmatpush1.bf16.xpose.msra.mxu0 0
    %482 = vmatprep.subr.bf16.mxu0 0
    %483 = vmatpush1.bf16.xpose.msra.mxu0 0
    %484 = vmatprep.subr.bf16.mxu0 0
    %485 = vmatpush1.bf16.xpose.msra.mxu0 0
    %486 = vmatprep.subr.bf16.mxu0 0
    %487 = vmatpush1.bf16.xpose.msra.mxu0 0
    %488 = vmatprep.subr.bf16.mxu0 0
    %489 = vmatpush1.bf16.xpose.msra.mxu0 0
    %490 = vmatprep.subr.bf16.mxu0 0
    %491 = vmatpush1.bf16.xpose.msra.mxu0 0
    %492 = vmatprep.subr.bf16.mxu0 0
    %493 = vmatpush1.bf16.xpose.msra.mxu0 0
    %494 = vmatprep.subr.bf16.mxu0 0
    %495 = vmatpush1.bf16.xpose.msra.mxu0 0
    %496 = vmatprep.mubr.bf16.mxu0 0
    %497 = vmatmul.mubr.bf16.gmra.mrb[0].mxu0 %v459
    %v498 = vpop.f32.mrb[0].mxu0
    %v499 = vadd.f32 0.0, %v498
    %v500 = vpop.f32.mrb[0].mxu0
    %v501 = vpop.f32.mrb[0].mxu0
    %v502 = vpop.f32.mrb[0].mxu0
    %503 = vdwg.mxu0
    %505 = vrot.lane.b32.xlu0 %v207, 96
    %v506 = vpop.permute.xlu0 %505
    %v508 = vsel %vm212, %v179, 0
    %v511 = vsel %vm212, %v506, 0
    %513 = vmatprep.subr.bf16.mxu0 0
    %514 = vmatpush1.bf16.xpose.msra.mxu0 %v511
    %515 = vmatprep.subr.bf16.mxu0 0
    %516 = vmatpush1.bf16.xpose.msra.mxu0 0
    %517 = vmatprep.subr.bf16.mxu0 0
    %518 = vmatpush1.bf16.xpose.msra.mxu0 0
    %519 = vmatprep.subr.bf16.mxu0 0
    %520 = vmatpush1.bf16.xpose.msra.mxu0 0
    %521 = vmatprep.subr.bf16.mxu0 0
    %522 = vmatpush1.bf16.xpose.msra.mxu0 0
    %523 = vmatprep.subr.bf16.mxu0 0
    %524 = vmatpush1.bf16.xpose.msra.mxu0 0
    %525 = vmatprep.subr.bf16.mxu0 0
    %526 = vmatpush1.bf16.xpose.msra.mxu0 0
    %527 = vmatprep.subr.bf16.mxu0 0
    %528 = vmatpush1.bf16.xpose.msra.mxu0 0
    %529 = vmatprep.subr.bf16.mxu0 0
    %530 = vmatpush1.bf16.xpose.msra.mxu0 0
    %531 = vmatprep.subr.bf16.mxu0 0
    %532 = vmatpush1.bf16.xpose.msra.mxu0 0
    %533 = vmatprep.subr.bf16.mxu0 0
    %534 = vmatpush1.bf16.xpose.msra.mxu0 0
    %535 = vmatprep.subr.bf16.mxu0 0
    %536 = vmatpush1.bf16.xpose.msra.mxu0 0
    %537 = vmatprep.subr.bf16.mxu0 0
    %538 = vmatpush1.bf16.xpose.msra.mxu0 0
    %539 = vmatprep.subr.bf16.mxu0 0
    %540 = vmatpush1.bf16.xpose.msra.mxu0 0
    %541 = vmatprep.subr.bf16.mxu0 0
    %542 = vmatpush1.bf16.xpose.msra.mxu0 0
    %543 = vmatprep.subr.bf16.mxu0 0
    %544 = vmatpush1.bf16.xpose.msra.mxu0 0
    %545 = vmatprep.mubr.bf16.mxu0 0
    %546 = vmatmul.mubr.bf16.gmra.mrb[0].mxu0 %v508
    %v547 = vpop.f32.mrb[0].mxu0
    %v548 = vadd.f32 0.0, %v547
    %v549 = vpop.f32.mrb[0].mxu0
    %v550 = vpop.f32.mrb[0].mxu0
    %v551 = vpop.f32.mrb[0].mxu0
    %552 = vdwg.mxu0
    %554 = vrot.lane.b32.xlu0 %v208, 96
    %v555 = vpop.permute.xlu0 %554
    %v557 = vsel %vm212, %v180, 0
    %v560 = vsel %vm212, %v555, 0
    %562 = vmatprep.subr.bf16.mxu0 0
    %563 = vmatpush1.bf16.xpose.msra.mxu0 %v560
    %564 = vmatprep.subr.bf16.mxu0 0
    %565 = vmatpush1.bf16.xpose.msra.mxu0 0
    %566 = vmatprep.subr.bf16.mxu0 0
    %567 = vmatpush1.bf16.xpose.msra.mxu0 0
    %568 = vmatprep.subr.bf16.mxu0 0
    %569 = vmatpush1.bf16.xpose.msra.mxu0 0
    %570 = vmatprep.subr.bf16.mxu0 0
    %571 = vmatpush1.bf16.xpose.msra.mxu0 0
    %572 = vmatprep.subr.bf16.mxu0 0
    %573 = vmatpush1.bf16.xpose.msra.mxu0 0
    %574 = vmatprep.subr.bf16.mxu0 0
    %575 = vmatpush1.bf16.xpose.msra.mxu0 0
    %576 = vmatprep.subr.bf16.mxu0 0
    %577 = vmatpush1.bf16.xpose.msra.mxu0 0
    %578 = vmatprep.subr.bf16.mxu0 0
    %579 = vmatpush1.bf16.xpose.msra.mxu0 0
    %580 = vmatprep.subr.bf16.mxu0 0
    %581 = vmatpush1.bf16.xpose.msra.mxu0 0
    %582 = vmatprep.subr.bf16.mxu0 0
    %583 = vmatpush1.bf16.xpose.msra.mxu0 0
    %584 = vmatprep.subr.bf16.mxu0 0
    %585 = vmatpush1.bf16.xpose.msra.mxu0 0
    %586 = vmatprep.subr.bf16.mxu0 0
    %587 = vmatpush1.bf16.xpose.msra.mxu0 0
    %588 = vmatprep.subr.bf16.mxu0 0
    %589 = vmatpush1.bf16.xpose.msra.mxu0 0
    %590 = vmatprep.subr.bf16.mxu0 0
    %591 = vmatpush1.bf16.xpose.msra.mxu0 0
    %592 = vmatprep.subr.bf16.mxu0 0
    %593 = vmatpush1.bf16.xpose.msra.mxu0 0
    %594 = vmatprep.mubr.bf16.mxu0 0
    %595 = vmatmul.mubr.bf16.gmra.mrb[0].mxu0 %v557
    %v596 = vpop.f32.mrb[0].mxu0
    %v597 = vadd.f32 0.0, %v596
    %v598 = vpop.f32.mrb[0].mxu0
    %v599 = vpop.f32.mrb[0].mxu0
    %v600 = vpop.f32.mrb[0].mxu0
    %601 = vdwg.mxu0
    %v602 = vld [vmem:[#allocation5] sm:$0xf]
    %vm603 = vcmp.eq.bf16.partialorder %v602, 0
    %v604 = vsel %vm603, 65537, 0
    %v605 = vunpack.c.l.b16 %v604
    %vm606 = vcmp.ne.s32.totalorder %v605, 0
    %v607 = vsel %vm606, 1, 0
    %vm608 = vcmp.eq.s32.totalorder %v607, 1
    %v609 = vsel %vm608, -1e+30, %v254
    %v610 = vsel %vm608, -1e+30, %v303
    %v611 = vsel %vm608, -1e+30, %v352
    %v612 = vsel %vm608, -1e+30, %v401
    %v613 = vsel %vm608, -1e+30, %v450
    %v614 = vsel %vm608, -1e+30, %v499
    %v615 = vsel %vm608, -1e+30, %v548
    %v616 = vsel %vm608, -1e+30, %v597
    %v617 = vsel %vm212, %v609, -inf
    %618 = vmax.xlane.f32.xlu0 %v617
    %v619 = vpop.xlane.xlu0 %618
    %v620 = vsel %vm212, %v610, -inf
    %621 = vmax.xlane.f32.xlu0 %v620
    %v622 = vpop.xlane.xlu0 %621
    %v623 = vsel %vm212, %v611, -inf
    %624 = vmax.xlane.f32.xlu0 %v623
    %v625 = vpop.xlane.xlu0 %624
    %v626 = vsel %vm212, %v612, -inf
    %627 = vmax.xlane.f32.xlu0 %v626
    %v628 = vpop.xlane.xlu0 %627
    %v629 = vsel %vm212, %v613, -inf
    %630 = vmax.xlane.f32.xlu0 %v629
    %v631 = vpop.xlane.xlu0 %630
    %v632 = vsel %vm212, %v614, -inf
    %633 = vmax.xlane.f32.xlu0 %v632
    %v634 = vpop.xlane.xlu0 %633
    %v635 = vsel %vm212, %v615, -inf
    %636 = vmax.xlane.f32.xlu0 %v635
    %v637 = vpop.xlane.xlu0 %636
    %v638 = vsel %vm212, %v616, -inf
    %639 = vmax.xlane.f32.xlu0 %v638
    %v640 = vpop.xlane.xlu0 %639
    %v641 = vsub.f32 %v609, %v619
    %v642 = vsub.f32 %v610, %v622
    %v643 = vsub.f32 %v611, %v625
    %v644 = vsub.f32 %v612, %v628
    %v645 = vsub.f32 %v613, %v631
    %v646 = vsub.f32 %v614, %v634
    %v647 = vsub.f32 %v615, %v637
    %v648 = vsub.f32 %v616, %v640
    %v649 = vmul.f32 %v641, 1.442695
    %v650 = vpow.pop %v649
    %v651 = vmul.f32 %v642, 1.442695
    %v652 = vpow.pop %v651
    %v653 = vmul.f32 %v643, 1.442695
    %v654 = vpow.pop %v653
    %v655 = vmul.f32 %v644, 1.442695
    %v656 = vpow.pop %v655
    %v657 = vmul.f32 %v645, 1.442695
    %v658 = vpow.pop %v657
    %v659 = vmul.f32 %v646, 1.442695
    %v660 = vpow.pop %v659
    %v661 = vmul.f32 %v647, 1.442695
    %v662 = vpow.pop %v661
    %v663 = vmul.f32 %v648, 1.442695
    %v664 = vpow.pop %v663
    %v665 = vsel %vm212, %v650, 0.0
    %666 = vadd.xlane.f32.xlu0 %v665
    %v667 = vpop.xlane.xlu0 %666
    %v668 = vsel %vm212, %v652, 0.0
    %669 = vadd.xlane.f32.xlu0 %v668
    %v670 = vpop.xlane.xlu0 %669
    %v671 = vsel %vm212, %v654, 0.0
    %672 = vadd.xlane.f32.xlu0 %v671
    %v673 = vpop.xlane.xlu0 %672
    %v674 = vsel %vm212, %v656, 0.0
    %675 = vadd.xlane.f32.xlu0 %v674
    %v676 = vpop.xlane.xlu0 %675
    %v677 = vsel %vm212, %v658, 0.0
    %678 = vadd.xlane.f32.xlu0 %v677
    %v679 = vpop.xlane.xlu0 %678
    %v680 = vsel %vm212, %v660, 0.0
    %681 = vadd.xlane.f32.xlu0 %v680
    %v682 = vpop.xlane.xlu0 %681
    %v683 = vsel %vm212, %v662, 0.0
    %684 = vadd.xlane.f32.xlu0 %v683
    %v685 = vpop.xlane.xlu0 %684
    %v686 = vsel %vm212, %v664, 0.0
    %687 = vadd.xlane.f32.xlu0 %v686
    %v688 = vpop.xlane.xlu0 %687
    %v689 = vrcp.pop %v667
    %v690 = vrcp.pop %v670
    %v691 = vrcp.pop %v673
    %v692 = vrcp.pop %v676
    %v693 = vrcp.pop %v679
    %v694 = vrcp.pop %v682
    %v695 = vrcp.pop %v685
    %v696 = vrcp.pop %v688
    %v697 = vmul.f32 %v650, %v689
    %v698 = vmul.f32 %v652, %v690
    %v699 = vmul.f32 %v654, %v691
    %v700 = vmul.f32 %v656, %v692
    %v701 = vmul.f32 %v658, %v693
    %v702 = vmul.f32 %v660, %v694
    %v703 = vmul.f32 %v662, %v695
    %v704 = vmul.f32 %v664, %v696
    %v705 = vpack.c.bf16 %v697, %v697
    %v706 = vpack.c.bf16 %v698, %v698
    %v707 = vpack.c.bf16 %v699, %v699
    %v708 = vpack.c.bf16 %v700, %v700
    %v709 = vpack.c.bf16 %v701, %v701
    %v710 = vpack.c.bf16 %v702, %v702
    %v711 = vpack.c.bf16 %v703, %v703
    %v712 = vpack.c.bf16 %v704, %v704
    %713 = vrot.lane.b32.xlu0 %v201, 64
    %v714 = vpop.permute.xlu0 %713
    %v716 = vsel %vm212, %v705, 0
    %vm718 = vcmask 1043456
    %v720 = vsel %vm718, %v714, 0
    %722 = vmatprep.subr.bf16.mxu0 0
    %723 = vmatpush1.bf16.msra.mxu0 %v720
    %724 = vmatprep.subr.bf16.mxu0 0
    %725 = vmatpush1.bf16.msra.mxu0 0
    %726 = vmatprep.subr.bf16.mxu0 0
    %727 = vmatpush1.bf16.msra.mxu0 0
    %728 = vmatprep.subr.bf16.mxu0 0
    %729 = vmatpush1.bf16.msra.mxu0 0
    %730 = vmatprep.subr.bf16.mxu0 0
    %731 = vmatpush1.bf16.msra.mxu0 0
    %732 = vmatprep.subr.bf16.mxu0 0
    %733 = vmatpush1.bf16.msra.mxu0 0
    %734 = vmatprep.subr.bf16.mxu0 0
    %735 = vmatpush1.bf16.msra.mxu0 0
    %736 = vmatprep.subr.bf16.mxu0 0
    %737 = vmatpush1.bf16.msra.mxu0 0
    %738 = vmatprep.subr.bf16.mxu0 0
    %739 = vmatpush1.bf16.msra.mxu0 0
    %740 = vmatprep.subr.bf16.mxu0 0
    %741 = vmatpush1.bf16.msra.mxu0 0
    %742 = vmatprep.subr.bf16.mxu0 0
    %743 = vmatpush1.bf16.msra.mxu0 0
    %744 = vmatprep.subr.bf16.mxu0 0
    %745 = vmatpush1.bf16.msra.mxu0 0
    %746 = vmatprep.subr.bf16.mxu0 0
    %747 = vmatpush1.bf16.msra.mxu0 0
    %748 = vmatprep.subr.bf16.mxu0 0
    %749 = vmatpush1.bf16.msra.mxu0 0
    %750 = vmatprep.subr.bf16.mxu0 0
    %751 = vmatpush1.bf16.msra.mxu0 0
    %752 = vmatprep.subr.bf16.mxu0 0
    %753 = vmatpush1.bf16.msra.mxu0 0
    %754 = vmatprep.mubr.bf16.mxu0 0
    %755 = vmatmul.mubr.bf16.gmra.mrb[0].mxu0 %v716
    %v756 = vpop.f32.mrb[0].mxu0
    %v757 = vadd.f32 0.0, %v756
    %v758 = vpop.f32.mrb[0].mxu0
    %v759 = vpop.f32.mrb[0].mxu0
    %v760 = vpop.f32.mrb[0].mxu0
    %761 = vdwg.mxu0
    %762 = vrot.lane.b32.xlu0 %v202, 64
    %v763 = vpop.permute.xlu0 %762
    %v765 = vsel %vm212, %v706, 0
    %v768 = vsel %vm718, %v763, 0
    %770 = vmatprep.subr.bf16.mxu0 0
    %771 = vmatpush1.bf16.msra.mxu0 %v768
    %772 = vmatprep.subr.bf16.mxu0 0
    %773 = vmatpush1.bf16.msra.mxu0 0
    %774 = vmatprep.subr.bf16.mxu0 0
    %775 = vmatpush1.bf16.msra.mxu0 0
    %776 = vmatprep.subr.bf16.mxu0 0
    %777 = vmatpush1.bf16.msra.mxu0 0
    %778 = vmatprep.subr.bf16.mxu0 0
    %779 = vmatpush1.bf16.msra.mxu0 0
    %780 = vmatprep.subr.bf16.mxu0 0
    %781 = vmatpush1.bf16.msra.mxu0 0
    %782 = vmatprep.subr.bf16.mxu0 0
    %783 = vmatpush1.bf16.msra.mxu0 0
    %784 = vmatprep.subr.bf16.mxu0 0
    %785 = vmatpush1.bf16.msra.mxu0 0
    %786 = vmatprep.subr.bf16.mxu0 0
    %787 = vmatpush1.bf16.msra.mxu0 0
    %788 = vmatprep.subr.bf16.mxu0 0
    %789 = vmatpush1.bf16.msra.mxu0 0
    %790 = vmatprep.subr.bf16.mxu0 0
    %791 = vmatpush1.bf16.msra.mxu0 0
    %792 = vmatprep.subr.bf16.mxu0 0
    %793 = vmatpush1.bf16.msra.mxu0 0
    %794 = vmatprep.subr.bf16.mxu0 0
    %795 = vmatpush1.bf16.msra.mxu0 0
    %796 = vmatprep.subr.bf16.mxu0 0
    %797 = vmatpush1.bf16.msra.mxu0 0
    %798 = vmatprep.subr.bf16.mxu0 0
    %799 = vmatpush1.bf16.msra.mxu0 0
    %800 = vmatprep.subr.bf16.mxu0 0
    %801 = vmatpush1.bf16.msra.mxu0 0
    %802 = vmatprep.mubr.bf16.mxu0 0
    %803 = vmatmul.mubr.bf16.gmra.mrb[0].mxu0 %v765
    %v804 = vpop.f32.mrb[0].mxu0
    %v805 = vadd.f32 0.0, %v804
    %v806 = vpop.f32.mrb[0].mxu0
    %v807 = vpop.f32.mrb[0].mxu0
    %v808 = vpop.f32.mrb[0].mxu0
    %809 = vdwg.mxu0
    %810 = vrot.lane.b32.xlu0 %v203, 64
    %v811 = vpop.permute.xlu0 %810
    %v813 = vsel %vm212, %v707, 0
    %v816 = vsel %vm718, %v811, 0
    %818 = vmatprep.subr.bf16.mxu0 0
    %819 = vmatpush1.bf16.msra.mxu0 %v816
    %820 = vmatprep.subr.bf16.mxu0 0
    %821 = vmatpush1.bf16.msra.mxu0 0
    %822 = vmatprep.subr.bf16.mxu0 0
    %823 = vmatpush1.bf16.msra.mxu0 0
    %824 = vmatprep.subr.bf16.mxu0 0
    %825 = vmatpush1.bf16.msra.mxu0 0
    %826 = vmatprep.subr.bf16.mxu0 0
    %827 = vmatpush1.bf16.msra.mxu0 0
    %828 = vmatprep.subr.bf16.mxu0 0
    %829 = vmatpush1.bf16.msra.mxu0 0
    %830 = vmatprep.subr.bf16.mxu0 0
    %831 = vmatpush1.bf16.msra.mxu0 0
    %832 = vmatprep.subr.bf16.mxu0 0
    %833 = vmatpush1.bf16.msra.mxu0 0
    %834 = vmatprep.subr.bf16.mxu0 0
    %835 = vmatpush1.bf16.msra.mxu0 0
    %836 = vmatprep.subr.bf16.mxu0 0
    %837 = vmatpush1.bf16.msra.mxu0 0
    %838 = vmatprep.subr.bf16.mxu0 0
    %839 = vmatpush1.bf16.msra.mxu0 0
    %840 = vmatprep.subr.bf16.mxu0 0
    %841 = vmatpush1.bf16.msra.mxu0 0
    %842 = vmatprep.subr.bf16.mxu0 0
    %843 = vmatpush1.bf16.msra.mxu0 0
    %844 = vmatprep.subr.bf16.mxu0 0
    %845 = vmatpush1.bf16.msra.mxu0 0
    %846 = vmatprep.subr.bf16.mxu0 0
    %847 = vmatpush1.bf16.msra.mxu0 0
    %848 = vmatprep.subr.bf16.mxu0 0
    %849 = vmatpush1.bf16.msra.mxu0 0
    %850 = vmatprep.mubr.bf16.mxu0 0
    %851 = vmatmul.mubr.bf16.gmra.mrb[0].mxu0 %v813
    %v852 = vpop.f32.mrb[0].mxu0
    %v853 = vadd.f32 0.0, %v852
    %v854 = vpop.f32.mrb[0].mxu0
    %v855 = vpop.f32.mrb[0].mxu0
    %v856 = vpop.f32.mrb[0].mxu0
    %857 = vdwg.mxu0
    %858 = vrot.lane.b32.xlu0 %v204, 64
    %v859 = vpop.permute.xlu0 %858
    %v861 = vsel %vm212, %v708, 0
    %v864 = vsel %vm718, %v859, 0
    %866 = vmatprep.subr.bf16.mxu0 0
    %867 = vmatpush1.bf16.msra.mxu0 %v864
    %868 = vmatprep.subr.bf16.mxu0 0
    %869 = vmatpush1.bf16.msra.mxu0 0
    %870 = vmatprep.subr.bf16.mxu0 0
    %871 = vmatpush1.bf16.msra.mxu0 0
    %872 = vmatprep.subr.bf16.mxu0 0
    %873 = vmatpush1.bf16.msra.mxu0 0
    %874 = vmatprep.subr.bf16.mxu0 0
    %875 = vmatpush1.bf16.msra.mxu0 0
    %876 = vmatprep.subr.bf16.mxu0 0
    %877 = vmatpush1.bf16.msra.mxu0 0
    %878 = vmatprep.subr.bf16.mxu0 0
    %879 = vmatpush1.bf16.msra.mxu0 0
    %880 = vmatprep.subr.bf16.mxu0 0
    %881 = vmatpush1.bf16.msra.mxu0 0
    %882 = vmatprep.subr.bf16.mxu0 0
    %883 = vmatpush1.bf16.msra.mxu0 0
    %884 = vmatprep.subr.bf16.mxu0 0
    %885 = vmatpush1.bf16.msra.mxu0 0
    %886 = vmatprep.subr.bf16.mxu0 0
    %887 = vmatpush1.bf16.msra.mxu0 0
    %888 = vmatprep.subr.bf16.mxu0 0
    %889 = vmatpush1.bf16.msra.mxu0 0
    %890 = vmatprep.subr.bf16.mxu0 0
    %891 = vmatpush1.bf16.msra.mxu0 0
    %892 = vmatprep.subr.bf16.mxu0 0
    %893 = vmatpush1.bf16.msra.mxu0 0
    %894 = vmatprep.subr.bf16.mxu0 0
    %895 = vmatpush1.bf16.msra.mxu0 0
    %896 = vmatprep.subr.bf16.mxu0 0
    %897 = vmatpush1.bf16.msra.mxu0 0
    %898 = vmatprep.mubr.bf16.mxu0 0
    %899 = vmatmul.mubr.bf16.gmra.mrb[0].mxu0 %v861
    %v900 = vpop.f32.mrb[0].mxu0
    %v901 = vadd.f32 0.0, %v900
    %v902 = vpop.f32.mrb[0].mxu0
    %v903 = vpop.f32.mrb[0].mxu0
    %v904 = vpop.f32.mrb[0].mxu0
    %905 = vdwg.mxu0
    %906 = vrot.lane.b32.xlu0 %v205, 64
    %v907 = vpop.permute.xlu0 %906
    %v909 = vsel %vm212, %v709, 0
    %v912 = vsel %vm718, %v907, 0
    %914 = vmatprep.subr.bf16.mxu0 0
    %915 = vmatpush1.bf16.msra.mxu0 %v912
    %916 = vmatprep.subr.bf16.mxu0 0
    %917 = vmatpush1.bf16.msra.mxu0 0
    %918 = vmatprep.subr.bf16.mxu0 0
    %919 = vmatpush1.bf16.msra.mxu0 0
    %920 = vmatprep.subr.bf16.mxu0 0
    %921 = vmatpush1.bf16.msra.mxu0 0
    %922 = vmatprep.subr.bf16.mxu0 0
    %923 = vmatpush1.bf16.msra.mxu0 0
    %924 = vmatprep.subr.bf16.mxu0 0
    %925 = vmatpush1.bf16.msra.mxu0 0
    %926 = vmatprep.subr.bf16.mxu0 0
    %927 = vmatpush1.bf16.msra.mxu0 0
    %928 = vmatprep.subr.bf16.mxu0 0
    %929 = vmatpush1.bf16.msra.mxu0 0
    %930 = vmatprep.subr.bf16.mxu0 0
    %931 = vmatpush1.bf16.msra.mxu0 0
    %932 = vmatprep.subr.bf16.mxu0 0
    %933 = vmatpush1.bf16.msra.mxu0 0
    %934 = vmatprep.subr.bf16.mxu0 0
    %935 = vmatpush1.bf16.msra.mxu0 0
    %936 = vmatprep.subr.bf16.mxu0 0
    %937 = vmatpush1.bf16.msra.mxu0 0
    %938 = vmatprep.subr.bf16.mxu0 0
    %939 = vmatpush1.bf16.msra.mxu0 0
    %940 = vmatprep.subr.bf16.mxu0 0
    %941 = vmatpush1.bf16.msra.mxu0 0
    %942 = vmatprep.subr.bf16.mxu0 0
    %943 = vmatpush1.bf16.msra.mxu0 0
    %944 = vmatprep.subr.bf16.mxu0 0
    %945 = vmatpush1.bf16.msra.mxu0 0
    %946 = vmatprep.mubr.bf16.mxu0 0
    %947 = vmatmul.mubr.bf16.gmra.mrb[0].mxu0 %v909
    %v948 = vpop.f32.mrb[0].mxu0
    %v949 = vadd.f32 0.0, %v948
    %v950 = vpop.f32.mrb[0].mxu0
    %v951 = vpop.f32.mrb[0].mxu0
    %v952 = vpop.f32.mrb[0].mxu0
    %953 = vdwg.mxu0
    %954 = vrot.lane.b32.xlu0 %v206, 64
    %v955 = vpop.permute.xlu0 %954
    %v957 = vsel %vm212, %v710, 0
    %v960 = vsel %vm718, %v955, 0
    %962 = vmatprep.subr.bf16.mxu0 0
    %963 = vmatpush1.bf16.msra.mxu0 %v960
    %964 = vmatprep.subr.bf16.mxu0 0
    %965 = vmatpush1.bf16.msra.mxu0 0
    %966 = vmatprep.subr.bf16.mxu0 0
    %967 = vmatpush1.bf16.msra.mxu0 0
    %968 = vmatprep.subr.bf16.mxu0 0
    %969 = vmatpush1.bf16.msra.mxu0 0
    %970 = vmatprep.subr.bf16.mxu0 0
    %971 = vmatpush1.bf16.msra.mxu0 0
    %972 = vmatprep.subr.bf16.mxu0 0
    %973 = vmatpush1.bf16.msra.mxu0 0
    %974 = vmatprep.subr.bf16.mxu0 0
    %975 = vmatpush1.bf16.msra.mxu0 0
    %976 = vmatprep.subr.bf16.mxu0 0
    %977 = vmatpush1.bf16.msra.mxu0 0
    %978 = vmatprep.subr.bf16.mxu0 0
    %979 = vmatpush1.bf16.msra.mxu0 0
    %980 = vmatprep.subr.bf16.mxu0 0
    %981 = vmatpush1.bf16.msra.mxu0 0
    %982 = vmatprep.subr.bf16.mxu0 0
    %983 = vmatpush1.bf16.msra.mxu0 0
    %984 = vmatprep.subr.bf16.mxu0 0
    %985 = vmatpush1.bf16.msra.mxu0 0
    %986 = vmatprep.subr.bf16.mxu0 0
    %987 = vmatpush1.bf16.msra.mxu0 0
    %988 = vmatprep.subr.bf16.mxu0 0
    %989 = vmatpush1.bf16.msra.mxu0 0
    %990 = vmatprep.subr.bf16.mxu0 0
    %991 = vmatpush1.bf16.msra.mxu0 0
    %992 = vmatprep.subr.bf16.mxu0 0
    %993 = vmatpush1.bf16.msra.mxu0 0
    %994 = vmatprep.mubr.bf16.mxu0 0
    %995 = vmatmul.mubr.bf16.gmra.mrb[0].mxu0 %v957
    %v996 = vpop.f32.mrb[0].mxu0
    %v997 = vadd.f32 0.0, %v996
    %v998 = vpop.f32.mrb[0].mxu0
    %v999 = vpop.f32.mrb[0].mxu0
    %v1000 = vpop.f32.mrb[0].mxu0
    %1001 = vdwg.mxu0
    %1002 = vrot.lane.b32.xlu0 %v207, 64
    %v1003 = vpop.permute.xlu0 %1002
    %v1005 = vsel %vm212, %v711, 0
    %v1008 = vsel %vm718, %v1003, 0
    %1010 = vmatprep.subr.bf16.mxu0 0
    %1011 = vmatpush1.bf16.msra.mxu0 %v1008
    %1012 = vmatprep.subr.bf16.mxu0 0
    %1013 = vmatpush1.bf16.msra.mxu0 0
    %1014 = vmatprep.subr.bf16.mxu0 0
    %1015 = vmatpush1.bf16.msra.mxu0 0
    %1016 = vmatprep.subr.bf16.mxu0 0
    %1017 = vmatpush1.bf16.msra.mxu0 0
    %1018 = vmatprep.subr.bf16.mxu0 0
    %1019 = vmatpush1.bf16.msra.mxu0 0
    %1020 = vmatprep.subr.bf16.mxu0 0
    %1021 = vmatpush1.bf16.msra.mxu0 0
    %1022 = vmatprep.subr.bf16.mxu0 0
    %1023 = vmatpush1.bf16.msra.mxu0 0
    %1024 = vmatprep.subr.bf16.mxu0 0
    %1025 = vmatpush1.bf16.msra.mxu0 0
    %1026 = vmatprep.subr.bf16.mxu0 0
    %1027 = vmatpush1.bf16.msra.mxu0 0
    %1028 = vmatprep.subr.bf16.mxu0 0
    %1029 = vmatpush1.bf16.msra.mxu0 0
    %1030 = vmatprep.subr.bf16.mxu0 0
    %1031 = vmatpush1.bf16.msra.mxu0 0
    %1032 = vmatprep.subr.bf16.mxu0 0
    %1033 = vmatpush1.bf16.msra.mxu0 0
    %1034 = vmatprep.subr.bf16.mxu0 0
    %1035 = vmatpush1.bf16.msra.mxu0 0
    %1036 = vmatprep.subr.bf16.mxu0 0
    %1037 = vmatpush1.bf16.msra.mxu0 0
    %1038 = vmatprep.subr.bf16.mxu0 0
    %1039 = vmatpush1.bf16.msra.mxu0 0
    %1040 = vmatprep.subr.bf16.mxu0 0
    %1041 = vmatpush1.bf16.msra.mxu0 0
    %1042 = vmatprep.mubr.bf16.mxu0 0
    %1043 = vmatmul.mubr.bf16.gmra.mrb[0].mxu0 %v1005
    %v1044 = vpop.f32.mrb[0].mxu0
    %v1045 = vadd.f32 0.0, %v1044
    %v1046 = vpop.f32.mrb[0].mxu0
    %v1047 = vpop.f32.mrb[0].mxu0
    %v1048 = vpop.f32.mrb[0].mxu0
    %1049 = vdwg.mxu0
    %1050 = vrot.lane.b32.xlu0 %v208, 64
    %v1051 = vpop.permute.xlu0 %1050
    %v1053 = vsel %vm212, %v712, 0
    %v1056 = vsel %vm718, %v1051, 0
    %1058 = vmatprep.subr.bf16.mxu0 0
    %1059 = vmatpush1.bf16.msra.mxu0 %v1056
    %1060 = vmatprep.subr.bf16.mxu0 0
    %1061 = vmatpush1.bf16.msra.mxu0 0
    %1062 = vmatprep.subr.bf16.mxu0 0
    %1063 = vmatpush1.bf16.msra.mxu0 0
    %1064 = vmatprep.subr.bf16.mxu0 0
    %1065 = vmatpush1.bf16.msra.mxu0 0
    %1066 = vmatprep.subr.bf16.mxu0 0
    %1067 = vmatpush1.bf16.msra.mxu0 0
    %1068 = vmatprep.subr.bf16.mxu0 0
    %1069 = vmatpush1.bf16.msra.mxu0 0
    %1070 = vmatprep.subr.bf16.mxu0 0
    %1071 = vmatpush1.bf16.msra.mxu0 0
    %1072 = vmatprep.subr.bf16.mxu0 0
    %1073 = vmatpush1.bf16.msra.mxu0 0
    %1074 = vmatprep.subr.bf16.mxu0 0
    %1075 = vmatpush1.bf16.msra.mxu0 0
    %1076 = vmatprep.subr.bf16.mxu0 0
    %1077 = vmatpush1.bf16.msra.mxu0 0
    %1078 = vmatprep.subr.bf16.mxu0 0
    %1079 = vmatpush1.bf16.msra.mxu0 0
    %1080 = vmatprep.subr.bf16.mxu0 0
    %1081 = vmatpush1.bf16.msra.mxu0 0
    %1082 = vmatprep.subr.bf16.mxu0 0
    %1083 = vmatpush1.bf16.msra.mxu0 0
    %1084 = vmatprep.subr.bf16.mxu0 0
    %1085 = vmatpush1.bf16.msra.mxu0 0
    %1086 = vmatprep.subr.bf16.mxu0 0
    %1087 = vmatpush1.bf16.msra.mxu0 0
    %1088 = vmatprep.subr.bf16.mxu0 0
    %1089 = vmatpush1.bf16.msra.mxu0 0
    %1090 = vmatprep.mubr.bf16.mxu0 0
    %1091 = vmatmul.mubr.bf16.gmra.mrb[0].mxu0 %v1053
    %v1092 = vpop.f32.mrb[0].mxu0
    %v1093 = vadd.f32 0.0, %v1092
    %v1094 = vpop.f32.mrb[0].mxu0
    %v1095 = vpop.f32.mrb[0].mxu0
    %v1096 = vpop.f32.mrb[0].mxu0
    %1097 = vdwg.mxu0
    %v1098 = vpack.c.bf16 %v757, %v757
    %v1099 = vpack.c.bf16 %v805, %v805
    %v1100 = vpack.c.bf16 %v853, %v853
    %v1101 = vpack.c.bf16 %v901, %v901
    %v1102 = vpack.c.bf16 %v949, %v949
    %v1103 = vpack.c.bf16 %v997, %v997
    %v1104 = vpack.c.bf16 %v1045, %v1045
    %v1105 = vpack.c.bf16 %v1093, %v1093
    %v1106 = vld [vmem:[#allocation8] sm:$0xf]
    %v1107 = vld [vmem:[#allocation8 + $0x4] sm:$0xf]
    %v1108 = vld [vmem:[#allocation8 + $0x8] sm:$0xf]
    %v1109 = vld [vmem:[#allocation8 + $0xc] sm:$0xf]
    %v1110 = vld [vmem:[#allocation8 + $0x10] sm:$0xf]
    %v1111 = vld [vmem:[#allocation8 + $0x14] sm:$0xf]
    %v1112 = vld [vmem:[#allocation8 + $0x18] sm:$0xf]
    %v1113 = vld [vmem:[#allocation8 + $0x1c] sm:$0xf]
    %v1115 = vsel %vm212, %v1098, 0
    %v1118 = vsel %vm718, %v1106, 0
    %1120 = vmatprep.subr.bf16.mxu0 0
    %1121 = vmatpush1.bf16.msra.mxu0 %v1118
    %1122 = vmatprep.subr.bf16.mxu0 0
    %1123 = vmatpush1.bf16.msra.mxu0 0
    %1124 = vmatprep.subr.bf16.mxu0 0
    %1125 = vmatpush1.bf16.msra.mxu0 0
    %1126 = vmatprep.subr.bf16.mxu0 0
    %1127 = vmatpush1.bf16.msra.mxu0 0
    %1128 = vmatprep.subr.bf16.mxu0 0
    %1129 = vmatpush1.bf16.msra.mxu0 0
    %1130 = vmatprep.subr.bf16.mxu0 0
    %1131 = vmatpush1.bf16.msra.mxu0 0
    %1132 = vmatprep.subr.bf16.mxu0 0
    %1133 = vmatpush1.bf16.msra.mxu0 0
    %1134 = vmatprep.subr.bf16.mxu0 0
    %1135 = vmatpush1.bf16.msra.mxu0 0
    %1136 = vmatprep.subr.bf16.mxu0 0
    %1137 = vmatpush1.bf16.msra.mxu0 0
    %1138 = vmatprep.subr.bf16.mxu0 0
    %1139 = vmatpush1.bf16.msra.mxu0 0
    %1140 = vmatprep.subr.bf16.mxu0 0
    %1141 = vmatpush1.bf16.msra.mxu0 0
    %1142 = vmatprep.subr.bf16.mxu0 0
    %1143 = vmatpush1.bf16.msra.mxu0 0
    %1144 = vmatprep.subr.bf16.mxu0 0
    %1145 = vmatpush1.bf16.msra.mxu0 0
    %1146 = vmatprep.subr.bf16.mxu0 0
    %1147 = vmatpush1.bf16.msra.mxu0 0
    %1148 = vmatprep.subr.bf16.mxu0 0
    %1149 = vmatpush1.bf16.msra.mxu0 0
    %1150 = vmatprep.subr.bf16.mxu0 0
    %1151 = vmatpush1.bf16.msra.mxu0 0
    %1152 = vmatprep.mubr.bf16.mxu0 0
    %1153 = vmatmul.mubr.bf16.gmra.mrb[0].mxu0 %v1115
    %v1154 = vpop.f32.mrb[0].mxu0
    %v1155 = vadd.f32 0.0, %v1154
    %v1156 = vpop.f32.mrb[0].mxu0
    %v1157 = vpop.f32.mrb[0].mxu0
    %v1158 = vpop.f32.mrb[0].mxu0
    %1159 = vdwg.mxu0
    %v1161 = vsel %vm212, %v1099, 0
    %v1164 = vsel %vm718, %v1107, 0
    %1166 = vmatprep.subr.bf16.mxu0 0
    %1167 = vmatpush1.bf16.msra.mxu0 %v1164
    %1168 = vmatprep.subr.bf16.mxu0 0
    %1169 = vmatpush1.bf16.msra.mxu0 0
    %1170 = vmatprep.subr.bf16.mxu0 0
    %1171 = vmatpush1.bf16.msra.mxu0 0
    %1172 = vmatprep.subr.bf16.mxu0 0
    %1173 = vmatpush1.bf16.msra.mxu0 0
    %1174 = vmatprep.subr.bf16.mxu0 0
    %1175 = vmatpush1.bf16.msra.mxu0 0
    %1176 = vmatprep.subr.bf16.mxu0 0
    %1177 = vmatpush1.bf16.msra.mxu0 0
    %1178 = vmatprep.subr.bf16.mxu0 0
    %1179 = vmatpush1.bf16.msra.mxu0 0
    %1180 = vmatprep.subr.bf16.mxu0 0
    %1181 = vmatpush1.bf16.msra.mxu0 0
    %1182 = vmatprep.subr.bf16.mxu0 0
    %1183 = vmatpush1.bf16.msra.mxu0 0
    %1184 = vmatprep.subr.bf16.mxu0 0
    %1185 = vmatpush1.bf16.msra.mxu0 0
    %1186 = vmatprep.subr.bf16.mxu0 0
    %1187 = vmatpush1.bf16.msra.mxu0 0
    %1188 = vmatprep.subr.bf16.mxu0 0
    %1189 = vmatpush1.bf16.msra.mxu0 0
    %1190 = vmatprep.subr.bf16.mxu0 0
    %1191 = vmatpush1.bf16.msra.mxu0 0
    %1192 = vmatprep.subr.bf16.mxu0 0
    %1193 = vmatpush1.bf16.msra.mxu0 0
    %1194 = vmatprep.subr.bf16.mxu0 0
    %1195 = vmatpush1.bf16.msra.mxu0 0
    %1196 = vmatprep.subr.bf16.mxu0 0
    %1197 = vmatpush1.bf16.msra.mxu0 0
    %1198 = vmatprep.mubr.bf16.mxu0 0
    %1199 = vmatmul.mubr.bf16.gmra.mrb[0].mxu0 %v1161
    %v1200 = vpop.f32.mrb[0].mxu0
    %v1201 = vadd.f32 0.0, %v1200
    %v1202 = vpop.f32.mrb[0].mxu0
    %v1203 = vpop.f32.mrb[0].mxu0
    %v1204 = vpop.f32.mrb[0].mxu0
    %1205 = vdwg.mxu0
    %v1207 = vsel %vm212, %v1100, 0
    %v1210 = vsel %vm718, %v1108, 0
    %1212 = vmatprep.subr.bf16.mxu0 0
    %1213 = vmatpush1.bf16.msra.mxu0 %v1210
    %1214 = vmatprep.subr.bf16.mxu0 0
    %1215 = vmatpush1.bf16.msra.mxu0 0
    %1216 = vmatprep.subr.bf16.mxu0 0
    %1217 = vmatpush1.bf16.msra.mxu0 0
    %1218 = vmatprep.subr.bf16.mxu0 0
    %1219 = vmatpush1.bf16.msra.mxu0 0
    %1220 = vmatprep.subr.bf16.mxu0 0
    %1221 = vmatpush1.bf16.msra.mxu0 0
    %1222 = vmatprep.subr.bf16.mxu0 0
    %1223 = vmatpush1.bf16.msra.mxu0 0
    %1224 = vmatprep.subr.bf16.mxu0 0
    %1225 = vmatpush1.bf16.msra.mxu0 0
    %1226 = vmatprep.subr.bf16.mxu0 0
    %1227 = vmatpush1.bf16.msra.mxu0 0
    %1228 = vmatprep.subr.bf16.mxu0 0
    %1229 = vmatpush1.bf16.msra.mxu0 0
    %1230 = vmatprep.subr.bf16.mxu0 0
    %1231 = vmatpush1.bf16.msra.mxu0 0
    %1232 = vmatprep.subr.bf16.mxu0 0
    %1233 = vmatpush1.bf16.msra.mxu0 0
    %1234 = vmatprep.subr.bf16.mxu0 0
    %1235 = vmatpush1.bf16.msra.mxu0 0
    %1236 = vmatprep.subr.bf16.mxu0 0
    %1237 = vmatpush1.bf16.msra.mxu0 0
    %1238 = vmatprep.subr.bf16.mxu0 0
    %1239 = vmatpush1.bf16.msra.mxu0 0
    %1240 = vmatprep.subr.bf16.mxu0 0
    %1241 = vmatpush1.bf16.msra.mxu0 0
    %1242 = vmatprep.subr.bf16.mxu0 0
    %1243 = vmatpush1.bf16.msra.mxu0 0
    %1244 = vmatprep.mubr.bf16.mxu0 0
    %1245 = vmatmul.mubr.bf16.gmra.mrb[0].mxu0 %v1207
    %v1246 = vpop.f32.mrb[0].mxu0
    %v1247 = vadd.f32 0.0, %v1246
    %v1248 = vpop.f32.mrb[0].mxu0
    %v1249 = vpop.f32.mrb[0].mxu0
    %v1250 = vpop.f32.mrb[0].mxu0
    %1251 = vdwg.mxu0
    %v1253 = vsel %vm212, %v1101, 0
    %v1256 = vsel %vm718, %v1109, 0
    %1258 = vmatprep.subr.bf16.mxu0 0
    %1259 = vmatpush1.bf16.msra.mxu0 %v1256
    %1260 = vmatprep.subr.bf16.mxu0 0
    %1261 = vmatpush1.bf16.msra.mxu0 0
    %1262 = vmatprep.subr.bf16.mxu0 0
    %1263 = vmatpush1.bf16.msra.mxu0 0
    %1264 = vmatprep.subr.bf16.mxu0 0
    %1265 = vmatpush1.bf16.msra.mxu0 0
    %1266 = vmatprep.subr.bf16.mxu0 0
    %1267 = vmatpush1.bf16.msra.mxu0 0
    %1268 = vmatprep.subr.bf16.mxu0 0
    %1269 = vmatpush1.bf16.msra.mxu0 0
    %1270 = vmatprep.subr.bf16.mxu0 0
    %1271 = vmatpush1.bf16.msra.mxu0 0
    %1272 = vmatprep.subr.bf16.mxu0 0
    %1273 = vmatpush1.bf16.msra.mxu0 0
    %1274 = vmatprep.subr.bf16.mxu0 0
    %1275 = vmatpush1.bf16.msra.mxu0 0
    %1276 = vmatprep.subr.bf16.mxu0 0
    %1277 = vmatpush1.bf16.msra.mxu0 0
    %1278 = vmatprep.subr.bf16.mxu0 0
    %1279 = vmatpush1.bf16.msra.mxu0 0
    %1280 = vmatprep.subr.bf16.mxu0 0
    %1281 = vmatpush1.bf16.msra.mxu0 0
    %1282 = vmatprep.subr.bf16.mxu0 0
    %1283 = vmatpush1.bf16.msra.mxu0 0
    %1284 = vmatprep.subr.bf16.mxu0 0
    %1285 = vmatpush1.bf16.msra.mxu0 0
    %1286 = vmatprep.subr.bf16.mxu0 0
    %1287 = vmatpush1.bf16.msra.mxu0 0
    %1288 = vmatprep.subr.bf16.mxu0 0
    %1289 = vmatpush1.bf16.msra.mxu0 0
    %1290 = vmatprep.mubr.bf16.mxu0 0
    %1291 = vmatmul.mubr.bf16.gmra.mrb[0].mxu0 %v1253
    %v1292 = vpop.f32.mrb[0].mxu0
    %v1293 = vadd.f32 0.0, %v1292
    %v1294 = vpop.f32.mrb[0].mxu0
    %v1295 = vpop.f32.mrb[0].mxu0
    %v1296 = vpop.f32.mrb[0].mxu0
    %1297 = vdwg.mxu0
    %v1299 = vsel %vm212, %v1102, 0
    %v1302 = vsel %vm718, %v1110, 0
    %1304 = vmatprep.subr.bf16.mxu0 0
    %1305 = vmatpush1.bf16.msra.mxu0 %v1302
    %1306 = vmatprep.subr.bf16.mxu0 0
    %1307 = vmatpush1.bf16.msra.mxu0 0
    %1308 = vmatprep.subr.bf16.mxu0 0
    %1309 = vmatpush1.bf16.msra.mxu0 0
    %1310 = vmatprep.subr.bf16.mxu0 0
    %1311 = vmatpush1.bf16.msra.mxu0 0
    %1312 = vmatprep.subr.bf16.mxu0 0
    %1313 = vmatpush1.bf16.msra.mxu0 0
    %1314 = vmatprep.subr.bf16.mxu0 0
    %1315 = vmatpush1.bf16.msra.mxu0 0
    %1316 = vmatprep.subr.bf16.mxu0 0
    %1317 = vmatpush1.bf16.msra.mxu0 0
    %1318 = vmatprep.subr.bf16.mxu0 0
    %1319 = vmatpush1.bf16.msra.mxu0 0
    %1320 = vmatprep.subr.bf16.mxu0 0
    %1321 = vmatpush1.bf16.msra.mxu0 0
    %1322 = vmatprep.subr.bf16.mxu0 0
    %1323 = vmatpush1.bf16.msra.mxu0 0
    %1324 = vmatprep.subr.bf16.mxu0 0
    %1325 = vmatpush1.bf16.msra.mxu0 0
    %1326 = vmatprep.subr.bf16.mxu0 0
    %1327 = vmatpush1.bf16.msra.mxu0 0
    %1328 = vmatprep.subr.bf16.mxu0 0
    %1329 = vmatpush1.bf16.msra.mxu0 0
    %1330 = vmatprep.subr.bf16.mxu0 0
    %1331 = vmatpush1.bf16.msra.mxu0 0
    %1332 = vmatprep.subr.bf16.mxu0 0
    %1333 = vmatpush1.bf16.msra.mxu0 0
    %1334 = vmatprep.subr.bf16.mxu0 0
    %1335 = vmatpush1.bf16.msra.mxu0 0
    %1336 = vmatprep.mubr.bf16.mxu0 0
    %1337 = vmatmul.mubr.bf16.gmra.mrb[0].mxu0 %v1299
    %v1338 = vpop.f32.mrb[0].mxu0
    %v1339 = vadd.f32 0.0, %v1338
    %v1340 = vpop.f32.mrb[0].mxu0
    %v1341 = vpop.f32.mrb[0].mxu0
    %v1342 = vpop.f32.mrb[0].mxu0
    %1343 = vdwg.mxu0
    %v1345 = vsel %vm212, %v1103, 0
    %v1348 = vsel %vm718, %v1111, 0
    %1350 = vmatprep.subr.bf16.mxu0 0
    %1351 = vmatpush1.bf16.msra.mxu0 %v1348
    %1352 = vmatprep.subr.bf16.mxu0 0
    %1353 = vmatpush1.bf16.msra.mxu0 0
    %1354 = vmatprep.subr.bf16.mxu0 0
    %1355 = vmatpush1.bf16.msra.mxu0 0
    %1356 = vmatprep.subr.bf16.mxu0 0
    %1357 = vmatpush1.bf16.msra.mxu0 0
    %1358 = vmatprep.subr.bf16.mxu0 0
    %1359 = vmatpush1.bf16.msra.mxu0 0
    %1360 = vmatprep.subr.bf16.mxu0 0
    %1361 = vmatpush1.bf16.msra.mxu0 0
    %1362 = vmatprep.subr.bf16.mxu0 0
    %1363 = vmatpush1.bf16.msra.mxu0 0
    %1364 = vmatprep.subr.bf16.mxu0 0
    %1365 = vmatpush1.bf16.msra.mxu0 0
    %1366 = vmatprep.subr.bf16.mxu0 0
    %1367 = vmatpush1.bf16.msra.mxu0 0
    %1368 = vmatprep.subr.bf16.mxu0 0
    %1369 = vmatpush1.bf16.msra.mxu0 0
    %1370 = vmatprep.subr.bf16.mxu0 0
    %1371 = vmatpush1.bf16.msra.mxu0 0
    %1372 = vmatprep.subr.bf16.mxu0 0
    %1373 = vmatpush1.bf16.msra.mxu0 0
    %1374 = vmatprep.subr.bf16.mxu0 0
    %1375 = vmatpush1.bf16.msra.mxu0 0
    %1376 = vmatprep.subr.bf16.mxu0 0
    %1377 = vmatpush1.bf16.msra.mxu0 0
    %1378 = vmatprep.subr.bf16.mxu0 0
    %1379 = vmatpush1.bf16.msra.mxu0 0
    %1380 = vmatprep.subr.bf16.mxu0 0
    %1381 = vmatpush1.bf16.msra.mxu0 0
    %1382 = vmatprep.mubr.bf16.mxu0 0
    %1383 = vmatmul.mubr.bf16.gmra.mrb[0].mxu0 %v1345
    %v1384 = vpop.f32.mrb[0].mxu0
    %v1385 = vadd.f32 0.0, %v1384
    %v1386 = vpop.f32.mrb[0].mxu0
    %v1387 = vpop.f32.mrb[0].mxu0
    %v1388 = vpop.f32.mrb[0].mxu0
    %1389 = vdwg.mxu0
    %v1391 = vsel %vm212, %v1104, 0
    %v1394 = vsel %vm718, %v1112, 0
    %1396 = vmatprep.subr.bf16.mxu0 0
    %1397 = vmatpush1.bf16.msra.mxu0 %v1394
    %1398 = vmatprep.subr.bf16.mxu0 0
    %1399 = vmatpush1.bf16.msra.mxu0 0
    %1400 = vmatprep.subr.bf16.mxu0 0
    %1401 = vmatpush1.bf16.msra.mxu0 0
    %1402 = vmatprep.subr.bf16.mxu0 0
    %1403 = vmatpush1.bf16.msra.mxu0 0
    %1404 = vmatprep.subr.bf16.mxu0 0
    %1405 = vmatpush1.bf16.msra.mxu0 0
    %1406 = vmatprep.subr.bf16.mxu0 0
    %1407 = vmatpush1.bf16.msra.mxu0 0
    %1408 = vmatprep.subr.bf16.mxu0 0
    %1409 = vmatpush1.bf16.msra.mxu0 0
    %1410 = vmatprep.subr.bf16.mxu0 0
    %1411 = vmatpush1.bf16.msra.mxu0 0
    %1412 = vmatprep.subr.bf16.mxu0 0
    %1413 = vmatpush1.bf16.msra.mxu0 0
    %1414 = vmatprep.subr.bf16.mxu0 0
    %1415 = vmatpush1.bf16.msra.mxu0 0
    %1416 = vmatprep.subr.bf16.mxu0 0
    %1417 = vmatpush1.bf16.msra.mxu0 0
    %1418 = vmatprep.subr.bf16.mxu0 0
    %1419 = vmatpush1.bf16.msra.mxu0 0
    %1420 = vmatprep.subr.bf16.mxu0 0
    %1421 = vmatpush1.bf16.msra.mxu0 0
    %1422 = vmatprep.subr.bf16.mxu0 0
    %1423 = vmatpush1.bf16.msra.mxu0 0
    %1424 = vmatprep.subr.bf16.mxu0 0
    %1425 = vmatpush1.bf16.msra.mxu0 0
    %1426 = vmatprep.subr.bf16.mxu0 0
    %1427 = vmatpush1.bf16.msra.mxu0 0
    %1428 = vmatprep.mubr.bf16.mxu0 0
    %1429 = vmatmul.mubr.bf16.gmra.mrb[0].mxu0 %v1391
    %v1430 = vpop.f32.mrb[0].mxu0
    %v1431 = vadd.f32 0.0, %v1430
    %v1432 = vpop.f32.mrb[0].mxu0
    %v1433 = vpop.f32.mrb[0].mxu0
    %v1434 = vpop.f32.mrb[0].mxu0
    %1435 = vdwg.mxu0
    %v1437 = vsel %vm212, %v1105, 0
    %v1440 = vsel %vm718, %v1113, 0
    %1442 = vmatprep.subr.bf16.mxu0 0
    %1443 = vmatpush1.bf16.msra.mxu0 %v1440
    %1444 = vmatprep.subr.bf16.mxu0 0
    %1445 = vmatpush1.bf16.msra.mxu0 0
    %1446 = vmatprep.subr.bf16.mxu0 0
    %1447 = vmatpush1.bf16.msra.mxu0 0
    %1448 = vmatprep.subr.bf16.mxu0 0
    %1449 = vmatpush1.bf16.msra.mxu0 0
    %1450 = vmatprep.subr.bf16.mxu0 0
    %1451 = vmatpush1.bf16.msra.mxu0 0
    %1452 = vmatprep.subr.bf16.mxu0 0
    %1453 = vmatpush1.bf16.msra.mxu0 0
    %1454 = vmatprep.subr.bf16.mxu0 0
    %1455 = vmatpush1.bf16.msra.mxu0 0
    %1456 = vmatprep.subr.bf16.mxu0 0
    %1457 = vmatpush1.bf16.msra.mxu0 0
    %1458 = vmatprep.subr.bf16.mxu0 0
    %1459 = vmatpush1.bf16.msra.mxu0 0
    %1460 = vmatprep.subr.bf16.mxu0 0
    %1461 = vmatpush1.bf16.msra.mxu0 0
    %1462 = vmatprep.subr.bf16.mxu0 0
    %1463 = vmatpush1.bf16.msra.mxu0 0
    %1464 = vmatprep.subr.bf16.mxu0 0
    %1465 = vmatpush1.bf16.msra.mxu0 0
    %1466 = vmatprep.subr.bf16.mxu0 0
    %1467 = vmatpush1.bf16.msra.mxu0 0
    %1468 = vmatprep.subr.bf16.mxu0 0
    %1469 = vmatpush1.bf16.msra.mxu0 0
    %1470 = vmatprep.subr.bf16.mxu0 0
    %1471 = vmatpush1.bf16.msra.mxu0 0
    %1472 = vmatprep.subr.bf16.mxu0 0
    %1473 = vmatpush1.bf16.msra.mxu0 0
    %1474 = vmatprep.mubr.bf16.mxu0 0
    %1475 = vmatmul.mubr.bf16.gmra.mrb[0].mxu0 %v1437
    %v1476 = vpop.f32.mrb[0].mxu0
    %v1477 = vadd.f32 0.0, %v1476
    %v1478 = vpop.f32.mrb[0].mxu0
    %v1479 = vpop.f32.mrb[0].mxu0
    %v1480 = vpop.f32.mrb[0].mxu0
    %1481 = vdwg.mxu0
    %v1482 = vsel %vm106, %v1155, 0.0
    %v1483 = vsel %vm106, %v1247, 0.0
    %v1484 = vadd.f32 %v1482, %v1483
    %v1485 = vsel %vm106, %v1339, 0.0
    %v1486 = vadd.f32 %v1484, %v1485
    %v1487 = vsel %vm106, %v1431, 0.0
    %v1488 = vadd.f32 %v1486, %v1487
    %v1489 = vsel %vm106, %v1201, 0.0
    %v1490 = vsel %vm106, %v1293, 0.0
    %v1491 = vadd.f32 %v1489, %v1490
    %v1492 = vsel %vm106, %v1385, 0.0
    %v1493 = vadd.f32 %v1491, %v1492
    %v1494 = vsel %vm106, %v1477, 0.0
    %v1495 = vadd.f32 %v1493, %v1494
    %v1496 = vld [vmem:[%s5] sm:$0x1]
    %v1498 = vlaneseq
    %v1499 = vshrl.u32 %v1498, 7
    %v1500 = vsub.s32 0, %v1499
    %v1501 = vrot.slane %v1496, %v1500
    %v1503 = vadd.f32 %v1488, %v1501
    %v1504 = vadd.f32 %v1495, %v1501
    %1505 = vst.msk [vmem:[#allocation10] sm:$0xff] %vm106, %v1503
    %1506 = vst.msk [vmem:[#allocation10 + $0x8] sm:$0xff] %vm106, %v1504
    // Predicated region
    $region42: #{tpu_custom_call.1} parent=1 // pred_check
      _
    $region43: #{tpu_custom_call.1} parent=1 // pred_check_branch
      %1508 = sbr.rel (0) target = $region45
    $region44: #{tpu_custom_call.1} parent=1 // pred_region
      %s1510 = ssub.s32 256, 256
      %1511 = vsyncadd [#allocation4], %s1510
      %s1512 = sshll.u32 [#allocation10], 4
      %s1513 = int_to_ptr.vmem [resolvable:$true] %s1512
      %1518 = dma.vmem_to_hbm [thread:$0]  %s1513, 256, %s6, [#allocation4], 128, 128, 8
    $region45: #{tpu_custom_call.1} parent=1 // pred_fallthru
      _
    // Predicated region
    $region46: #{tpu_custom_call.1} parent=1 // pred_check
      _
    $region47: #{tpu_custom_call.1} parent=1 // pred_check_branch
      %1520 = sbr.rel (0) target = $region49
    $region48: #{tpu_custom_call.1} parent=1 // pred_region
      %1521 = dma.done [#allocation4], 256
    $region49: #{tpu_custom_call.1} parent=1 // pred_fallthru
      _
    %1522 = vsyncpa [#allocation3], 1
    %1523 = vsyncpa [#allocation6], 1
    %1524 = vsyncpa [#allocation9], 1
    %1525 = vsyncpa [#allocation4], 1

</llo_original>
